<compile_context>
chip_gen: v6e
topology: v6e:2x2x1
jax: 0.10.0
libtpu: 0.0.40
codegen_flags: <defaults>
</compile_context>

<pallas_src>
import math
from functools import partial

import jax
import jax.numpy as jnp
from jax import lax
from jax.experimental import pallas as pl
from jax.experimental.pallas import tpu as pltpu


# Packed small-vector layout: rows of a single (15, E) f32 array.
VEC_ROWS = ("sa_bq", "sa_bk", "sa_bv", "sa_bo",
            "ca_bq", "ca_bk", "ca_bv", "ca_bo",
            "b2", "ln1_g", "ln1_b", "ln2_g", "ln2_b", "ln3_g", "ln3_b")
_VIDX = {n: i for i, n in enumerate(VEC_ROWS)}

# NT matmul: contract the last dim of both operands (q @ k^T without materializing k^T).
_NT_DIMS = (((1,), (1,)), ((), ()))


# ----------------------------------------------------------------------------
# Shared math (works on Pallas Refs and plain jnp arrays: only [...] and static
# slicing are used on the weight arguments).
# ----------------------------------------------------------------------------
def _layernorm(x, g, b, eps):
    mu = jnp.mean(x, axis=-1, keepdims=True)
    xc = x - mu
    var = jnp.mean(xc * xc, axis=-1, keepdims=True)
    return xc * lax.rsqrt(var + eps) * g + b


def _attention(q, k, v, wo, bo, *, bb, t_q, s_kv, nhead,
               compute_dtype, exp_dtype, recip):
    """q: (bb*t_q, E) f32 (scale already folded into the packed q weights),
    k/v: (bb*s_kv, E) f32, wo: (E, E) pre-transposed out-proj (Ref or array),
    bo: (1, E) f32.  Per-(batch, head) 2-D matmuls; no stack/concat/transpose/
    reshape; head concat folded into the out-projection accumulation."""
    e = q.shape[-1]
    hd = e // nhead
    outs = []
    for b in range(bb):
        qr = slice(b * t_q, (b + 1) * t_q)
        kr = slice(b * s_kv, (b + 1) * s_kv)
        acc = jnp.zeros((t_q, e), jnp.float32)
        for h in range(nhead):
            hs = slice(h * hd, (h + 1) * hd)
            qh = q[qr, hs].astype(compute_dtype)           # (t, hd)
            kh = k[kr, hs].astype(compute_dtype)           # (s, hd)
            vh = v[kr, hs].astype(compute_dtype)           # (s, hd)
            sc = lax.dot_general(qh, kh, _NT_DIMS,
                                 preferred_element_type=jnp.float32)   # (t, s)
            mx = jnp.max(sc, axis=-1, keepdims=True)
            p = jnp.exp((sc - mx).astype(exp_dtype))       # bf16 exp on v6e/v7x
            denom = jnp.sum(p.astype(jnp.float32), axis=-1, keepdims=True)
            pv = jnp.dot(p.astype(compute_dtype), vh,
                         preferred_element_type=jnp.float32)            # (t, hd)
            oh = (pv * recip(denom)).astype(compute_dtype)
            # fold head concat into the output projection: sum_h oh @ Wo[h*hd:(h+1)*hd]
            acc = acc + jnp.dot(oh, wo[hs, :], preferred_element_type=jnp.float32)
        outs.append(acc)
    return jnp.concatenate(outs, axis=0) + bo               # (bb*t_q, E) f32


def _forward_math(x, mem, sa_w_in, sa_wo, ca_wq, ca_wkv, ca_wo, w1, w2, vecs, b1,
                  *, bb, t, s, nhead, eps, compute_dtype, exp_dtype, recip, ff_chunk):
    """x: (bb*t, E) f32, mem: (bb*s, E) f32.  Weights pre-transposed:
       sa_w_in (E,3E), sa_wo (E,E), ca_wq (E,E), ca_wkv (E,2E), ca_wo (E,E),
       w1 (E,F), w2 (F,E), vecs (15,E) f32, b1 (1,F) f32."""
    e = x.shape[-1]
    n = x.shape[0]
    f = w1.shape[-1]

    def vrow(name):
        i = _VIDX[name]
        return vecs[i:i + 1, :]                              # (1, E) f32

    x = x.astype(jnp.float32)
    mem_c = mem.astype(compute_dtype)
    attn = partial(_attention, bb=bb, nhead=nhead, compute_dtype=compute_dtype,
                   exp_dtype=exp_dtype, recip=recip)

    # ---- self-attention + residual + norm1 (dropout1 == identity) ----
    qkv = jnp.dot(x.astype(compute_dtype), sa_w_in[...],
                  preferred_element_type=jnp.float32)        # (n, 3E)
    q = qkv[:, :e] + vrow("sa_bq")                           # scale folded in pack
    k = qkv[:, e:2 * e] + vrow("sa_bk")
    v = qkv[:, 2 * e:] + vrow("sa_bv")
    sa = attn(q, k, v, sa_wo, vrow("sa_bo"), t_q=t, s_kv=t)
    x = _layernorm(x + sa, vrow("ln1_g"), vrow("ln1_b"), eps)

    # ---- cross-attention + residual + norm2 (dropout2 == identity) ----
    q = jnp.dot(x.astype(compute_dtype), ca_wq[...],
                preferred_element_type=jnp.float32) + vrow("ca_bq")
    kv = jnp.dot(mem_c, ca_wkv[...], preferred_element_type=jnp.float32)  # (bb*s, 2E)
    k = kv[:, :e] + vrow("ca_bk")
    v = kv[:, e:] + vrow("ca_bv")
    ca = attn(q, k, v, ca_wo, vrow("ca_bo"), t_q=t, s_kv=s)
    x = _layernorm(x + ca, vrow("ln2_g"), vrow("ln2_b"), eps)

    # ---- feed-forward (chunked over F) + residual + norm3 ----
    x_c = x.astype(compute_dtype)
    y = jnp.zeros((n, e), jnp.float32)
    n_chunks = -(-f // ff_chunk)
    for c in range(n_chunks):
        lo = c * ff_chunk
        hi = min(f, lo + ff_chunk)
        h_act = jnp.dot(x_c, w1[:, lo:hi],
                        preferred_element_type=jnp.float32) + b1[:, lo:hi]
        h_act = jnp.maximum(h_act, 0.0).astype(compute_dtype)
        y = y + jnp.dot(h_act, w2[lo:hi, :], preferred_element_type=jnp.float32)
    y = y + vrow("b2")
    x = _layernorm(x + y, vrow("ln3_g"), vrow("ln3_b"), eps)
    return x


# ----------------------------------------------------------------------------
# Pallas kernel: Bb batch elements per grid step, everything resident in VMEM.
# ----------------------------------------------------------------------------
def _decoder_layer_kernel(bb, t, s, nhead, eps, compute_dtype, exp_dtype, ff_chunk,
                          tgt_ref, mem_ref,
                          sa_w_in, sa_wo, ca_wq, ca_wkv, ca_wo, w1, w2, vecs, b1,
                          out_ref):
    x = tgt_ref[...]      # (bb*T, E)
    mem = mem_ref[...]    # (bb*S, E)
    out = _forward_math(
        x, mem, sa_w_in, sa_wo, ca_wq, ca_wkv, ca_wo, w1, w2, vecs, b1,
        bb=bb, t=t, s=s, nhead=nhead, eps=eps,
        compute_dtype=compute_dtype, exp_dtype=exp_dtype,
        recip=lambda d: pl.reciprocal(d, approx=True),
        ff_chunk=ff_chunk)
    out_ref[...] = out.astype(out_ref.dtype)


# ----------------------------------------------------------------------------
# Parameter packing: pre-transpose weights, fuse projections, fold the softmax
# scale into the q weights/biases, stack small vectors.
# ----------------------------------------------------------------------------
def _pack_params(p, nhead, compute_dtype):
    e = p["sa_wq"].shape[0]
    scale = 1.0 / math.sqrt(e // nhead)
    sa_w_in = jnp.concatenate(
        [(p["sa_wq"] * scale).T, p["sa_wk"].T, p["sa_wv"].T],
        axis=1).astype(compute_dtype)                                    # (E, 3E)
    sa_wo = p["sa_wo"].T.astype(compute_dtype)                           # (E, E)
    ca_wq = (p["ca_wq"] * scale).T.astype(compute_dtype)                 # (E, E)
    ca_wkv = jnp.concatenate(
        [p["ca_wk"].T, p["ca_wv"].T], axis=1).astype(compute_dtype)      # (E, 2E)
    ca_wo = p["ca_wo"].T.astype(compute_dtype)                           # (E, E)
    w1_t = p["w1"].T.astype(compute_dtype)                               # (E, F)
    w2_t = p["w2"].T.astype(compute_dtype)                               # (F, E)
    rows = []
    for name in VEC_ROWS:
        r = p[name].reshape(1, -1).astype(jnp.float32)
        if name in ("sa_bq", "ca_bq"):
            r = r * scale                                                # fold scale
        rows.append(r)
    vecs = jnp.concatenate(rows, axis=0)                                 # (15, E)
    b1 = p["b1"].reshape(1, -1).astype(jnp.float32)                      # (1, F)
    return [sa_w_in, sa_wo, ca_wq, ca_wkv, ca_wo, w1_t, w2_t, vecs, b1]


def _pick_batch_block(b, t, s, target_rows):
    """Largest Bb with B % Bb == 0 and 8-aligned row windows; fall back to full B
    (full-array blocks are always legal)."""
    want = max(1, min(b, -(-target_rows // max(t, 1))))
    want = min(want, 64)   # bound per-(b,h) unroll in pathological tiny-T cases
    for bb in range(want, 0, -1):
        if b % bb == 0 and (bb * t) % 8 == 0 and (bb * s) % 8 == 0:
            return bb
    return b


def transformer_decoder_layer(tgt, memory, params, nhead, eps=1e-5,
                              compute_dtype=jnp.bfloat16, exp_dtype=None,
                              ff_chunk=512, batch_block=None):
    """tgt: (T, B, E), memory: (S, B, E) -> (T, B, E). Post-norm decoder layer."""
    T, B, E = tgt.shape
    S = memory.shape[0]
    F = params["w1"].shape[0]
    ff_chunk = min(ff_chunk, F)

    kind = jax.devices()[0].device_kind.lower()
    is_v5 = "v5" in kind
    is_v7 = "v7" in kind
    if exp_dtype is None:
        # bf16 EUP exists on v6e/v7x only; keep f32 elsewhere (incl. v5e).
        exp_dtype = jnp.bfloat16 if ("v6" in kind or is_v7) else jnp.float32

    target_rows = 128 if is_v5 else 256            # MXU M-dim target
    bb = batch_block if batch_block is not None else _pick_batch_block(B, T, S, target_rows)

    # Batch-major, row-flattened 2-D slabs (one XLA transpose each); BlockSpec then
    # picks contiguous Bb*T / Bb*S row windows — no in-kernel reshapes/transposes.
    tgt2d = jnp.transpose(tgt, (1, 0, 2)).reshape(B * T, E)
    mem2d = jnp.transpose(memory, (1, 0, 2)).reshape(B * S, E)

    packed = _pack_params(params, nhead, compute_dtype)

    # --- per-generation VMEM budget (working set + headroom) ---
    weight_bytes = sum(w.size * w.dtype.itemsize for w in packed)
    io_bytes = 4 * (2 * bb * T * E + bb * S * E)
    tmp_bytes = 4 * (12 * bb * T * E + 3 * bb * S * E
                     + 3 * T * max(T, S) + 2 * bb * T * ff_chunk)
    vmem_est = 2 * weight_bytes + 2 * io_bytes + tmp_bytes + (8 << 20)
    phys_vmem = (64 << 20) if is_v7 else (128 << 20)
    vmem_limit = int(min(max(vmem_est, 32 << 20), int(phys_vmem * 0.85)))

    kernel = partial(_decoder_layer_kernel, bb, T, S, nhead, eps,
                     compute_dtype, exp_dtype, ff_chunk)

    # Weights use full-array blocks with a constant index_map, so the pipeline fetches
    # them once and never re-DMAs them across grid steps (the 2x double-buffer
    # allocation is accounted for in vmem_est above).
    in_specs = ([pl.BlockSpec((bb * T, E), lambda i: (i, 0)),
                 pl.BlockSpec((bb * S, E), lambda i: (i, 0))]
                + [pl.BlockSpec(w.shape, lambda i: (0, 0)) for w in packed])
    out_spec = pl.BlockSpec((bb * T, E), lambda i: (i, 0))

    out2d = pl.pallas_call(
        kernel,
        out_shape=jax.ShapeDtypeStruct((B * T, E), tgt.dtype),
        grid=(B // bb,),
        in_specs=in_specs,
        out_specs=out_spec,
        compiler_params=pltpu.CompilerParams(
            dimension_semantics=("parallel",),
            vmem_limit_bytes=vmem_limit),
    )(tgt2d, mem2d, *packed)

    return jnp.transpose(out2d.reshape(B, T, E), (1, 0, 2))


# ----------------------------------------------------------------------------
# Pure-JAX reference (identical math, no Pallas) for the correctness check.
# ----------------------------------------------------------------------------
def reference_forward(tgt, memory, params, nhead, eps=1e-5,
                      compute_dtype=jnp.bfloat16, exp_dtype=None, ff_chunk=512):
    T, B, E = tgt.shape
    S = memory.shape[0]
    F = params["w1"].shape[0]
    ff_chunk = min(ff_chunk, F)
    if exp_dtype is None:
        kind = jax.devices()[0].device_kind.lower()
        exp_dtype = jnp.bfloat16 if ("v6" in kind or "v7" in kind) else jnp.float32

    packed = _pack_params(params, nhead, compute_dtype)
    x = jnp.transpose(tgt, (1, 0, 2)).reshape(B * T, E)
    mem = jnp.transpose(memory, (1, 0, 2)).reshape(B * S, E)
    out = _forward_math(
        x, mem, *packed,
        bb=B, t=T, s=S, nhead=nhead, eps=eps,
        compute_dtype=compute_dtype, exp_dtype=exp_dtype,
        recip=lambda d: 1.0 / d, ff_chunk=ff_chunk)
    return jnp.transpose(out.reshape(B, T, E), (1, 0, 2)).astype(tgt.dtype)


# ----------------------------------------------------------------------------
# Deterministic parameter construction (mirrors nn.Module parameter shapes)
# ----------------------------------------------------------------------------
def make_params(key, d_model, nhead, dim_feedforward):
    E, F = d_model, dim_feedforward
    keys = jax.random.split(key, 12)

    def w(k, shape, scale=0.05):
        return jax.random.normal(k, shape, jnp.float32) * scale

    return {
        # self-attention: in_proj (3E, E) split into q/k/v; out_proj (E, E)
        "sa_wq": w(keys[0], (E, E)), "sa_wk": w(keys[1], (E, E)), "sa_wv": w(keys[2], (E, E)),
        "sa_bq": w(keys[3], (1, E), 0.01), "sa_bk": w(keys[3], (1, E), 0.02), "sa_bv": w(keys[3], (1, E), 0.03),
        "sa_wo": w(keys[4], (E, E)), "sa_bo": w(keys[4], (1, E), 0.01),
        # cross-attention
        "ca_wq": w(keys[5], (E, E)), "ca_wk": w(keys[6], (E, E)), "ca_wv": w(keys[7], (E, E)),
        "ca_bq": w(keys[8], (1, E), 0.01), "ca_bk": w(keys[8], (1, E), 0.02), "ca_bv": w(keys[8], (1, E), 0.03),
        "ca_wo": w(keys[9], (E, E)), "ca_bo": w(keys[9], (1, E), 0.01),
        # FFN: linear1 (F, E), linear2 (E, F)
        "w1": w(keys[10], (F, E)), "b1": w(keys[10], (1, F), 0.01),
        "w2": w(keys[11], (E, F)), "b2": w(keys[11], (1, E), 0.01),
        # LayerNorms
        "ln1_g": jnp.ones((1, E), jnp.float32), "ln1_b": jnp.zeros((1, E), jnp.float32),
        "ln2_g": jnp.ones((1, E), jnp.float32), "ln2_b": jnp.zeros((1, E), jnp.float32),
        "ln3_g": jnp.ones((1, E), jnp.float32), "ln3_b": jnp.zeros((1, E), jnp.float32),
    }


if __name__ == "__main__":
    d_model, nhead, dim_feedforward = 32, 4, 64
    T, S, B = 8, 10, 2

    key = jax.random.PRNGKey(0)
    k_tgt, k_mem, k_par = jax.random.split(key, 3)
    tgt = jax.random.normal(k_tgt, (T, B, d_model), jnp.float32)
    memory = jax.random.normal(k_mem, (S, B, d_model), jnp.float32)
    params = make_params(k_par, d_model, nhead, dim_feedforward)

    out = jax.block_until_ready(transformer_decoder_layer(tgt, memory, params, nhead))
    ref = jax.block_until_ready(reference_forward(tgt, memory, params, nhead))

    assert out.shape == (T, B, d_model)
    # bf16 matmuls (+ bf16 exp on v6e/v7x) and approx reciprocal on the kernel path.
    assert bool(jnp.allclose(out, ref, atol=2e-2, rtol=2e-2)), "mismatch vs reference"

    print("KERNEL_OK")
</pallas_src>

<mosaic_0001>
module attributes {stable_mosaic.version = 11 : i64} {
  func.func @_decoder_layer_kernel(%arg0: i32, %arg1: memref<16x32xf32, #tpu.memory_space<vmem>>, %arg2: memref<20x32xf32, #tpu.memory_space<vmem>>, %arg3: memref<32x96xbf16, #tpu.memory_space<vmem>>, %arg4: memref<32x32xbf16, #tpu.memory_space<vmem>>, %arg5: memref<32x32xbf16, #tpu.memory_space<vmem>>, %arg6: memref<32x64xbf16, #tpu.memory_space<vmem>>, %arg7: memref<32x32xbf16, #tpu.memory_space<vmem>>, %arg8: memref<32x64xbf16, #tpu.memory_space<vmem>>, %arg9: memref<64x32xbf16, #tpu.memory_space<vmem>>, %arg10: memref<15x32xf32, #tpu.memory_space<vmem>>, %arg11: memref<1x64xf32, #tpu.memory_space<vmem>>, %arg12: memref<16x32xf32, #tpu.memory_space<vmem>>) attributes {dimension_semantics = [#tpu.dimension_semantics<parallel>], iteration_bounds = array<i64: 1>, scalar_prefetch = 0 : i64, scratch_operands = 0 : i64, tpu.core_type = #tpu.core_type<tc>, window_params = [{transform_indices = @transform_0, window_bounds = array<i64: 16, 32>}, {transform_indices = @transform_1, window_bounds = array<i64: 20, 32>}, {pipeline_mode = #tpu.pipeline_mode<synchronous>, transform_indices = @transform_2, window_bounds = array<i64: 32, 96>}, {pipeline_mode = #tpu.pipeline_mode<synchronous>, transform_indices = @transform_3, window_bounds = array<i64: 32, 32>}, {pipeline_mode = #tpu.pipeline_mode<synchronous>, transform_indices = @transform_4, window_bounds = array<i64: 32, 32>}, {pipeline_mode = #tpu.pipeline_mode<synchronous>, transform_indices = @transform_5, window_bounds = array<i64: 32, 64>}, {pipeline_mode = #tpu.pipeline_mode<synchronous>, transform_indices = @transform_6, window_bounds = array<i64: 32, 32>}, {pipeline_mode = #tpu.pipeline_mode<synchronous>, transform_indices = @transform_7, window_bounds = array<i64: 32, 64>}, {pipeline_mode = #tpu.pipeline_mode<synchronous>, transform_indices = @transform_8, window_bounds = array<i64: 64, 32>}, {pipeline_mode = #tpu.pipeline_mode<synchronous>, transform_indices = @transform_9, window_bounds = array<i64: 15, 32>}, {pipeline_mode = #tpu.pipeline_mode<synchronous>, transform_indices = @transform_10, window_bounds = array<i64: 1, 64>}, {transform_indices = @transform_11, window_bounds = array<i64: 16, 32>}]} {
    %c0 = arith.constant 0 : index
    %c0_0 = arith.constant 0 : index
    %0 = vector.load %arg1[%c0, %c0_0] : memref<16x32xf32, #tpu.memory_space<vmem>>, vector<16x32xf32>
    %c0_1 = arith.constant 0 : index
    %c0_2 = arith.constant 0 : index
    %1 = vector.load %arg2[%c0_1, %c0_2] : memref<20x32xf32, #tpu.memory_space<vmem>>, vector<20x32xf32>
    %2 = arith.truncf %1 : vector<20x32xf32> to vector<20x32xbf16>
    %3 = arith.truncf %0 : vector<16x32xf32> to vector<16x32xbf16>
    %c0_3 = arith.constant 0 : index
    %c0_4 = arith.constant 0 : index
    %4 = vector.load %arg3[%c0_3, %c0_4] : memref<32x96xbf16, #tpu.memory_space<vmem>>, vector<32x96xbf16>
    %cst = arith.constant dense<0.000000e+00> : vector<16x96xf32>
    %5 = tpu.matmul %3, %4, %cst {dimension_numbers = #tpu.dot_dimension_numbers<[1], [0], [0], [1], [0, 0, 1, 1], [], []>} : vector<16x32xbf16>, vector<32x96xbf16>, vector<16x96xf32> -> vector<16x96xf32>
    %6 = vector.extract_strided_slice %5 {offsets = [0, 0], sizes = [16, 32], strides = [1, 1]} : vector<16x96xf32> to vector<16x32xf32>
    %c0_5 = arith.constant 0 : index
    %c0_6 = arith.constant 0 : index
    %7 = vector.load %arg10[%c0_5, %c0_6] : memref<15x32xf32, #tpu.memory_space<vmem>>, vector<1x32xf32>
    %8 = vector.broadcast %7 : vector<1x32xf32> to vector<16x32xf32>
    %9 = arith.addf %6, %8 : vector<16x32xf32>
    %10 = vector.extract_strided_slice %5 {offsets = [0, 32], sizes = [16, 32], strides = [1, 1]} : vector<16x96xf32> to vector<16x32xf32>
    %c1 = arith.constant 1 : index
    %c0_7 = arith.constant 0 : index
    %11 = vector.load %arg10[%c1, %c0_7] : memref<15x32xf32, #tpu.memory_space<vmem>>, vector<1x32xf32>
    %12 = vector.broadcast %11 : vector<1x32xf32> to vector<16x32xf32>
    %13 = arith.addf %10, %12 : vector<16x32xf32>
    %14 = vector.extract_strided_slice %5 {offsets = [0, 64], sizes = [16, 32], strides = [1, 1]} : vector<16x96xf32> to vector<16x32xf32>
    %c2 = arith.constant 2 : index
    %c0_8 = arith.constant 0 : index
    %15 = vector.load %arg10[%c2, %c0_8] : memref<15x32xf32, #tpu.memory_space<vmem>>, vector<1x32xf32>
    %16 = vector.broadcast %15 : vector<1x32xf32> to vector<16x32xf32>
    %17 = arith.addf %14, %16 : vector<16x32xf32>
    %c3 = arith.constant 3 : index
    %c0_9 = arith.constant 0 : index
    %18 = vector.load %arg10[%c3, %c0_9] : memref<15x32xf32, #tpu.memory_space<vmem>>, vector<1x32xf32>
    %cst_10 = arith.constant 0.000000e+00 : f32
    %19 = vector.broadcast %cst_10 : f32 to vector<8x32xf32>
    %20 = vector.extract_strided_slice %9 {offsets = [0, 0], sizes = [8, 8], strides = [1, 1]} : vector<16x32xf32> to vector<8x8xf32>
    %21 = arith.truncf %20 : vector<8x8xf32> to vector<8x8xbf16>
    %22 = vector.extract_strided_slice %13 {offsets = [0, 0], sizes = [8, 8], strides = [1, 1]} : vector<16x32xf32> to vector<8x8xf32>
    %23 = arith.truncf %22 : vector<8x8xf32> to vector<8x8xbf16>
    %24 = vector.extract_strided_slice %17 {offsets = [0, 0], sizes = [8, 8], strides = [1, 1]} : vector<16x32xf32> to vector<8x8xf32>
    %25 = arith.truncf %24 : vector<8x8xf32> to vector<8x8xbf16>
    %cst_11 = arith.constant dense<0.000000e+00> : vector<8x8xf32>
    %26 = tpu.matmul %21, %23, %cst_11 {dimension_numbers = #tpu.dot_dimension_numbers<[1], [1], [0], [0], [0, 0, 1, 0], [], []>} : vector<8x8xbf16>, vector<8x8xbf16>, vector<8x8xf32> -> vector<8x8xf32>
    %cst_12 = arith.constant dense<0xFF800000> : vector<8xf32>
    %27 = vector.multi_reduction <maximumf>, %26, %cst_12 [1] : vector<8x8xf32> to vector<8xf32>
    %28 = vector.shape_cast %27 : vector<8xf32> to vector<8x1xf32>
    %29 = vector.broadcast %28 : vector<8x1xf32> to vector<8x8xf32>
    %30 = arith.subf %26, %29 : vector<8x8xf32>
    %31 = math.exp %30 : vector<8x8xf32>
    %cst_13 = arith.constant dense<0.000000e+00> : vector<8xf32>
    %32 = vector.multi_reduction <add>, %31, %cst_13 [1] : vector<8x8xf32> to vector<8xf32>
    %33 = vector.shape_cast %32 : vector<8xf32> to vector<8x1xf32>
    %34 = arith.truncf %31 : vector<8x8xf32> to vector<8x8xbf16>
    %cst_14 = arith.constant dense<0.000000e+00> : vector<8x8xf32>
    %35 = tpu.matmul %34, %25, %cst_14 {dimension_numbers = #tpu.dot_dimension_numbers<[1], [0], [0], [1], [0, 0, 1, 1], [], []>} : vector<8x8xbf16>, vector<8x8xbf16>, vector<8x8xf32> -> vector<8x8xf32>
    %36 = tpu.reciprocal %33 {approx = true} : vector<8x1xf32> -> vector<8x1xf32>
    %37 = vector.broadcast %36 : vector<8x1xf32> to vector<8x8xf32>
    %38 = arith.mulf %35, %37 : vector<8x8xf32>
    %39 = arith.truncf %38 : vector<8x8xf32> to vector<8x8xbf16>
    %c0_15 = arith.constant 0 : index
    %c0_16 = arith.constant 0 : index
    %40 = vector.load %arg4[%c0_15, %c0_16] : memref<32x32xbf16, #tpu.memory_space<vmem>>, vector<8x32xbf16>
    %cst_17 = arith.constant dense<0.000000e+00> : vector<8x32xf32>
    %41 = tpu.matmul %39, %40, %cst_17 {dimension_numbers = #tpu.dot_dimension_numbers<[1], [0], [0], [1], [0, 0, 1, 1], [], []>} : vector<8x8xbf16>, vector<8x32xbf16>, vector<8x32xf32> -> vector<8x32xf32>
    %42 = arith.addf %19, %41 : vector<8x32xf32>
    %43 = vector.extract_strided_slice %9 {offsets = [0, 8], sizes = [8, 8], strides = [1, 1]} : vector<16x32xf32> to vector<8x8xf32>
    %44 = arith.truncf %43 : vector<8x8xf32> to vector<8x8xbf16>
    %45 = vector.extract_strided_slice %13 {offsets = [0, 8], sizes = [8, 8], strides = [1, 1]} : vector<16x32xf32> to vector<8x8xf32>
    %46 = arith.truncf %45 : vector<8x8xf32> to vector<8x8xbf16>
    %47 = vector.extract_strided_slice %17 {offsets = [0, 8], sizes = [8, 8], strides = [1, 1]} : vector<16x32xf32> to vector<8x8xf32>
    %48 = arith.truncf %47 : vector<8x8xf32> to vector<8x8xbf16>
    %cst_18 = arith.constant dense<0.000000e+00> : vector<8x8xf32>
    %49 = tpu.matmul %44, %46, %cst_18 {dimension_numbers = #tpu.dot_dimension_numbers<[1], [1], [0], [0], [0, 0, 1, 0], [], []>} : vector<8x8xbf16>, vector<8x8xbf16>, vector<8x8xf32> -> vector<8x8xf32>
    %cst_19 = arith.constant dense<0xFF800000> : vector<8xf32>
    %50 = vector.multi_reduction <maximumf>, %49, %cst_19 [1] : vector<8x8xf32> to vector<8xf32>
    %51 = vector.shape_cast %50 : vector<8xf32> to vector<8x1xf32>
    %52 = vector.broadcast %51 : vector<8x1xf32> to vector<8x8xf32>
    %53 = arith.subf %49, %52 : vector<8x8xf32>
    %54 = math.exp %53 : vector<8x8xf32>
    %cst_20 = arith.constant dense<0.000000e+00> : vector<8xf32>
    %55 = vector.multi_reduction <add>, %54, %cst_20 [1] : vector<8x8xf32> to vector<8xf32>
    %56 = vector.shape_cast %55 : vector<8xf32> to vector<8x1xf32>
    %57 = arith.truncf %54 : vector<8x8xf32> to vector<8x8xbf16>
    %cst_21 = arith.constant dense<0.000000e+00> : vector<8x8xf32>
    %58 = tpu.matmul %57, %48, %cst_21 {dimension_numbers = #tpu.dot_dimension_numbers<[1], [0], [0], [1], [0, 0, 1, 1], [], []>} : vector<8x8xbf16>, vector<8x8xbf16>, vector<8x8xf32> -> vector<8x8xf32>
    %59 = tpu.reciprocal %56 {approx = true} : vector<8x1xf32> -> vector<8x1xf32>
    %60 = vector.broadcast %59 : vector<8x1xf32> to vector<8x8xf32>
    %61 = arith.mulf %58, %60 : vector<8x8xf32>
    %62 = arith.truncf %61 : vector<8x8xf32> to vector<8x8xbf16>
    %c8 = arith.constant 8 : index
    %c0_22 = arith.constant 0 : index
    %63 = vector.load %arg4[%c8, %c0_22] : memref<32x32xbf16, #tpu.memory_space<vmem>>, vector<8x32xbf16>
    %cst_23 = arith.constant dense<0.000000e+00> : vector<8x32xf32>
    %64 = tpu.matmul %62, %63, %cst_23 {dimension_numbers = #tpu.dot_dimension_numbers<[1], [0], [0], [1], [0, 0, 1, 1], [], []>} : vector<8x8xbf16>, vector<8x32xbf16>, vector<8x32xf32> -> vector<8x32xf32>
    %65 = arith.addf %42, %64 : vector<8x32xf32>
    %66 = vector.extract_strided_slice %9 {offsets = [0, 16], sizes = [8, 8], strides = [1, 1]} : vector<16x32xf32> to vector<8x8xf32>
    %67 = arith.truncf %66 : vector<8x8xf32> to vector<8x8xbf16>
    %68 = vector.extract_strided_slice %13 {offsets = [0, 16], sizes = [8, 8], strides = [1, 1]} : vector<16x32xf32> to vector<8x8xf32>
    %69 = arith.truncf %68 : vector<8x8xf32> to vector<8x8xbf16>
    %70 = vector.extract_strided_slice %17 {offsets = [0, 16], sizes = [8, 8], strides = [1, 1]} : vector<16x32xf32> to vector<8x8xf32>
    %71 = arith.truncf %70 : vector<8x8xf32> to vector<8x8xbf16>
    %cst_24 = arith.constant dense<0.000000e+00> : vector<8x8xf32>
    %72 = tpu.matmul %67, %69, %cst_24 {dimension_numbers = #tpu.dot_dimension_numbers<[1], [1], [0], [0], [0, 0, 1, 0], [], []>} : vector<8x8xbf16>, vector<8x8xbf16>, vector<8x8xf32> -> vector<8x8xf32>
    %cst_25 = arith.constant dense<0xFF800000> : vector<8xf32>
    %73 = vector.multi_reduction <maximumf>, %72, %cst_25 [1] : vector<8x8xf32> to vector<8xf32>
    %74 = vector.shape_cast %73 : vector<8xf32> to vector<8x1xf32>
    %75 = vector.broadcast %74 : vector<8x1xf32> to vector<8x8xf32>
    %76 = arith.subf %72, %75 : vector<8x8xf32>
    %77 = math.exp %76 : vector<8x8xf32>
    %cst_26 = arith.constant dense<0.000000e+00> : vector<8xf32>
    %78 = vector.multi_reduction <add>, %77, %cst_26 [1] : vector<8x8xf32> to vector<8xf32>
    %79 = vector.shape_cast %78 : vector<8xf32> to vector<8x1xf32>
    %80 = arith.truncf %77 : vector<8x8xf32> to vector<8x8xbf16>
    %cst_27 = arith.constant dense<0.000000e+00> : vector<8x8xf32>
    %81 = tpu.matmul %80, %71, %cst_27 {dimension_numbers = #tpu.dot_dimension_numbers<[1], [0], [0], [1], [0, 0, 1, 1], [], []>} : vector<8x8xbf16>, vector<8x8xbf16>, vector<8x8xf32> -> vector<8x8xf32>
    %82 = tpu.reciprocal %79 {approx = true} : vector<8x1xf32> -> vector<8x1xf32>
    %83 = vector.broadcast %82 : vector<8x1xf32> to vector<8x8xf32>
    %84 = arith.mulf %81, %83 : vector<8x8xf32>
    %85 = arith.truncf %84 : vector<8x8xf32> to vector<8x8xbf16>
    %c16 = arith.constant 16 : index
    %c0_28 = arith.constant 0 : index
    %86 = vector.load %arg4[%c16, %c0_28] : memref<32x32xbf16, #tpu.memory_space<vmem>>, vector<8x32xbf16>
    %cst_29 = arith.constant dense<0.000000e+00> : vector<8x32xf32>
    %87 = tpu.matmul %85, %86, %cst_29 {dimension_numbers = #tpu.dot_dimension_numbers<[1], [0], [0], [1], [0, 0, 1, 1], [], []>} : vector<8x8xbf16>, vector<8x32xbf16>, vector<8x32xf32> -> vector<8x32xf32>
    %88 = arith.addf %65, %87 : vector<8x32xf32>
    %89 = vector.extract_strided_slice %9 {offsets = [0, 24], sizes = [8, 8], strides = [1, 1]} : vector<16x32xf32> to vector<8x8xf32>
    %90 = arith.truncf %89 : vector<8x8xf32> to vector<8x8xbf16>
    %91 = vector.extract_strided_slice %13 {offsets = [0, 24], sizes = [8, 8], strides = [1, 1]} : vector<16x32xf32> to vector<8x8xf32>
    %92 = arith.truncf %91 : vector<8x8xf32> to vector<8x8xbf16>
    %93 = vector.extract_strided_slice %17 {offsets = [0, 24], sizes = [8, 8], strides = [1, 1]} : vector<16x32xf32> to vector<8x8xf32>
    %94 = arith.truncf %93 : vector<8x8xf32> to vector<8x8xbf16>
    %cst_30 = arith.constant dense<0.000000e+00> : vector<8x8xf32>
    %95 = tpu.matmul %90, %92, %cst_30 {dimension_numbers = #tpu.dot_dimension_numbers<[1], [1], [0], [0], [0, 0, 1, 0], [], []>} : vector<8x8xbf16>, vector<8x8xbf16>, vector<8x8xf32> -> vector<8x8xf32>
    %cst_31 = arith.constant dense<0xFF800000> : vector<8xf32>
    %96 = vector.multi_reduction <maximumf>, %95, %cst_31 [1] : vector<8x8xf32> to vector<8xf32>
    %97 = vector.shape_cast %96 : vector<8xf32> to vector<8x1xf32>
    %98 = vector.broadcast %97 : vector<8x1xf32> to vector<8x8xf32>
    %99 = arith.subf %95, %98 : vector<8x8xf32>
    %100 = math.exp %99 : vector<8x8xf32>
    %cst_32 = arith.constant dense<0.000000e+00> : vector<8xf32>
    %101 = vector.multi_reduction <add>, %100, %cst_32 [1] : vector<8x8xf32> to vector<8xf32>
    %102 = vector.shape_cast %101 : vector<8xf32> to vector<8x1xf32>
    %103 = arith.truncf %100 : vector<8x8xf32> to vector<8x8xbf16>
    %cst_33 = arith.constant dense<0.000000e+00> : vector<8x8xf32>
    %104 = tpu.matmul %103, %94, %cst_33 {dimension_numbers = #tpu.dot_dimension_numbers<[1], [0], [0], [1], [0, 0, 1, 1], [], []>} : vector<8x8xbf16>, vector<8x8xbf16>, vector<8x8xf32> -> vector<8x8xf32>
    %105 = tpu.reciprocal %102 {approx = true} : vector<8x1xf32> -> vector<8x1xf32>
    %106 = vector.broadcast %105 : vector<8x1xf32> to vector<8x8xf32>
    %107 = arith.mulf %104, %106 : vector<8x8xf32>
    %108 = arith.truncf %107 : vector<8x8xf32> to vector<8x8xbf16>
    %c24 = arith.constant 24 : index
    %c0_34 = arith.constant 0 : index
    %109 = vector.load %arg4[%c24, %c0_34] : memref<32x32xbf16, #tpu.memory_space<vmem>>, vector<8x32xbf16>
    %cst_35 = arith.constant dense<0.000000e+00> : vector<8x32xf32>
    %110 = tpu.matmul %108, %109, %cst_35 {dimension_numbers = #tpu.dot_dimension_numbers<[1], [0], [0], [1], [0, 0, 1, 1], [], []>} : vector<8x8xbf16>, vector<8x32xbf16>, vector<8x32xf32> -> vector<8x32xf32>
    %111 = arith.addf %88, %110 : vector<8x32xf32>
    %cst_36 = arith.constant 0.000000e+00 : f32
    %112 = vector.broadcast %cst_36 : f32 to vector<8x32xf32>
    %113 = vector.extract_strided_slice %9 {offsets = [8, 0], sizes = [8, 8], strides = [1, 1]} : vector<16x32xf32> to vector<8x8xf32>
    %114 = arith.truncf %113 : vector<8x8xf32> to vector<8x8xbf16>
    %115 = vector.extract_strided_slice %13 {offsets = [8, 0], sizes = [8, 8], strides = [1, 1]} : vector<16x32xf32> to vector<8x8xf32>
    %116 = arith.truncf %115 : vector<8x8xf32> to vector<8x8xbf16>
    %117 = vector.extract_strided_slice %17 {offsets = [8, 0], sizes = [8, 8], strides = [1, 1]} : vector<16x32xf32> to vector<8x8xf32>
    %118 = arith.truncf %117 : vector<8x8xf32> to vector<8x8xbf16>
    %cst_37 = arith.constant dense<0.000000e+00> : vector<8x8xf32>
    %119 = tpu.matmul %114, %116, %cst_37 {dimension_numbers = #tpu.dot_dimension_numbers<[1], [1], [0], [0], [0, 0, 1, 0], [], []>} : vector<8x8xbf16>, vector<8x8xbf16>, vector<8x8xf32> -> vector<8x8xf32>
    %cst_38 = arith.constant dense<0xFF800000> : vector<8xf32>
    %120 = vector.multi_reduction <maximumf>, %119, %cst_38 [1] : vector<8x8xf32> to vector<8xf32>
    %121 = vector.shape_cast %120 : vector<8xf32> to vector<8x1xf32>
    %122 = vector.broadcast %121 : vector<8x1xf32> to vector<8x8xf32>
    %123 = arith.subf %119, %122 : vector<8x8xf32>
    %124 = math.exp %123 : vector<8x8xf32>
    %cst_39 = arith.constant dense<0.000000e+00> : vector<8xf32>
    %125 = vector.multi_reduction <add>, %124, %cst_39 [1] : vector<8x8xf32> to vector<8xf32>
    %126 = vector.shape_cast %125 : vector<8xf32> to vector<8x1xf32>
    %127 = arith.truncf %124 : vector<8x8xf32> to vector<8x8xbf16>
    %cst_40 = arith.constant dense<0.000000e+00> : vector<8x8xf32>
    %128 = tpu.matmul %127, %118, %cst_40 {dimension_numbers = #tpu.dot_dimension_numbers<[1], [0], [0], [1], [0, 0, 1, 1], [], []>} : vector<8x8xbf16>, vector<8x8xbf16>, vector<8x8xf32> -> vector<8x8xf32>
    %129 = tpu.reciprocal %126 {approx = true} : vector<8x1xf32> -> vector<8x1xf32>
    %130 = vector.broadcast %129 : vector<8x1xf32> to vector<8x8xf32>
    %131 = arith.mulf %128, %130 : vector<8x8xf32>
    %132 = arith.truncf %131 : vector<8x8xf32> to vector<8x8xbf16>
    %c0_41 = arith.constant 0 : index
    %c0_42 = arith.constant 0 : index
    %133 = vector.load %arg4[%c0_41, %c0_42] : memref<32x32xbf16, #tpu.memory_space<vmem>>, vector<8x32xbf16>
    %cst_43 = arith.constant dense<0.000000e+00> : vector<8x32xf32>
    %134 = tpu.matmul %132, %133, %cst_43 {dimension_numbers = #tpu.dot_dimension_numbers<[1], [0], [0], [1], [0, 0, 1, 1], [], []>} : vector<8x8xbf16>, vector<8x32xbf16>, vector<8x32xf32> -> vector<8x32xf32>
    %135 = arith.addf %112, %134 : vector<8x32xf32>
    %136 = vector.extract_strided_slice %9 {offsets = [8, 8], sizes = [8, 8], strides = [1, 1]} : vector<16x32xf32> to vector<8x8xf32>
    %137 = arith.truncf %136 : vector<8x8xf32> to vector<8x8xbf16>
    %138 = vector.extract_strided_slice %13 {offsets = [8, 8], sizes = [8, 8], strides = [1, 1]} : vector<16x32xf32> to vector<8x8xf32>
    %139 = arith.truncf %138 : vector<8x8xf32> to vector<8x8xbf16>
    %140 = vector.extract_strided_slice %17 {offsets = [8, 8], sizes = [8, 8], strides = [1, 1]} : vector<16x32xf32> to vector<8x8xf32>
    %141 = arith.truncf %140 : vector<8x8xf32> to vector<8x8xbf16>
    %cst_44 = arith.constant dense<0.000000e+00> : vector<8x8xf32>
    %142 = tpu.matmul %137, %139, %cst_44 {dimension_numbers = #tpu.dot_dimension_numbers<[1], [1], [0], [0], [0, 0, 1, 0], [], []>} : vector<8x8xbf16>, vector<8x8xbf16>, vector<8x8xf32> -> vector<8x8xf32>
    %cst_45 = arith.constant dense<0xFF800000> : vector<8xf32>
    %143 = vector.multi_reduction <maximumf>, %142, %cst_45 [1] : vector<8x8xf32> to vector<8xf32>
    %144 = vector.shape_cast %143 : vector<8xf32> to vector<8x1xf32>
    %145 = vector.broadcast %144 : vector<8x1xf32> to vector<8x8xf32>
    %146 = arith.subf %142, %145 : vector<8x8xf32>
    %147 = math.exp %146 : vector<8x8xf32>
    %cst_46 = arith.constant dense<0.000000e+00> : vector<8xf32>
    %148 = vector.multi_reduction <add>, %147, %cst_46 [1] : vector<8x8xf32> to vector<8xf32>
    %149 = vector.shape_cast %148 : vector<8xf32> to vector<8x1xf32>
    %150 = arith.truncf %147 : vector<8x8xf32> to vector<8x8xbf16>
    %cst_47 = arith.constant dense<0.000000e+00> : vector<8x8xf32>
    %151 = tpu.matmul %150, %141, %cst_47 {dimension_numbers = #tpu.dot_dimension_numbers<[1], [0], [0], [1], [0, 0, 1, 1], [], []>} : vector<8x8xbf16>, vector<8x8xbf16>, vector<8x8xf32> -> vector<8x8xf32>
    %152 = tpu.reciprocal %149 {approx = true} : vector<8x1xf32> -> vector<8x1xf32>
    %153 = vector.broadcast %152 : vector<8x1xf32> to vector<8x8xf32>
    %154 = arith.mulf %151, %153 : vector<8x8xf32>
    %155 = arith.truncf %154 : vector<8x8xf32> to vector<8x8xbf16>
    %c8_48 = arith.constant 8 : index
    %c0_49 = arith.constant 0 : index
    %156 = vector.load %arg4[%c8_48, %c0_49] : memref<32x32xbf16, #tpu.memory_space<vmem>>, vector<8x32xbf16>
    %cst_50 = arith.constant dense<0.000000e+00> : vector<8x32xf32>
    %157 = tpu.matmul %155, %156, %cst_50 {dimension_numbers = #tpu.dot_dimension_numbers<[1], [0], [0], [1], [0, 0, 1, 1], [], []>} : vector<8x8xbf16>, vector<8x32xbf16>, vector<8x32xf32> -> vector<8x32xf32>
    %158 = arith.addf %135, %157 : vector<8x32xf32>
    %159 = vector.extract_strided_slice %9 {offsets = [8, 16], sizes = [8, 8], strides = [1, 1]} : vector<16x32xf32> to vector<8x8xf32>
    %160 = arith.truncf %159 : vector<8x8xf32> to vector<8x8xbf16>
    %161 = vector.extract_strided_slice %13 {offsets = [8, 16], sizes = [8, 8], strides = [1, 1]} : vector<16x32xf32> to vector<8x8xf32>
    %162 = arith.truncf %161 : vector<8x8xf32> to vector<8x8xbf16>
    %163 = vector.extract_strided_slice %17 {offsets = [8, 16], sizes = [8, 8], strides = [1, 1]} : vector<16x32xf32> to vector<8x8xf32>
    %164 = arith.truncf %163 : vector<8x8xf32> to vector<8x8xbf16>
    %cst_51 = arith.constant dense<0.000000e+00> : vector<8x8xf32>
    %165 = tpu.matmul %160, %162, %cst_51 {dimension_numbers = #tpu.dot_dimension_numbers<[1], [1], [0], [0], [0, 0, 1, 0], [], []>} : vector<8x8xbf16>, vector<8x8xbf16>, vector<8x8xf32> -> vector<8x8xf32>
    %cst_52 = arith.constant dense<0xFF800000> : vector<8xf32>
    %166 = vector.multi_reduction <maximumf>, %165, %cst_52 [1] : vector<8x8xf32> to vector<8xf32>
    %167 = vector.shape_cast %166 : vector<8xf32> to vector<8x1xf32>
    %168 = vector.broadcast %167 : vector<8x1xf32> to vector<8x8xf32>
    %169 = arith.subf %165, %168 : vector<8x8xf32>
    %170 = math.exp %169 : vector<8x8xf32>
    %cst_53 = arith.constant dense<0.000000e+00> : vector<8xf32>
    %171 = vector.multi_reduction <add>, %170, %cst_53 [1] : vector<8x8xf32> to vector<8xf32>
    %172 = vector.shape_cast %171 : vector<8xf32> to vector<8x1xf32>
    %173 = arith.truncf %170 : vector<8x8xf32> to vector<8x8xbf16>
    %cst_54 = arith.constant dense<0.000000e+00> : vector<8x8xf32>
    %174 = tpu.matmul %173, %164, %cst_54 {dimension_numbers = #tpu.dot_dimension_numbers<[1], [0], [0], [1], [0, 0, 1, 1], [], []>} : vector<8x8xbf16>, vector<8x8xbf16>, vector<8x8xf32> -> vector<8x8xf32>
    %175 = tpu.reciprocal %172 {approx = true} : vector<8x1xf32> -> vector<8x1xf32>
    %176 = vector.broadcast %175 : vector<8x1xf32> to vector<8x8xf32>
    %177 = arith.mulf %174, %176 : vector<8x8xf32>
    %178 = arith.truncf %177 : vector<8x8xf32> to vector<8x8xbf16>
    %c16_55 = arith.constant 16 : index
    %c0_56 = arith.constant 0 : index
    %179 = vector.load %arg4[%c16_55, %c0_56] : memref<32x32xbf16, #tpu.memory_space<vmem>>, vector<8x32xbf16>
    %cst_57 = arith.constant dense<0.000000e+00> : vector<8x32xf32>
    %180 = tpu.matmul %178, %179, %cst_57 {dimension_numbers = #tpu.dot_dimension_numbers<[1], [0], [0], [1], [0, 0, 1, 1], [], []>} : vector<8x8xbf16>, vector<8x32xbf16>, vector<8x32xf32> -> vector<8x32xf32>
    %181 = arith.addf %158, %180 : vector<8x32xf32>
    %182 = vector.extract_strided_slice %9 {offsets = [8, 24], sizes = [8, 8], strides = [1, 1]} : vector<16x32xf32> to vector<8x8xf32>
    %183 = arith.truncf %182 : vector<8x8xf32> to vector<8x8xbf16>
    %184 = vector.extract_strided_slice %13 {offsets = [8, 24], sizes = [8, 8], strides = [1, 1]} : vector<16x32xf32> to vector<8x8xf32>
    %185 = arith.truncf %184 : vector<8x8xf32> to vector<8x8xbf16>
    %186 = vector.extract_strided_slice %17 {offsets = [8, 24], sizes = [8, 8], strides = [1, 1]} : vector<16x32xf32> to vector<8x8xf32>
    %187 = arith.truncf %186 : vector<8x8xf32> to vector<8x8xbf16>
    %cst_58 = arith.constant dense<0.000000e+00> : vector<8x8xf32>
    %188 = tpu.matmul %183, %185, %cst_58 {dimension_numbers = #tpu.dot_dimension_numbers<[1], [1], [0], [0], [0, 0, 1, 0], [], []>} : vector<8x8xbf16>, vector<8x8xbf16>, vector<8x8xf32> -> vector<8x8xf32>
    %cst_59 = arith.constant dense<0xFF800000> : vector<8xf32>
    %189 = vector.multi_reduction <maximumf>, %188, %cst_59 [1] : vector<8x8xf32> to vector<8xf32>
    %190 = vector.shape_cast %189 : vector<8xf32> to vector<8x1xf32>
    %191 = vector.broadcast %190 : vector<8x1xf32> to vector<8x8xf32>
    %192 = arith.subf %188, %191 : vector<8x8xf32>
    %193 = math.exp %192 : vector<8x8xf32>
    %cst_60 = arith.constant dense<0.000000e+00> : vector<8xf32>
    %194 = vector.multi_reduction <add>, %193, %cst_60 [1] : vector<8x8xf32> to vector<8xf32>
    %195 = vector.shape_cast %194 : vector<8xf32> to vector<8x1xf32>
    %196 = arith.truncf %193 : vector<8x8xf32> to vector<8x8xbf16>
    %cst_61 = arith.constant dense<0.000000e+00> : vector<8x8xf32>
    %197 = tpu.matmul %196, %187, %cst_61 {dimension_numbers = #tpu.dot_dimension_numbers<[1], [0], [0], [1], [0, 0, 1, 1], [], []>} : vector<8x8xbf16>, vector<8x8xbf16>, vector<8x8xf32> -> vector<8x8xf32>
    %198 = tpu.reciprocal %195 {approx = true} : vector<8x1xf32> -> vector<8x1xf32>
    %199 = vector.broadcast %198 : vector<8x1xf32> to vector<8x8xf32>
    %200 = arith.mulf %197, %199 : vector<8x8xf32>
    %201 = arith.truncf %200 : vector<8x8xf32> to vector<8x8xbf16>
    %c24_62 = arith.constant 24 : index
    %c0_63 = arith.constant 0 : index
    %202 = vector.load %arg4[%c24_62, %c0_63] : memref<32x32xbf16, #tpu.memory_space<vmem>>, vector<8x32xbf16>
    %cst_64 = arith.constant dense<0.000000e+00> : vector<8x32xf32>
    %203 = tpu.matmul %201, %202, %cst_64 {dimension_numbers = #tpu.dot_dimension_numbers<[1], [0], [0], [1], [0, 0, 1, 1], [], []>} : vector<8x8xbf16>, vector<8x32xbf16>, vector<8x32xf32> -> vector<8x32xf32>
    %204 = arith.addf %181, %203 : vector<8x32xf32>
    %205 = tpu.concatenate %111, %204 in 0 : vector<8x32xf32>, vector<8x32xf32> -> vector<16x32xf32>
    %206 = vector.broadcast %18 : vector<1x32xf32> to vector<16x32xf32>
    %207 = arith.addf %205, %206 : vector<16x32xf32>
    %208 = arith.addf %0, %207 : vector<16x32xf32>
    %c9 = arith.constant 9 : index
    %c0_65 = arith.constant 0 : index
    %209 = vector.load %arg10[%c9, %c0_65] : memref<15x32xf32, #tpu.memory_space<vmem>>, vector<1x32xf32>
    %c10 = arith.constant 10 : index
    %c0_66 = arith.constant 0 : index
    %210 = vector.load %arg10[%c10, %c0_66] : memref<15x32xf32, #tpu.memory_space<vmem>>, vector<1x32xf32>
    %cst_67 = arith.constant dense<0.000000e+00> : vector<16xf32>
    %211 = vector.multi_reduction <add>, %208, %cst_67 [1] : vector<16x32xf32> to vector<16xf32>
    %212 = vector.shape_cast %211 : vector<16xf32> to vector<16x1xf32>
    %cst_68 = arith.constant 3.200000e+01 : f32
    %213 = vector.broadcast %cst_68 : f32 to vector<16x1xf32>
    %214 = arith.divf %212, %213 : vector<16x1xf32>
    %215 = vector.broadcast %214 : vector<16x1xf32> to vector<16x32xf32>
    %216 = arith.subf %208, %215 : vector<16x32xf32>
    %217 = arith.mulf %216, %216 : vector<16x32xf32>
    %cst_69 = arith.constant dense<0.000000e+00> : vector<16xf32>
    %218 = vector.multi_reduction <add>, %217, %cst_69 [1] : vector<16x32xf32> to vector<16xf32>
    %219 = vector.shape_cast %218 : vector<16xf32> to vector<16x1xf32>
    %cst_70 = arith.constant 3.200000e+01 : f32
    %220 = vector.broadcast %cst_70 : f32 to vector<16x1xf32>
    %221 = arith.divf %219, %220 : vector<16x1xf32>
    %cst_71 = arith.constant 9.99999974E-6 : f32
    %222 = vector.broadcast %cst_71 : f32 to vector<16x1xf32>
    %223 = arith.addf %221, %222 : vector<16x1xf32>
    %224 = math.rsqrt %223 : vector<16x1xf32>
    %225 = vector.broadcast %224 : vector<16x1xf32> to vector<16x32xf32>
    %226 = arith.mulf %216, %225 : vector<16x32xf32>
    %227 = vector.broadcast %209 : vector<1x32xf32> to vector<16x32xf32>
    %228 = arith.mulf %226, %227 : vector<16x32xf32>
    %229 = vector.broadcast %210 : vector<1x32xf32> to vector<16x32xf32>
    %230 = arith.addf %228, %229 : vector<16x32xf32>
    %231 = arith.truncf %230 : vector<16x32xf32> to vector<16x32xbf16>
    %c0_72 = arith.constant 0 : index
    %c0_73 = arith.constant 0 : index
    %232 = vector.load %arg5[%c0_72, %c0_73] : memref<32x32xbf16, #tpu.memory_space<vmem>>, vector<32x32xbf16>
    %cst_74 = arith.constant dense<0.000000e+00> : vector<16x32xf32>
    %233 = tpu.matmul %231, %232, %cst_74 {dimension_numbers = #tpu.dot_dimension_numbers<[1], [0], [0], [1], [0, 0, 1, 1], [], []>} : vector<16x32xbf16>, vector<32x32xbf16>, vector<16x32xf32> -> vector<16x32xf32>
    %c4 = arith.constant 4 : index
    %c0_75 = arith.constant 0 : index
    %234 = vector.load %arg10[%c4, %c0_75] : memref<15x32xf32, #tpu.memory_space<vmem>>, vector<1x32xf32>
    %235 = vector.broadcast %234 : vector<1x32xf32> to vector<16x32xf32>
    %236 = arith.addf %233, %235 : vector<16x32xf32>
    %c0_76 = arith.constant 0 : index
    %c0_77 = arith.constant 0 : index
    %237 = vector.load %arg6[%c0_76, %c0_77] : memref<32x64xbf16, #tpu.memory_space<vmem>>, vector<32x64xbf16>
    %cst_78 = arith.constant dense<0.000000e+00> : vector<20x64xf32>
    %238 = tpu.matmul %2, %237, %cst_78 {dimension_numbers = #tpu.dot_dimension_numbers<[1], [0], [0], [1], [0, 0, 1, 1], [], []>} : vector<20x32xbf16>, vector<32x64xbf16>, vector<20x64xf32> -> vector<20x64xf32>
    %239 = vector.extract_strided_slice %238 {offsets = [0, 0], sizes = [20, 32], strides = [1, 1]} : vector<20x64xf32> to vector<20x32xf32>
    %c5 = arith.constant 5 : index
    %c0_79 = arith.constant 0 : index
    %240 = vector.load %arg10[%c5, %c0_79] : memref<15x32xf32, #tpu.memory_space<vmem>>, vector<1x32xf32>
    %241 = vector.broadcast %240 : vector<1x32xf32> to vector<20x32xf32>
    %242 = arith.addf %239, %241 : vector<20x32xf32>
    %243 = vector.extract_strided_slice %238 {offsets = [0, 32], sizes = [20, 32], strides = [1, 1]} : vector<20x64xf32> to vector<20x32xf32>
    %c6 = arith.constant 6 : index
    %c0_80 = arith.constant 0 : index
    %244 = vector.load %arg10[%c6, %c0_80] : memref<15x32xf32, #tpu.memory_space<vmem>>, vector<1x32xf32>
    %245 = vector.broadcast %244 : vector<1x32xf32> to vector<20x32xf32>
    %246 = arith.addf %243, %245 : vector<20x32xf32>
    %c7 = arith.constant 7 : index
    %c0_81 = arith.constant 0 : index
    %247 = vector.load %arg10[%c7, %c0_81] : memref<15x32xf32, #tpu.memory_space<vmem>>, vector<1x32xf32>
    %cst_82 = arith.constant 0.000000e+00 : f32
    %248 = vector.broadcast %cst_82 : f32 to vector<8x32xf32>
    %249 = vector.extract_strided_slice %236 {offsets = [0, 0], sizes = [8, 8], strides = [1, 1]} : vector<16x32xf32> to vector<8x8xf32>
    %250 = arith.truncf %249 : vector<8x8xf32> to vector<8x8xbf16>
    %251 = vector.extract_strided_slice %242 {offsets = [0, 0], sizes = [10, 8], strides = [1, 1]} : vector<20x32xf32> to vector<10x8xf32>
    %252 = arith.truncf %251 : vector<10x8xf32> to vector<10x8xbf16>
    %253 = vector.extract_strided_slice %246 {offsets = [0, 0], sizes = [10, 8], strides = [1, 1]} : vector<20x32xf32> to vector<10x8xf32>
    %254 = arith.truncf %253 : vector<10x8xf32> to vector<10x8xbf16>
    %cst_83 = arith.constant dense<0.000000e+00> : vector<8x10xf32>
    %255 = tpu.matmul %250, %252, %cst_83 {dimension_numbers = #tpu.dot_dimension_numbers<[1], [1], [0], [0], [0, 0, 1, 0], [], []>} : vector<8x8xbf16>, vector<10x8xbf16>, vector<8x10xf32> -> vector<8x10xf32>
    %cst_84 = arith.constant dense<0xFF800000> : vector<8xf32>
    %256 = vector.multi_reduction <maximumf>, %255, %cst_84 [1] : vector<8x10xf32> to vector<8xf32>
    %257 = vector.shape_cast %256 : vector<8xf32> to vector<8x1xf32>
    %258 = vector.broadcast %257 : vector<8x1xf32> to vector<8x10xf32>
    %259 = arith.subf %255, %258 : vector<8x10xf32>
    %260 = math.exp %259 : vector<8x10xf32>
    %cst_85 = arith.constant dense<0.000000e+00> : vector<8xf32>
    %261 = vector.multi_reduction <add>, %260, %cst_85 [1] : vector<8x10xf32> to vector<8xf32>
    %262 = vector.shape_cast %261 : vector<8xf32> to vector<8x1xf32>
    %263 = arith.truncf %260 : vector<8x10xf32> to vector<8x10xbf16>
    %cst_86 = arith.constant dense<0.000000e+00> : vector<8x8xf32>
    %264 = tpu.matmul %263, %254, %cst_86 {dimension_numbers = #tpu.dot_dimension_numbers<[1], [0], [0], [1], [0, 0, 1, 1], [], []>} : vector<8x10xbf16>, vector<10x8xbf16>, vector<8x8xf32> -> vector<8x8xf32>
    %265 = tpu.reciprocal %262 {approx = true} : vector<8x1xf32> -> vector<8x1xf32>
    %266 = vector.broadcast %265 : vector<8x1xf32> to vector<8x8xf32>
    %267 = arith.mulf %264, %266 : vector<8x8xf32>
    %268 = arith.truncf %267 : vector<8x8xf32> to vector<8x8xbf16>
    %c0_87 = arith.constant 0 : index
    %c0_88 = arith.constant 0 : index
    %269 = vector.load %arg7[%c0_87, %c0_88] : memref<32x32xbf16, #tpu.memory_space<vmem>>, vector<8x32xbf16>
    %cst_89 = arith.constant dense<0.000000e+00> : vector<8x32xf32>
    %270 = tpu.matmul %268, %269, %cst_89 {dimension_numbers = #tpu.dot_dimension_numbers<[1], [0], [0], [1], [0, 0, 1, 1], [], []>} : vector<8x8xbf16>, vector<8x32xbf16>, vector<8x32xf32> -> vector<8x32xf32>
    %271 = arith.addf %248, %270 : vector<8x32xf32>
    %272 = vector.extract_strided_slice %236 {offsets = [0, 8], sizes = [8, 8], strides = [1, 1]} : vector<16x32xf32> to vector<8x8xf32>
    %273 = arith.truncf %272 : vector<8x8xf32> to vector<8x8xbf16>
    %274 = vector.extract_strided_slice %242 {offsets = [0, 8], sizes = [10, 8], strides = [1, 1]} : vector<20x32xf32> to vector<10x8xf32>
    %275 = arith.truncf %274 : vector<10x8xf32> to vector<10x8xbf16>
    %276 = vector.extract_strided_slice %246 {offsets = [0, 8], sizes = [10, 8], strides = [1, 1]} : vector<20x32xf32> to vector<10x8xf32>
    %277 = arith.truncf %276 : vector<10x8xf32> to vector<10x8xbf16>
    %cst_90 = arith.constant dense<0.000000e+00> : vector<8x10xf32>
    %278 = tpu.matmul %273, %275, %cst_90 {dimension_numbers = #tpu.dot_dimension_numbers<[1], [1], [0], [0], [0, 0, 1, 0], [], []>} : vector<8x8xbf16>, vector<10x8xbf16>, vector<8x10xf32> -> vector<8x10xf32>
    %cst_91 = arith.constant dense<0xFF800000> : vector<8xf32>
    %279 = vector.multi_reduction <maximumf>, %278, %cst_91 [1] : vector<8x10xf32> to vector<8xf32>
    %280 = vector.shape_cast %279 : vector<8xf32> to vector<8x1xf32>
    %281 = vector.broadcast %280 : vector<8x1xf32> to vector<8x10xf32>
    %282 = arith.subf %278, %281 : vector<8x10xf32>
    %283 = math.exp %282 : vector<8x10xf32>
    %cst_92 = arith.constant dense<0.000000e+00> : vector<8xf32>
    %284 = vector.multi_reduction <add>, %283, %cst_92 [1] : vector<8x10xf32> to vector<8xf32>
    %285 = vector.shape_cast %284 : vector<8xf32> to vector<8x1xf32>
    %286 = arith.truncf %283 : vector<8x10xf32> to vector<8x10xbf16>
    %cst_93 = arith.constant dense<0.000000e+00> : vector<8x8xf32>
    %287 = tpu.matmul %286, %277, %cst_93 {dimension_numbers = #tpu.dot_dimension_numbers<[1], [0], [0], [1], [0, 0, 1, 1], [], []>} : vector<8x10xbf16>, vector<10x8xbf16>, vector<8x8xf32> -> vector<8x8xf32>
    %288 = tpu.reciprocal %285 {approx = true} : vector<8x1xf32> -> vector<8x1xf32>
    %289 = vector.broadcast %288 : vector<8x1xf32> to vector<8x8xf32>
    %290 = arith.mulf %287, %289 : vector<8x8xf32>
    %291 = arith.truncf %290 : vector<8x8xf32> to vector<8x8xbf16>
    %c8_94 = arith.constant 8 : index
    %c0_95 = arith.constant 0 : index
    %292 = vector.load %arg7[%c8_94, %c0_95] : memref<32x32xbf16, #tpu.memory_space<vmem>>, vector<8x32xbf16>
    %cst_96 = arith.constant dense<0.000000e+00> : vector<8x32xf32>
    %293 = tpu.matmul %291, %292, %cst_96 {dimension_numbers = #tpu.dot_dimension_numbers<[1], [0], [0], [1], [0, 0, 1, 1], [], []>} : vector<8x8xbf16>, vector<8x32xbf16>, vector<8x32xf32> -> vector<8x32xf32>
    %294 = arith.addf %271, %293 : vector<8x32xf32>
    %295 = vector.extract_strided_slice %236 {offsets = [0, 16], sizes = [8, 8], strides = [1, 1]} : vector<16x32xf32> to vector<8x8xf32>
    %296 = arith.truncf %295 : vector<8x8xf32> to vector<8x8xbf16>
    %297 = vector.extract_strided_slice %242 {offsets = [0, 16], sizes = [10, 8], strides = [1, 1]} : vector<20x32xf32> to vector<10x8xf32>
    %298 = arith.truncf %297 : vector<10x8xf32> to vector<10x8xbf16>
    %299 = vector.extract_strided_slice %246 {offsets = [0, 16], sizes = [10, 8], strides = [1, 1]} : vector<20x32xf32> to vector<10x8xf32>
    %300 = arith.truncf %299 : vector<10x8xf32> to vector<10x8xbf16>
    %cst_97 = arith.constant dense<0.000000e+00> : vector<8x10xf32>
    %301 = tpu.matmul %296, %298, %cst_97 {dimension_numbers = #tpu.dot_dimension_numbers<[1], [1], [0], [0], [0, 0, 1, 0], [], []>} : vector<8x8xbf16>, vector<10x8xbf16>, vector<8x10xf32> -> vector<8x10xf32>
    %cst_98 = arith.constant dense<0xFF800000> : vector<8xf32>
    %302 = vector.multi_reduction <maximumf>, %301, %cst_98 [1] : vector<8x10xf32> to vector<8xf32>
    %303 = vector.shape_cast %302 : vector<8xf32> to vector<8x1xf32>
    %304 = vector.broadcast %303 : vector<8x1xf32> to vector<8x10xf32>
    %305 = arith.subf %301, %304 : vector<8x10xf32>
    %306 = math.exp %305 : vector<8x10xf32>
    %cst_99 = arith.constant dense<0.000000e+00> : vector<8xf32>
    %307 = vector.multi_reduction <add>, %306, %cst_99 [1] : vector<8x10xf32> to vector<8xf32>
    %308 = vector.shape_cast %307 : vector<8xf32> to vector<8x1xf32>
    %309 = arith.truncf %306 : vector<8x10xf32> to vector<8x10xbf16>
    %cst_100 = arith.constant dense<0.000000e+00> : vector<8x8xf32>
    %310 = tpu.matmul %309, %300, %cst_100 {dimension_numbers = #tpu.dot_dimension_numbers<[1], [0], [0], [1], [0, 0, 1, 1], [], []>} : vector<8x10xbf16>, vector<10x8xbf16>, vector<8x8xf32> -> vector<8x8xf32>
    %311 = tpu.reciprocal %308 {approx = true} : vector<8x1xf32> -> vector<8x1xf32>
    %312 = vector.broadcast %311 : vector<8x1xf32> to vector<8x8xf32>
    %313 = arith.mulf %310, %312 : vector<8x8xf32>
    %314 = arith.truncf %313 : vector<8x8xf32> to vector<8x8xbf16>
    %c16_101 = arith.constant 16 : index
    %c0_102 = arith.constant 0 : index
    %315 = vector.load %arg7[%c16_101, %c0_102] : memref<32x32xbf16, #tpu.memory_space<vmem>>, vector<8x32xbf16>
    %cst_103 = arith.constant dense<0.000000e+00> : vector<8x32xf32>
    %316 = tpu.matmul %314, %315, %cst_103 {dimension_numbers = #tpu.dot_dimension_numbers<[1], [0], [0], [1], [0, 0, 1, 1], [], []>} : vector<8x8xbf16>, vector<8x32xbf16>, vector<8x32xf32> -> vector<8x32xf32>
    %317 = arith.addf %294, %316 : vector<8x32xf32>
    %318 = vector.extract_strided_slice %236 {offsets = [0, 24], sizes = [8, 8], strides = [1, 1]} : vector<16x32xf32> to vector<8x8xf32>
    %319 = arith.truncf %318 : vector<8x8xf32> to vector<8x8xbf16>
    %320 = vector.extract_strided_slice %242 {offsets = [0, 24], sizes = [10, 8], strides = [1, 1]} : vector<20x32xf32> to vector<10x8xf32>
    %321 = arith.truncf %320 : vector<10x8xf32> to vector<10x8xbf16>
    %322 = vector.extract_strided_slice %246 {offsets = [0, 24], sizes = [10, 8], strides = [1, 1]} : vector<20x32xf32> to vector<10x8xf32>
    %323 = arith.truncf %322 : vector<10x8xf32> to vector<10x8xbf16>
    %cst_104 = arith.constant dense<0.000000e+00> : vector<8x10xf32>
    %324 = tpu.matmul %319, %321, %cst_104 {dimension_numbers = #tpu.dot_dimension_numbers<[1], [1], [0], [0], [0, 0, 1, 0], [], []>} : vector<8x8xbf16>, vector<10x8xbf16>, vector<8x10xf32> -> vector<8x10xf32>
    %cst_105 = arith.constant dense<0xFF800000> : vector<8xf32>
    %325 = vector.multi_reduction <maximumf>, %324, %cst_105 [1] : vector<8x10xf32> to vector<8xf32>
    %326 = vector.shape_cast %325 : vector<8xf32> to vector<8x1xf32>
    %327 = vector.broadcast %326 : vector<8x1xf32> to vector<8x10xf32>
    %328 = arith.subf %324, %327 : vector<8x10xf32>
    %329 = math.exp %328 : vector<8x10xf32>
    %cst_106 = arith.constant dense<0.000000e+00> : vector<8xf32>
    %330 = vector.multi_reduction <add>, %329, %cst_106 [1] : vector<8x10xf32> to vector<8xf32>
    %331 = vector.shape_cast %330 : vector<8xf32> to vector<8x1xf32>
    %332 = arith.truncf %329 : vector<8x10xf32> to vector<8x10xbf16>
    %cst_107 = arith.constant dense<0.000000e+00> : vector<8x8xf32>
    %333 = tpu.matmul %332, %323, %cst_107 {dimension_numbers = #tpu.dot_dimension_numbers<[1], [0], [0], [1], [0, 0, 1, 1], [], []>} : vector<8x10xbf16>, vector<10x8xbf16>, vector<8x8xf32> -> vector<8x8xf32>
    %334 = tpu.reciprocal %331 {approx = true} : vector<8x1xf32> -> vector<8x1xf32>
    %335 = vector.broadcast %334 : vector<8x1xf32> to vector<8x8xf32>
    %336 = arith.mulf %333, %335 : vector<8x8xf32>
    %337 = arith.truncf %336 : vector<8x8xf32> to vector<8x8xbf16>
    %c24_108 = arith.constant 24 : index
    %c0_109 = arith.constant 0 : index
    %338 = vector.load %arg7[%c24_108, %c0_109] : memref<32x32xbf16, #tpu.memory_space<vmem>>, vector<8x32xbf16>
    %cst_110 = arith.constant dense<0.000000e+00> : vector<8x32xf32>
    %339 = tpu.matmul %337, %338, %cst_110 {dimension_numbers = #tpu.dot_dimension_numbers<[1], [0], [0], [1], [0, 0, 1, 1], [], []>} : vector<8x8xbf16>, vector<8x32xbf16>, vector<8x32xf32> -> vector<8x32xf32>
    %340 = arith.addf %317, %339 : vector<8x32xf32>
    %cst_111 = arith.constant 0.000000e+00 : f32
    %341 = vector.broadcast %cst_111 : f32 to vector<8x32xf32>
    %342 = vector.extract_strided_slice %236 {offsets = [8, 0], sizes = [8, 8], strides = [1, 1]} : vector<16x32xf32> to vector<8x8xf32>
    %343 = arith.truncf %342 : vector<8x8xf32> to vector<8x8xbf16>
    %344 = vector.extract_strided_slice %242 {offsets = [10, 0], sizes = [10, 8], strides = [1, 1]} : vector<20x32xf32> to vector<10x8xf32>
    %345 = arith.truncf %344 : vector<10x8xf32> to vector<10x8xbf16>
    %346 = vector.extract_strided_slice %246 {offsets = [10, 0], sizes = [10, 8], strides = [1, 1]} : vector<20x32xf32> to vector<10x8xf32>
    %347 = arith.truncf %346 : vector<10x8xf32> to vector<10x8xbf16>
    %cst_112 = arith.constant dense<0.000000e+00> : vector<8x10xf32>
    %348 = tpu.matmul %343, %345, %cst_112 {dimension_numbers = #tpu.dot_dimension_numbers<[1], [1], [0], [0], [0, 0, 1, 0], [], []>} : vector<8x8xbf16>, vector<10x8xbf16>, vector<8x10xf32> -> vector<8x10xf32>
    %cst_113 = arith.constant dense<0xFF800000> : vector<8xf32>
    %349 = vector.multi_reduction <maximumf>, %348, %cst_113 [1] : vector<8x10xf32> to vector<8xf32>
    %350 = vector.shape_cast %349 : vector<8xf32> to vector<8x1xf32>
    %351 = vector.broadcast %350 : vector<8x1xf32> to vector<8x10xf32>
    %352 = arith.subf %348, %351 : vector<8x10xf32>
    %353 = math.exp %352 : vector<8x10xf32>
    %cst_114 = arith.constant dense<0.000000e+00> : vector<8xf32>
    %354 = vector.multi_reduction <add>, %353, %cst_114 [1] : vector<8x10xf32> to vector<8xf32>
    %355 = vector.shape_cast %354 : vector<8xf32> to vector<8x1xf32>
    %356 = arith.truncf %353 : vector<8x10xf32> to vector<8x10xbf16>
    %cst_115 = arith.constant dense<0.000000e+00> : vector<8x8xf32>
    %357 = tpu.matmul %356, %347, %cst_115 {dimension_numbers = #tpu.dot_dimension_numbers<[1], [0], [0], [1], [0, 0, 1, 1], [], []>} : vector<8x10xbf16>, vector<10x8xbf16>, vector<8x8xf32> -> vector<8x8xf32>
    %358 = tpu.reciprocal %355 {approx = true} : vector<8x1xf32> -> vector<8x1xf32>
    %359 = vector.broadcast %358 : vector<8x1xf32> to vector<8x8xf32>
    %360 = arith.mulf %357, %359 : vector<8x8xf32>
    %361 = arith.truncf %360 : vector<8x8xf32> to vector<8x8xbf16>
    %c0_116 = arith.constant 0 : index
    %c0_117 = arith.constant 0 : index
    %362 = vector.load %arg7[%c0_116, %c0_117] : memref<32x32xbf16, #tpu.memory_space<vmem>>, vector<8x32xbf16>
    %cst_118 = arith.constant dense<0.000000e+00> : vector<8x32xf32>
    %363 = tpu.matmul %361, %362, %cst_118 {dimension_numbers = #tpu.dot_dimension_numbers<[1], [0], [0], [1], [0, 0, 1, 1], [], []>} : vector<8x8xbf16>, vector<8x32xbf16>, vector<8x32xf32> -> vector<8x32xf32>
    %364 = arith.addf %341, %363 : vector<8x32xf32>
    %365 = vector.extract_strided_slice %236 {offsets = [8, 8], sizes = [8, 8], strides = [1, 1]} : vector<16x32xf32> to vector<8x8xf32>
    %366 = arith.truncf %365 : vector<8x8xf32> to vector<8x8xbf16>
    %367 = vector.extract_strided_slice %242 {offsets = [10, 8], sizes = [10, 8], strides = [1, 1]} : vector<20x32xf32> to vector<10x8xf32>
    %368 = arith.truncf %367 : vector<10x8xf32> to vector<10x8xbf16>
    %369 = vector.extract_strided_slice %246 {offsets = [10, 8], sizes = [10, 8], strides = [1, 1]} : vector<20x32xf32> to vector<10x8xf32>
    %370 = arith.truncf %369 : vector<10x8xf32> to vector<10x8xbf16>
    %cst_119 = arith.constant dense<0.000000e+00> : vector<8x10xf32>
    %371 = tpu.matmul %366, %368, %cst_119 {dimension_numbers = #tpu.dot_dimension_numbers<[1], [1], [0], [0], [0, 0, 1, 0], [], []>} : vector<8x8xbf16>, vector<10x8xbf16>, vector<8x10xf32> -> vector<8x10xf32>
    %cst_120 = arith.constant dense<0xFF800000> : vector<8xf32>
    %372 = vector.multi_reduction <maximumf>, %371, %cst_120 [1] : vector<8x10xf32> to vector<8xf32>
    %373 = vector.shape_cast %372 : vector<8xf32> to vector<8x1xf32>
    %374 = vector.broadcast %373 : vector<8x1xf32> to vector<8x10xf32>
    %375 = arith.subf %371, %374 : vector<8x10xf32>
    %376 = math.exp %375 : vector<8x10xf32>
    %cst_121 = arith.constant dense<0.000000e+00> : vector<8xf32>
    %377 = vector.multi_reduction <add>, %376, %cst_121 [1] : vector<8x10xf32> to vector<8xf32>
    %378 = vector.shape_cast %377 : vector<8xf32> to vector<8x1xf32>
    %379 = arith.truncf %376 : vector<8x10xf32> to vector<8x10xbf16>
    %cst_122 = arith.constant dense<0.000000e+00> : vector<8x8xf32>
    %380 = tpu.matmul %379, %370, %cst_122 {dimension_numbers = #tpu.dot_dimension_numbers<[1], [0], [0], [1], [0, 0, 1, 1], [], []>} : vector<8x10xbf16>, vector<10x8xbf16>, vector<8x8xf32> -> vector<8x8xf32>
    %381 = tpu.reciprocal %378 {approx = true} : vector<8x1xf32> -> vector<8x1xf32>
    %382 = vector.broadcast %381 : vector<8x1xf32> to vector<8x8xf32>
    %383 = arith.mulf %380, %382 : vector<8x8xf32>
    %384 = arith.truncf %383 : vector<8x8xf32> to vector<8x8xbf16>
    %c8_123 = arith.constant 8 : index
    %c0_124 = arith.constant 0 : index
    %385 = vector.load %arg7[%c8_123, %c0_124] : memref<32x32xbf16, #tpu.memory_space<vmem>>, vector<8x32xbf16>
    %cst_125 = arith.constant dense<0.000000e+00> : vector<8x32xf32>
    %386 = tpu.matmul %384, %385, %cst_125 {dimension_numbers = #tpu.dot_dimension_numbers<[1], [0], [0], [1], [0, 0, 1, 1], [], []>} : vector<8x8xbf16>, vector<8x32xbf16>, vector<8x32xf32> -> vector<8x32xf32>
    %387 = arith.addf %364, %386 : vector<8x32xf32>
    %388 = vector.extract_strided_slice %236 {offsets = [8, 16], sizes = [8, 8], strides = [1, 1]} : vector<16x32xf32> to vector<8x8xf32>
    %389 = arith.truncf %388 : vector<8x8xf32> to vector<8x8xbf16>
    %390 = vector.extract_strided_slice %242 {offsets = [10, 16], sizes = [10, 8], strides = [1, 1]} : vector<20x32xf32> to vector<10x8xf32>
    %391 = arith.truncf %390 : vector<10x8xf32> to vector<10x8xbf16>
    %392 = vector.extract_strided_slice %246 {offsets = [10, 16], sizes = [10, 8], strides = [1, 1]} : vector<20x32xf32> to vector<10x8xf32>
    %393 = arith.truncf %392 : vector<10x8xf32> to vector<10x8xbf16>
    %cst_126 = arith.constant dense<0.000000e+00> : vector<8x10xf32>
    %394 = tpu.matmul %389, %391, %cst_126 {dimension_numbers = #tpu.dot_dimension_numbers<[1], [1], [0], [0], [0, 0, 1, 0], [], []>} : vector<8x8xbf16>, vector<10x8xbf16>, vector<8x10xf32> -> vector<8x10xf32>
    %cst_127 = arith.constant dense<0xFF800000> : vector<8xf32>
    %395 = vector.multi_reduction <maximumf>, %394, %cst_127 [1] : vector<8x10xf32> to vector<8xf32>
    %396 = vector.shape_cast %395 : vector<8xf32> to vector<8x1xf32>
    %397 = vector.broadcast %396 : vector<8x1xf32> to vector<8x10xf32>
    %398 = arith.subf %394, %397 : vector<8x10xf32>
    %399 = math.exp %398 : vector<8x10xf32>
    %cst_128 = arith.constant dense<0.000000e+00> : vector<8xf32>
    %400 = vector.multi_reduction <add>, %399, %cst_128 [1] : vector<8x10xf32> to vector<8xf32>
    %401 = vector.shape_cast %400 : vector<8xf32> to vector<8x1xf32>
    %402 = arith.truncf %399 : vector<8x10xf32> to vector<8x10xbf16>
    %cst_129 = arith.constant dense<0.000000e+00> : vector<8x8xf32>
    %403 = tpu.matmul %402, %393, %cst_129 {dimension_numbers = #tpu.dot_dimension_numbers<[1], [0], [0], [1], [0, 0, 1, 1], [], []>} : vector<8x10xbf16>, vector<10x8xbf16>, vector<8x8xf32> -> vector<8x8xf32>
    %404 = tpu.reciprocal %401 {approx = true} : vector<8x1xf32> -> vector<8x1xf32>
    %405 = vector.broadcast %404 : vector<8x1xf32> to vector<8x8xf32>
    %406 = arith.mulf %403, %405 : vector<8x8xf32>
    %407 = arith.truncf %406 : vector<8x8xf32> to vector<8x8xbf16>
    %c16_130 = arith.constant 16 : index
    %c0_131 = arith.constant 0 : index
    %408 = vector.load %arg7[%c16_130, %c0_131] : memref<32x32xbf16, #tpu.memory_space<vmem>>, vector<8x32xbf16>
    %cst_132 = arith.constant dense<0.000000e+00> : vector<8x32xf32>
    %409 = tpu.matmul %407, %408, %cst_132 {dimension_numbers = #tpu.dot_dimension_numbers<[1], [0], [0], [1], [0, 0, 1, 1], [], []>} : vector<8x8xbf16>, vector<8x32xbf16>, vector<8x32xf32> -> vector<8x32xf32>
    %410 = arith.addf %387, %409 : vector<8x32xf32>
    %411 = vector.extract_strided_slice %236 {offsets = [8, 24], sizes = [8, 8], strides = [1, 1]} : vector<16x32xf32> to vector<8x8xf32>
    %412 = arith.truncf %411 : vector<8x8xf32> to vector<8x8xbf16>
    %413 = vector.extract_strided_slice %242 {offsets = [10, 24], sizes = [10, 8], strides = [1, 1]} : vector<20x32xf32> to vector<10x8xf32>
    %414 = arith.truncf %413 : vector<10x8xf32> to vector<10x8xbf16>
    %415 = vector.extract_strided_slice %246 {offsets = [10, 24], sizes = [10, 8], strides = [1, 1]} : vector<20x32xf32> to vector<10x8xf32>
    %416 = arith.truncf %415 : vector<10x8xf32> to vector<10x8xbf16>
    %cst_133 = arith.constant dense<0.000000e+00> : vector<8x10xf32>
    %417 = tpu.matmul %412, %414, %cst_133 {dimension_numbers = #tpu.dot_dimension_numbers<[1], [1], [0], [0], [0, 0, 1, 0], [], []>} : vector<8x8xbf16>, vector<10x8xbf16>, vector<8x10xf32> -> vector<8x10xf32>
    %cst_134 = arith.constant dense<0xFF800000> : vector<8xf32>
    %418 = vector.multi_reduction <maximumf>, %417, %cst_134 [1] : vector<8x10xf32> to vector<8xf32>
    %419 = vector.shape_cast %418 : vector<8xf32> to vector<8x1xf32>
    %420 = vector.broadcast %419 : vector<8x1xf32> to vector<8x10xf32>
    %421 = arith.subf %417, %420 : vector<8x10xf32>
    %422 = math.exp %421 : vector<8x10xf32>
    %cst_135 = arith.constant dense<0.000000e+00> : vector<8xf32>
    %423 = vector.multi_reduction <add>, %422, %cst_135 [1] : vector<8x10xf32> to vector<8xf32>
    %424 = vector.shape_cast %423 : vector<8xf32> to vector<8x1xf32>
    %425 = arith.truncf %422 : vector<8x10xf32> to vector<8x10xbf16>
    %cst_136 = arith.constant dense<0.000000e+00> : vector<8x8xf32>
    %426 = tpu.matmul %425, %416, %cst_136 {dimension_numbers = #tpu.dot_dimension_numbers<[1], [0], [0], [1], [0, 0, 1, 1], [], []>} : vector<8x10xbf16>, vector<10x8xbf16>, vector<8x8xf32> -> vector<8x8xf32>
    %427 = tpu.reciprocal %424 {approx = true} : vector<8x1xf32> -> vector<8x1xf32>
    %428 = vector.broadcast %427 : vector<8x1xf32> to vector<8x8xf32>
    %429 = arith.mulf %426, %428 : vector<8x8xf32>
    %430 = arith.truncf %429 : vector<8x8xf32> to vector<8x8xbf16>
    %c24_137 = arith.constant 24 : index
    %c0_138 = arith.constant 0 : index
    %431 = vector.load %arg7[%c24_137, %c0_138] : memref<32x32xbf16, #tpu.memory_space<vmem>>, vector<8x32xbf16>
    %cst_139 = arith.constant dense<0.000000e+00> : vector<8x32xf32>
    %432 = tpu.matmul %430, %431, %cst_139 {dimension_numbers = #tpu.dot_dimension_numbers<[1], [0], [0], [1], [0, 0, 1, 1], [], []>} : vector<8x8xbf16>, vector<8x32xbf16>, vector<8x32xf32> -> vector<8x32xf32>
    %433 = arith.addf %410, %432 : vector<8x32xf32>
    %434 = tpu.concatenate %340, %433 in 0 : vector<8x32xf32>, vector<8x32xf32> -> vector<16x32xf32>
    %435 = vector.broadcast %247 : vector<1x32xf32> to vector<16x32xf32>
    %436 = arith.addf %434, %435 : vector<16x32xf32>
    %437 = arith.addf %230, %436 : vector<16x32xf32>
    %c11 = arith.constant 11 : index
    %c0_140 = arith.constant 0 : index
    %438 = vector.load %arg10[%c11, %c0_140] : memref<15x32xf32, #tpu.memory_space<vmem>>, vector<1x32xf32>
    %c12 = arith.constant 12 : index
    %c0_141 = arith.constant 0 : index
    %439 = vector.load %arg10[%c12, %c0_141] : memref<15x32xf32, #tpu.memory_space<vmem>>, vector<1x32xf32>
    %cst_142 = arith.constant dense<0.000000e+00> : vector<16xf32>
    %440 = vector.multi_reduction <add>, %437, %cst_142 [1] : vector<16x32xf32> to vector<16xf32>
    %441 = vector.shape_cast %440 : vector<16xf32> to vector<16x1xf32>
    %cst_143 = arith.constant 3.200000e+01 : f32
    %442 = vector.broadcast %cst_143 : f32 to vector<16x1xf32>
    %443 = arith.divf %441, %442 : vector<16x1xf32>
    %444 = vector.broadcast %443 : vector<16x1xf32> to vector<16x32xf32>
    %445 = arith.subf %437, %444 : vector<16x32xf32>
    %446 = arith.mulf %445, %445 : vector<16x32xf32>
    %cst_144 = arith.constant dense<0.000000e+00> : vector<16xf32>
    %447 = vector.multi_reduction <add>, %446, %cst_144 [1] : vector<16x32xf32> to vector<16xf32>
    %448 = vector.shape_cast %447 : vector<16xf32> to vector<16x1xf32>
    %cst_145 = arith.constant 3.200000e+01 : f32
    %449 = vector.broadcast %cst_145 : f32 to vector<16x1xf32>
    %450 = arith.divf %448, %449 : vector<16x1xf32>
    %cst_146 = arith.constant 9.99999974E-6 : f32
    %451 = vector.broadcast %cst_146 : f32 to vector<16x1xf32>
    %452 = arith.addf %450, %451 : vector<16x1xf32>
    %453 = math.rsqrt %452 : vector<16x1xf32>
    %454 = vector.broadcast %453 : vector<16x1xf32> to vector<16x32xf32>
    %455 = arith.mulf %445, %454 : vector<16x32xf32>
    %456 = vector.broadcast %438 : vector<1x32xf32> to vector<16x32xf32>
    %457 = arith.mulf %455, %456 : vector<16x32xf32>
    %458 = vector.broadcast %439 : vector<1x32xf32> to vector<16x32xf32>
    %459 = arith.addf %457, %458 : vector<16x32xf32>
    %460 = arith.truncf %459 : vector<16x32xf32> to vector<16x32xbf16>
    %cst_147 = arith.constant 0.000000e+00 : f32
    %461 = vector.broadcast %cst_147 : f32 to vector<16x32xf32>
    %c0_148 = arith.constant 0 : index
    %c0_149 = arith.constant 0 : index
    %462 = vector.load %arg8[%c0_148, %c0_149] : memref<32x64xbf16, #tpu.memory_space<vmem>>, vector<32x64xbf16>
    %cst_150 = arith.constant dense<0.000000e+00> : vector<16x64xf32>
    %463 = tpu.matmul %460, %462, %cst_150 {dimension_numbers = #tpu.dot_dimension_numbers<[1], [0], [0], [1], [0, 0, 1, 1], [], []>} : vector<16x32xbf16>, vector<32x64xbf16>, vector<16x64xf32> -> vector<16x64xf32>
    %c0_151 = arith.constant 0 : index
    %c0_152 = arith.constant 0 : index
    %464 = vector.load %arg11[%c0_151, %c0_152] : memref<1x64xf32, #tpu.memory_space<vmem>>, vector<1x64xf32>
    %465 = vector.broadcast %464 : vector<1x64xf32> to vector<16x64xf32>
    %466 = arith.addf %463, %465 : vector<16x64xf32>
    %cst_153 = arith.constant 0.000000e+00 : f32
    %467 = vector.broadcast %cst_153 : f32 to vector<16x64xf32>
    %468 = arith.maximumf %466, %467 : vector<16x64xf32>
    %469 = arith.truncf %468 : vector<16x64xf32> to vector<16x64xbf16>
    %c0_154 = arith.constant 0 : index
    %c0_155 = arith.constant 0 : index
    %470 = vector.load %arg9[%c0_154, %c0_155] : memref<64x32xbf16, #tpu.memory_space<vmem>>, vector<64x32xbf16>
    %cst_156 = arith.constant dense<0.000000e+00> : vector<16x32xf32>
    %471 = tpu.matmul %469, %470, %cst_156 {dimension_numbers = #tpu.dot_dimension_numbers<[1], [0], [0], [1], [0, 0, 1, 1], [], []>} : vector<16x64xbf16>, vector<64x32xbf16>, vector<16x32xf32> -> vector<16x32xf32>
    %472 = arith.addf %461, %471 : vector<16x32xf32>
    %c8_157 = arith.constant 8 : index
    %c0_158 = arith.constant 0 : index
    %473 = vector.load %arg10[%c8_157, %c0_158] : memref<15x32xf32, #tpu.memory_space<vmem>>, vector<1x32xf32>
    %474 = vector.broadcast %473 : vector<1x32xf32> to vector<16x32xf32>
    %475 = arith.addf %472, %474 : vector<16x32xf32>
    %476 = arith.addf %459, %475 : vector<16x32xf32>
    %c13 = arith.constant 13 : index
    %c0_159 = arith.constant 0 : index
    %477 = vector.load %arg10[%c13, %c0_159] : memref<15x32xf32, #tpu.memory_space<vmem>>, vector<1x32xf32>
    %c14 = arith.constant 14 : index
    %c0_160 = arith.constant 0 : index
    %478 = vector.load %arg10[%c14, %c0_160] : memref<15x32xf32, #tpu.memory_space<vmem>>, vector<1x32xf32>
    %cst_161 = arith.constant dense<0.000000e+00> : vector<16xf32>
    %479 = vector.multi_reduction <add>, %476, %cst_161 [1] : vector<16x32xf32> to vector<16xf32>
    %480 = vector.shape_cast %479 : vector<16xf32> to vector<16x1xf32>
    %cst_162 = arith.constant 3.200000e+01 : f32
    %481 = vector.broadcast %cst_162 : f32 to vector<16x1xf32>
    %482 = arith.divf %480, %481 : vector<16x1xf32>
    %483 = vector.broadcast %482 : vector<16x1xf32> to vector<16x32xf32>
    %484 = arith.subf %476, %483 : vector<16x32xf32>
    %485 = arith.mulf %484, %484 : vector<16x32xf32>
    %cst_163 = arith.constant dense<0.000000e+00> : vector<16xf32>
    %486 = vector.multi_reduction <add>, %485, %cst_163 [1] : vector<16x32xf32> to vector<16xf32>
    %487 = vector.shape_cast %486 : vector<16xf32> to vector<16x1xf32>
    %cst_164 = arith.constant 3.200000e+01 : f32
    %488 = vector.broadcast %cst_164 : f32 to vector<16x1xf32>
    %489 = arith.divf %487, %488 : vector<16x1xf32>
    %cst_165 = arith.constant 9.99999974E-6 : f32
    %490 = vector.broadcast %cst_165 : f32 to vector<16x1xf32>
    %491 = arith.addf %489, %490 : vector<16x1xf32>
    %492 = math.rsqrt %491 : vector<16x1xf32>
    %493 = vector.broadcast %492 : vector<16x1xf32> to vector<16x32xf32>
    %494 = arith.mulf %484, %493 : vector<16x32xf32>
    %495 = vector.broadcast %477 : vector<1x32xf32> to vector<16x32xf32>
    %496 = arith.mulf %494, %495 : vector<16x32xf32>
    %497 = vector.broadcast %478 : vector<1x32xf32> to vector<16x32xf32>
    %498 = arith.addf %496, %497 : vector<16x32xf32>
    %c0_166 = arith.constant 0 : index
    %c0_167 = arith.constant 0 : index
    %499 = vector.load %arg12[%c0_166, %c0_167] : memref<16x32xf32, #tpu.memory_space<vmem>>, vector<16x32xf32>
    tpu.vector_store %arg12[%c0_166, %c0_167], %498 {strides = array<i32>} : memref<16x32xf32, #tpu.memory_space<vmem>>, vector<16x32xf32>,
    return
  }
  func.func @transform_0(%arg0: i32) -> (i32, i32) {
    %c0_i32 = arith.constant 0 : i32
    %c0_i32_0 = arith.constant 0 : i32
    return %arg0, %c0_i32 : i32, i32
  }
  func.func @transform_1(%arg0: i32) -> (i32, i32) {
    %c0_i32 = arith.constant 0 : i32
    %c0_i32_0 = arith.constant 0 : i32
    return %arg0, %c0_i32 : i32, i32
  }
  func.func @transform_2(%arg0: i32) -> (i32, i32) {
    %c0_i32 = arith.constant 0 : i32
    %c0_i32_0 = arith.constant 0 : i32
    %c0_i32_1 = arith.constant 0 : i32
    return %c0_i32, %c0_i32_0 : i32, i32
  }
  func.func @transform_3(%arg0: i32) -> (i32, i32) {
    %c0_i32 = arith.constant 0 : i32
    %c0_i32_0 = arith.constant 0 : i32
    %c0_i32_1 = arith.constant 0 : i32
    return %c0_i32, %c0_i32_0 : i32, i32
  }
  func.func @transform_4(%arg0: i32) -> (i32, i32) {
    %c0_i32 = arith.constant 0 : i32
    %c0_i32_0 = arith.constant 0 : i32
    %c0_i32_1 = arith.constant 0 : i32
    return %c0_i32, %c0_i32_0 : i32, i32
  }
  func.func @transform_5(%arg0: i32) -> (i32, i32) {
    %c0_i32 = arith.constant 0 : i32
    %c0_i32_0 = arith.constant 0 : i32
    %c0_i32_1 = arith.constant 0 : i32
    return %c0_i32, %c0_i32_0 : i32, i32
  }
  func.func @transform_6(%arg0: i32) -> (i32, i32) {
    %c0_i32 = arith.constant 0 : i32
    %c0_i32_0 = arith.constant 0 : i32
    %c0_i32_1 = arith.constant 0 : i32
    return %c0_i32, %c0_i32_0 : i32, i32
  }
  func.func @transform_7(%arg0: i32) -> (i32, i32) {
    %c0_i32 = arith.constant 0 : i32
    %c0_i32_0 = arith.constant 0 : i32
    %c0_i32_1 = arith.constant 0 : i32
    return %c0_i32, %c0_i32_0 : i32, i32
  }
  func.func @transform_8(%arg0: i32) -> (i32, i32) {
    %c0_i32 = arith.constant 0 : i32
    %c0_i32_0 = arith.constant 0 : i32
    %c0_i32_1 = arith.constant 0 : i32
    return %c0_i32, %c0_i32_0 : i32, i32
  }
  func.func @transform_9(%arg0: i32) -> (i32, i32) {
    %c0_i32 = arith.constant 0 : i32
    %c0_i32_0 = arith.constant 0 : i32
    %c0_i32_1 = arith.constant 0 : i32
    return %c0_i32, %c0_i32_0 : i32, i32
  }
  func.func @transform_10(%arg0: i32) -> (i32, i32) {
    %c0_i32 = arith.constant 0 : i32
    %c0_i32_0 = arith.constant 0 : i32
    %c0_i32_1 = arith.constant 0 : i32
    return %c0_i32, %c0_i32_0 : i32, i32
  }
  func.func @transform_11(%arg0: i32) -> (i32, i32) {
    %c0_i32 = arith.constant 0 : i32
    %c0_i32_0 = arith.constant 0 : i32
    return %arg0, %c0_i32 : i32, i32
  }
}

</mosaic_0001>

<llo_original>
// kernel: tpu_custom_call.1
$region0: #{tpu_custom_call.1}
  #allocation0 [shape = 'u32[]', space=smem, size = 0x4, offset = 0x4, fixed_abs, tag = 'smem constant byte address 0x4 - core index']
  #allocation1 [shape = 'u32[144,128]{1,0:T(1,128)}', space=vmem, size = 0x12000, scoped, tag = 'internal scratch']
  %s0 = inlined_call_operand.vmem [shape: f32[16,32], index: 0, kind: input, shape index: {}]
  %s1 = inlined_call_operand.vmem [shape: f32[20,32], index: 1, kind: input, shape index: {}]
  %s2 = inlined_call_operand.hbm [shape: bf16[32,96], index: 2, kind: input, shape index: {}]
  %s3 = inlined_call_operand.hbm [shape: bf16[32,32], index: 3, kind: input, shape index: {}]
  %s4 = inlined_call_operand.hbm [shape: bf16[32,32], index: 4, kind: input, shape index: {}]
  %s5 = inlined_call_operand.vmem [shape: bf16[32,64], index: 5, kind: input, shape index: {}]
  %s6 = inlined_call_operand.hbm [shape: bf16[32,32], index: 6, kind: input, shape index: {}]
  %s7 = inlined_call_operand.hbm [shape: bf16[32,64], index: 7, kind: input, shape index: {}]
  %s8 = inlined_call_operand.vmem [shape: bf16[64,32], index: 8, kind: input, shape index: {}]
  %s9 = inlined_call_operand.hbm [shape: f32[15,32], index: 9, kind: input, shape index: {}]
  %s10 = inlined_call_operand.vmem [shape: f32[1,64], index: 10, kind: input, shape index: {}]
  %s11 = inlined_call_operand.hbm [shape: f32[16,32], index: 11, kind: output, shape index: {}]
  %s12 = sld [smem:[#allocation0]]
  $region78: #{tpu_custom_call.1} parent=0
    _
  %s14 = ssub.s32 1, %s12
  %s15 = scalar_select 0, %s14, %s12
  $region1: #{tpu_custom_call.1} parent=0
    #allocation2 [shape = 'u8[8192]{0}', space=vmem, size = 0x2000, scoped, tag = 'input window, operand 2, single buffered']
    #allocation3 [shape = 's32[1]{0}', space=sflag, size = 0x4, scoped, tag = 'scoped memory for tpu_custom_call.1']
    #allocation4 [shape = 's32[1]{0}', space=sflag, size = 0x4, scoped, tag = 'scoped memory for tpu_custom_call.1']
    #allocation5 [shape = 'u8[8192]{0}', space=vmem, size = 0x2000, scoped, tag = 'input window, operand 3, single buffered']
    #allocation6 [shape = 's32[1]{0}', space=sflag, size = 0x4, scoped, tag = 'scoped memory for tpu_custom_call.1']
    #allocation7 [shape = 'u8[8192]{0}', space=vmem, size = 0x2000, scoped, tag = 'input window, operand 4, single buffered']
    #allocation8 [shape = 'u8[8192]{0}', space=vmem, size = 0x2000, scoped, tag = 'input window, operand 6, single buffered']
    #allocation9 [shape = 's32[1]{0}', space=sflag, size = 0x4, scoped, tag = 'scoped memory for tpu_custom_call.1']
    #allocation10 [shape = 'u8[8192]{0}', space=vmem, size = 0x2000, scoped, tag = 'input window, operand 7, single buffered']
    #allocation11 [shape = 'u8[8192]{0}', space=vmem, size = 0x2000, scoped, tag = 'input window, operand 9, single buffered']
    #allocation12 [shape = 's32[1]{0}', space=sflag, size = 0x4, scoped, tag = 'scoped memory for tpu_custom_call.1']
    #allocation13 [shape = 'u8[8192]{0}', space=vmem, size = 0x2000, scoped, tag = 'output window, operand 0, single buffered']
    %16 = vsyncpa [#allocation3], 0
    %17 = vsyncpa [#allocation6], 0
    %18 = vsyncpa [#allocation9], 0
    %19 = vsyncpa [#allocation12], 0
    %20 = vsyncpa [#allocation4], 0
    // Predicated region
    $region2: #{tpu_custom_call.1} parent=1 // pred_check
      _
    $region3: #{tpu_custom_call.1} parent=1 // pred_check_branch
      %22 = sbr.rel (0) target = $region5
    $region4: #{tpu_custom_call.1} parent=1 // pred_region
      _
    $region5: #{tpu_custom_call.1} parent=1 // pred_fallthru
      _
    // Predicated region
    $region6: #{tpu_custom_call.1} parent=1 // pred_check
      _
    $region7: #{tpu_custom_call.1} parent=1 // pred_check_branch
      %24 = sbr.rel (0) target = $region9
    $region8: #{tpu_custom_call.1} parent=1 // pred_region
      _
    $region9: #{tpu_custom_call.1} parent=1 // pred_fallthru
      _
    // Predicated region
    $region10: #{tpu_custom_call.1} parent=1 // pred_check
      _
    $region11: #{tpu_custom_call.1} parent=1 // pred_check_branch
      %26 = sbr.rel (0) target = $region13
    $region12: #{tpu_custom_call.1} parent=1 // pred_region
      %s28 = ssub.s32 256, 256
      %29 = vsyncadd [#allocation3], %s28
      %s30 = sshll.u32 [#allocation2], 4
      %s31 = int_to_ptr.vmem [resolvable:$true] %s30
      %36 = dma.hbm_to_vmem [thread:$0]  %s2, 256, %s31, [#allocation3], 64, 64, 4
    $region13: #{tpu_custom_call.1} parent=1 // pred_fallthru
      _
    // Predicated region
    $region14: #{tpu_custom_call.1} parent=1 // pred_check
      _
    $region15: #{tpu_custom_call.1} parent=1 // pred_check_branch
      %38 = sbr.rel (0) target = $region17
    $region16: #{tpu_custom_call.1} parent=1 // pred_region
      %s40 = ssub.s32 256, 256
      %41 = vsyncadd [#allocation6], %s40
      %s42 = sshll.u32 [#allocation5], 4
      %s43 = int_to_ptr.vmem [resolvable:$true] %s42
      %48 = dma.hbm_to_vmem [thread:$0]  %s3, 256, %s43, [#allocation6], 64, 64, 4
    $region17: #{tpu_custom_call.1} parent=1 // pred_fallthru
      _
    // Predicated region
    $region18: #{tpu_custom_call.1} parent=1 // pred_check
      _
    $region19: #{tpu_custom_call.1} parent=1 // pred_check_branch
      %50 = sbr.rel (0) target = $region21
    $region20: #{tpu_custom_call.1} parent=1 // pred_region
      %s52 = ssub.s32 256, 256
      %53 = vsyncadd [#allocation6], %s52
      %s54 = sshll.u32 [#allocation7], 4
      %s55 = int_to_ptr.vmem [resolvable:$true] %s54
      %60 = dma.hbm_to_vmem [thread:$0]  %s4, 256, %s55, [#allocation6], 64, 64, 4
    $region21: #{tpu_custom_call.1} parent=1 // pred_fallthru
      _
    // Predicated region
    $region22: #{tpu_custom_call.1} parent=1 // pred_check
      _
    $region23: #{tpu_custom_call.1} parent=1 // pred_check_branch
      %62 = sbr.rel (0) target = $region25
    $region24: #{tpu_custom_call.1} parent=1 // pred_region
      _
    $region25: #{tpu_custom_call.1} parent=1 // pred_fallthru
      _
    // Predicated region
    $region26: #{tpu_custom_call.1} parent=1 // pred_check
      _
    $region27: #{tpu_custom_call.1} parent=1 // pred_check_branch
      %64 = sbr.rel (0) target = $region29
    $region28: #{tpu_custom_call.1} parent=1 // pred_region
      %s66 = ssub.s32 256, 256
      %67 = vsyncadd [#allocation9], %s66
      %s68 = sshll.u32 [#allocation8], 4
      %s69 = int_to_ptr.vmem [resolvable:$true] %s68
      %74 = dma.hbm_to_vmem [thread:$0]  %s6, 256, %s69, [#allocation9], 64, 64, 4
    $region29: #{tpu_custom_call.1} parent=1 // pred_fallthru
      _
    // Predicated region
    $region30: #{tpu_custom_call.1} parent=1 // pred_check
      _
    $region31: #{tpu_custom_call.1} parent=1 // pred_check_branch
      %76 = sbr.rel (0) target = $region33
    $region32: #{tpu_custom_call.1} parent=1 // pred_region
      %s78 = ssub.s32 256, 256
      %79 = vsyncadd [#allocation9], %s78
      %s80 = sshll.u32 [#allocation10], 4
      %s81 = int_to_ptr.vmem [resolvable:$true] %s80
      %86 = dma.hbm_to_vmem [thread:$0]  %s7, 256, %s81, [#allocation9], 64, 64, 4
    $region33: #{tpu_custom_call.1} parent=1 // pred_fallthru
      _
    // Predicated region
    $region34: #{tpu_custom_call.1} parent=1 // pred_check
      _
    $region35: #{tpu_custom_call.1} parent=1 // pred_check_branch
      %88 = sbr.rel (0) target = $region37
    $region36: #{tpu_custom_call.1} parent=1 // pred_region
      _
    $region37: #{tpu_custom_call.1} parent=1 // pred_fallthru
      _
    // Predicated region
    $region38: #{tpu_custom_call.1} parent=1 // pred_check
      _
    $region39: #{tpu_custom_call.1} parent=1 // pred_check_branch
      %90 = sbr.rel (0) target = $region41
    $region40: #{tpu_custom_call.1} parent=1 // pred_region
      %s92 = ssub.s32 256, 256
      %93 = vsyncadd [#allocation12], %s92
      %s94 = sshll.u32 [#allocation11], 4
      %s95 = int_to_ptr.vmem [resolvable:$true] %s94
      %100 = dma.hbm_to_vmem [thread:$0]  %s9, 256, %s95, [#allocation12], 128, 128, 8
    $region41: #{tpu_custom_call.1} parent=1 // pred_fallthru
      _
    // Predicated region
    $region42: #{tpu_custom_call.1} parent=1 // pred_check
      _
    $region43: #{tpu_custom_call.1} parent=1 // pred_check_branch
      %102 = sbr.rel (0) target = $region45
    $region44: #{tpu_custom_call.1} parent=1 // pred_region
      _
    $region45: #{tpu_custom_call.1} parent=1 // pred_fallthru
      _
    // Predicated region
    $region46: #{tpu_custom_call.1} parent=1 // pred_check
      _
    $region47: #{tpu_custom_call.1} parent=1 // pred_check_branch
      %104 = sbr.rel (0) target = $region49
    $region48: #{tpu_custom_call.1} parent=1 // pred_region
      %105 = dma.done [#allocation3], 256
    $region49: #{tpu_custom_call.1} parent=1 // pred_fallthru
      _
    // Predicated region
    $region50: #{tpu_custom_call.1} parent=1 // pred_check
      _
    $region51: #{tpu_custom_call.1} parent=1 // pred_check_branch
      %107 = sbr.rel (0) target = $region53
    $region52: #{tpu_custom_call.1} parent=1 // pred_region
      %108 = dma.done [#allocation6], 256
    $region53: #{tpu_custom_call.1} parent=1 // pred_fallthru
      _
    // Predicated region
    $region54: #{tpu_custom_call.1} parent=1 // pred_check
      _
    $region55: #{tpu_custom_call.1} parent=1 // pred_check_branch
      %110 = sbr.rel (0) target = $region57
    $region56: #{tpu_custom_call.1} parent=1 // pred_region
      %111 = dma.done [#allocation6], 256
    $region57: #{tpu_custom_call.1} parent=1 // pred_fallthru
      _
    // Predicated region
    $region58: #{tpu_custom_call.1} parent=1 // pred_check
      _
    $region59: #{tpu_custom_call.1} parent=1 // pred_check_branch
      %113 = sbr.rel (0) target = $region61
    $region60: #{tpu_custom_call.1} parent=1 // pred_region
      %114 = dma.done [#allocation9], 256
    $region61: #{tpu_custom_call.1} parent=1 // pred_fallthru
      _
    // Predicated region
    $region62: #{tpu_custom_call.1} parent=1 // pred_check
      _
    $region63: #{tpu_custom_call.1} parent=1 // pred_check_branch
      %116 = sbr.rel (0) target = $region65
    $region64: #{tpu_custom_call.1} parent=1 // pred_region
      %117 = dma.done [#allocation9], 256
    $region65: #{tpu_custom_call.1} parent=1 // pred_fallthru
      _
    // Predicated region
    $region66: #{tpu_custom_call.1} parent=1 // pred_check
      _
    $region67: #{tpu_custom_call.1} parent=1 // pred_check_branch
      %119 = sbr.rel (0) target = $region69
    $region68: #{tpu_custom_call.1} parent=1 // pred_region
      %120 = dma.done [#allocation12], 256
    $region69: #{tpu_custom_call.1} parent=1 // pred_fallthru
      _
    %v122 = vld [vmem:[%s0] sm:$0xff]
    %v123 = vld [vmem:[%s0 + $0x8] sm:$0xff]
    %v124 = vld [vmem:[%s1] sm:$0xff]
    %v125 = vld [vmem:[%s1 + $0x8] sm:$0xff]
    %v126 = vld [vmem:[%s1 + $0x10] sm:$0xf]
    %v127 = vpack.c.bf16 %v125, %v124
    %v128 = vpack.c.bf16 %v126, %v126
    %v129 = vpack.c.bf16 %v123, %v122
    %v130 = vld [vmem:[#allocation2] sm:$0xf]
    %v131 = vld [vmem:[#allocation2 + $0x4] sm:$0xf]
    %v132 = vld [vmem:[#allocation2 + $0x8] sm:$0xf]
    %v133 = vld [vmem:[#allocation2 + $0xc] sm:$0xf]
    %v138 = vunpack.c.l.b16 %v130
    %v139 = vunpack.c.l.b16 %v131
    %v140 = vunpack.c.l.b16 %v132
    %v141 = vunpack.c.l.b16 %v133
    %v142 = vpack.c.b16 %v139, %v138
    %v143 = vpack.c.b16 %v141, %v140
    %vm146 = vcmask 261120
    %v148 = vsel %vm146, %v129, 0
    %150 = vmatprep.subr.bf16.mxu0 0
    %151 = vmatpush1.bf16.msra.mxu0 0
    %152 = vmatprep.subr.bf16.mxu0 0
    %153 = vmatpush1.bf16.msra.mxu0 0
    %154 = vmatprep.subr.bf16.mxu0 0
    %155 = vmatpush1.bf16.msra.mxu0 0
    %156 = vmatprep.subr.bf16.mxu0 0
    %157 = vmatpush1.bf16.msra.mxu0 0
    %158 = vmatprep.subr.bf16.mxu0 0
    %159 = vmatpush1.bf16.msra.mxu0 0
    %160 = vmatprep.subr.bf16.mxu0 0
    %161 = vmatpush1.bf16.msra.mxu0 0
    %162 = vmatprep.subr.bf16.mxu0 0
    %163 = vmatpush1.bf16.msra.mxu0 %v143
    %164 = vmatprep.subr.bf16.mxu0 0
    %165 = vmatpush1.bf16.msra.mxu0 %v142
    %166 = vmatprep.subr.bf16.mxu0 0
    %167 = vmatpush2.bf16.msra.mxu0 0
    %168 = vmatprep.subr.bf16.mxu0 0
    %169 = vmatpush2.bf16.msra.mxu0 0
    %170 = vmatprep.subr.bf16.mxu0 0
    %171 = vmatpush2.bf16.msra.mxu0 0
    %172 = vmatprep.subr.bf16.mxu0 0
    %173 = vmatpush2.bf16.msra.mxu0 0
    %174 = vmatprep.subr.bf16.mxu0 0
    %175 = vmatpush2.bf16.msra.mxu0 0
    %176 = vmatprep.subr.bf16.mxu0 0
    %177 = vmatpush2.bf16.msra.mxu0 0
    %178 = vmatprep.subr.bf16.mxu0 0
    %179 = vmatpush2.bf16.msra.mxu0 0
    %180 = vmatprep.subr.bf16.mxu0 0
    %181 = vmatpush2.bf16.msra.mxu0 0
    %182 = vmatprep.mubr.bf16.mxu0 0
    %183 = vmatmul.mubr.bf16.gmra.mxu0 %v148
    %v184 = vpop.f32.mrf.mxu0
    %v185 = vadd.f32 0.0, %v184
    %v186 = vpop.f32.mrf.mxu0
    %v187 = vpop.f32.mrf.mxu0
    %v188 = vadd.f32 0.0, %v187
    %v189 = vpop.f32.mrf.mxu0
    %190 = vdwg.mxu0
    %v191 = vld [vmem:[#allocation11] sm:$0x1]
    %v192 = vlaneseq
    %v193 = vshrl.u32 %v192, 7
    %v194 = vsub.s32 0, %v193
    %v195 = vrot.slane %v191, %v194
    %v196 = vadd.f32 %v185, %v195
    %v197 = vadd.f32 %v188, %v195
    %v198 = vld [vmem:[#allocation11 + $0x1] sm:$0x1]
    %v199 = vlaneseq
    %v200 = vshrl.u32 %v199, 7
    %v201 = vsub.s32 0, %v200
    %v202 = vrot.slane %v198, %v201
    %204 = vrot.lane.b32.xlu0 %v202, 32
    %v205 = vpop.permute.xlu0 %204
    %v207 = vadd.f32 %v185, %v205
    %v208 = vadd.f32 %v188, %v205
    %v209 = vld [vmem:[#allocation11 + $0x2] sm:$0x1]
    %v210 = vlaneseq
    %v211 = vshrl.u32 %v210, 7
    %v212 = vsub.s32 0, %v211
    %v213 = vrot.slane %v209, %v212
    %215 = vrot.lane.b32.xlu0 %v213, 64
    %v216 = vpop.permute.xlu0 %215
    %v218 = vadd.f32 %v185, %v216
    %v219 = vadd.f32 %v188, %v216
    %v220 = vld [vmem:[#allocation11 + $0x3] sm:$0x1]
    %v221 = vpack.c.bf16 %v196, %v196
    %v222 = vpack.c.bf16 %v207, %v207
    %v223 = vpack.c.bf16 %v218, %v218
    %225 = vrot.lane.b32.xlu0 %v222, 96
    %v226 = vpop.permute.xlu0 %225
    %vm227 = vcmask 64512
    %v229 = vsel %vm227, %v221, 0
    %v232 = vsel %vm227, %v226, 0
    %234 = vmatprep.subr.bf16.mxu0 0
    %235 = vmatpush1.bf16.xpose.msra.mxu0 0
    %236 = vmatprep.subr.bf16.mxu0 0
    %237 = vmatpush1.bf16.xpose.msra.mxu0 0
    %238 = vmatprep.subr.bf16.mxu0 0
    %239 = vmatpush1.bf16.xpose.msra.mxu0 0
    %240 = vmatprep.subr.bf16.mxu0 0
    %241 = vmatpush1.bf16.xpose.msra.mxu0 0
    %242 = vmatprep.subr.bf16.mxu0 0
    %243 = vmatpush1.bf16.xpose.msra.mxu0 0
    %244 = vmatprep.subr.bf16.mxu0 0
    %245 = vmatpush1.bf16.xpose.msra.mxu0 0
    %246 = vmatprep.subr.bf16.mxu0 0
    %247 = vmatpush1.bf16.xpose.msra.mxu0 0
    %248 = vmatprep.subr.bf16.mxu0 0
    %249 = vmatpush1.bf16.xpose.msra.mxu0 %v232
    %250 = vmatprep.subr.bf16.mxu0 0
    %251 = vmatpush2.bf16.xpose.msra.mxu0 0
    %252 = vmatprep.subr.bf16.mxu0 0
    %253 = vmatpush2.bf16.xpose.msra.mxu0 0
    %254 = vmatprep.subr.bf16.mxu0 0
    %255 = vmatpush2.bf16.xpose.msra.mxu0 0
    %256 = vmatprep.subr.bf16.mxu0 0
    %257 = vmatpush2.bf16.xpose.msra.mxu0 0
    %258 = vmatprep.subr.bf16.mxu0 0
    %259 = vmatpush2.bf16.xpose.msra.mxu0 0
    %260 = vmatprep.subr.bf16.mxu0 0
    %261 = vmatpush2.bf16.xpose.msra.mxu0 0
    %262 = vmatprep.subr.bf16.mxu0 0
    %263 = vmatpush2.bf16.xpose.msra.mxu0 0
    %264 = vmatprep.subr.bf16.mxu0 0
    %265 = vmatpush2.bf16.xpose.msra.mxu0 0
    %266 = vmatprep.mubr.bf16.mxu0 0
    %267 = vmatmul.mubr.bf16.gmra.mxu0 %v229
    %v268 = vpop.f32.mrf.mxu0
    %v269 = vadd.f32 0.0, %v268
    %v270 = vpop.f32.mrf.mxu0
    %v271 = vpop.f32.mrf.mxu0
    %v272 = vpop.f32.mrf.mxu0
    %273 = vdwg.mxu0
    %v274 = vsel %vm227, %v269, -inf
    %275 = vmax.xlane.f32.xlu0 %v274
    %v276 = vpop.xlane.xlu0 %275
    %v277 = vsub.f32 %v269, %v276
    %v278 = vmul.f32 %v277, 1.442695
    %v279 = vpow.pop %v278
    %v280 = vsel %vm227, %v279, 0.0
    %281 = vadd.xlane.f32.xlu0 %v280
    %v282 = vpop.xlane.xlu0 %281
    %v283 = vpack.c.bf16 %v279, %v279
    %285 = vrot.lane.b32.xlu0 %v223, 64
    %v286 = vpop.permute.xlu0 %285
    %v288 = vsel %vm227, %v283, 0
    %vm290 = vcmask 1043456
    %v292 = vsel %vm290, %v286, 0
    %294 = vmatprep.subr.bf16.mxu0 0
    %295 = vmatpush1.bf16.msra.mxu0 0
    %296 = vmatprep.subr.bf16.mxu0 0
    %297 = vmatpush1.bf16.msra.mxu0 0
    %298 = vmatprep.subr.bf16.mxu0 0
    %299 = vmatpush1.bf16.msra.mxu0 0
    %300 = vmatprep.subr.bf16.mxu0 0
    %301 = vmatpush1.bf16.msra.mxu0 0
    %302 = vmatprep.subr.bf16.mxu0 0
    %303 = vmatpush1.bf16.msra.mxu0 0
    %304 = vmatprep.subr.bf16.mxu0 0
    %305 = vmatpush1.bf16.msra.mxu0 0
    %306 = vmatprep.subr.bf16.mxu0 0
    %307 = vmatpush1.bf16.msra.mxu0 0
    %308 = vmatprep.subr.bf16.mxu0 0
    %309 = vmatpush1.bf16.msra.mxu0 %v292
    %310 = vmatprep.subr.bf16.mxu0 0
    %311 = vmatpush2.bf16.msra.mxu0 0
    %312 = vmatprep.subr.bf16.mxu0 0
    %313 = vmatpush2.bf16.msra.mxu0 0
    %314 = vmatprep.subr.bf16.mxu0 0
    %315 = vmatpush2.bf16.msra.mxu0 0
    %316 = vmatprep.subr.bf16.mxu0 0
    %317 = vmatpush2.bf16.msra.mxu0 0
    %318 = vmatprep.subr.bf16.mxu0 0
    %319 = vmatpush2.bf16.msra.mxu0 0
    %320 = vmatprep.subr.bf16.mxu0 0
    %321 = vmatpush2.bf16.msra.mxu0 0
    %322 = vmatprep.subr.bf16.mxu0 0
    %323 = vmatpush2.bf16.msra.mxu0 0
    %324 = vmatprep.subr.bf16.mxu0 0
    %325 = vmatpush2.bf16.msra.mxu0 0
    %326 = vmatprep.mubr.bf16.mxu0 0
    %327 = vmatmul.mubr.bf16.gmra.mxu0 %v288
    %v328 = vpop.f32.mrf.mxu0
    %v329 = vadd.f32 0.0, %v328
    %v330 = vpop.f32.mrf.mxu0
    %v331 = vpop.f32.mrf.mxu0
    %v332 = vpop.f32.mrf.mxu0
    %333 = vdwg.mxu0
    %v334 = vrcp.pop %v282
    %v335 = vmul.f32 %v329, %v334
    %v336 = vpack.c.bf16 %v335, %v335
    %v337 = vld [vmem:[#allocation5] sm:$0xf]
    %339 = vrot.lane.b32.xlu0 %v221, 120
    %v340 = vpop.permute.xlu0 %339
    %341 = vrot.lane.b32.xlu0 %v222, 88
    %v342 = vpop.permute.xlu0 %341
    %v344 = vsel %vm227, %v340, 0
    %v347 = vsel %vm227, %v342, 0
    %349 = vmatprep.subr.bf16.mxu0 0
    %350 = vmatpush1.bf16.xpose.msra.mxu0 0
    %351 = vmatprep.subr.bf16.mxu0 0
    %352 = vmatpush1.bf16.xpose.msra.mxu0 0
    %353 = vmatprep.subr.bf16.mxu0 0
    %354 = vmatpush1.bf16.xpose.msra.mxu0 0
    %355 = vmatprep.subr.bf16.mxu0 0
    %356 = vmatpush1.bf16.xpose.msra.mxu0 0
    %357 = vmatprep.subr.bf16.mxu0 0
    %358 = vmatpush1.bf16.xpose.msra.mxu0 0
    %359 = vmatprep.subr.bf16.mxu0 0
    %360 = vmatpush1.bf16.xpose.msra.mxu0 0
    %361 = vmatprep.subr.bf16.mxu0 0
    %362 = vmatpush1.bf16.xpose.msra.mxu0 0
    %363 = vmatprep.subr.bf16.mxu0 0
    %364 = vmatpush1.bf16.xpose.msra.mxu0 %v347
    %365 = vmatprep.subr.bf16.mxu0 0
    %366 = vmatpush2.bf16.xpose.msra.mxu0 0
    %367 = vmatprep.subr.bf16.mxu0 0
    %368 = vmatpush2.bf16.xpose.msra.mxu0 0
    %369 = vmatprep.subr.bf16.mxu0 0
    %370 = vmatpush2.bf16.xpose.msra.mxu0 0
    %371 = vmatprep.subr.bf16.mxu0 0
    %372 = vmatpush2.bf16.xpose.msra.mxu0 0
    %373 = vmatprep.subr.bf16.mxu0 0
    %374 = vmatpush2.bf16.xpose.msra.mxu0 0
    %375 = vmatprep.subr.bf16.mxu0 0
    %376 = vmatpush2.bf16.xpose.msra.mxu0 0
    %377 = vmatprep.subr.bf16.mxu0 0
    %378 = vmatpush2.bf16.xpose.msra.mxu0 0
    %379 = vmatprep.subr.bf16.mxu0 0
    %380 = vmatpush2.bf16.xpose.msra.mxu0 0
    %381 = vmatprep.mubr.bf16.mxu0 0
    %382 = vmatmul.mubr.bf16.gmra.mxu0 %v344
    %v383 = vpop.f32.mrf.mxu0
    %v384 = vadd.f32 0.0, %v383
    %v385 = vpop.f32.mrf.mxu0
    %v386 = vpop.f32.mrf.mxu0
    %v387 = vpop.f32.mrf.mxu0
    %388 = vdwg.mxu0
    %v389 = vsel %vm227, %v384, -inf
    %390 = vmax.xlane.f32.xlu0 %v389
    %v391 = vpop.xlane.xlu0 %390
    %v392 = vsub.f32 %v384, %v391
    %v393 = vmul.f32 %v392, 1.442695
    %v394 = vpow.pop %v393
    %v395 = vsel %vm227, %v394, 0.0
    %396 = vadd.xlane.f32.xlu0 %v395
    %v397 = vpop.xlane.xlu0 %396
    %v398 = vpack.c.bf16 %v394, %v394
    %399 = vrot.lane.b32.xlu0 %v223, 56
    %v400 = vpop.permute.xlu0 %399
    %v402 = vsel %vm227, %v398, 0
    %v405 = vsel %vm290, %v400, 0
    %407 = vmatprep.subr.bf16.mxu0 0
    %408 = vmatpush1.bf16.msra.mxu0 0
    %409 = vmatprep.subr.bf16.mxu0 0
    %410 = vmatpush1.bf16.msra.mxu0 0
    %411 = vmatprep.subr.bf16.mxu0 0
    %412 = vmatpush1.bf16.msra.mxu0 0
    %413 = vmatprep.subr.bf16.mxu0 0
    %414 = vmatpush1.bf16.msra.mxu0 0
    %415 = vmatprep.subr.bf16.mxu0 0
    %416 = vmatpush1.bf16.msra.mxu0 0
    %417 = vmatprep.subr.bf16.mxu0 0
    %418 = vmatpush1.bf16.msra.mxu0 0
    %419 = vmatprep.subr.bf16.mxu0 0
    %420 = vmatpush1.bf16.msra.mxu0 0
    %421 = vmatprep.subr.bf16.mxu0 0
    %422 = vmatpush1.bf16.msra.mxu0 %v405
    %423 = vmatprep.subr.bf16.mxu0 0
    %424 = vmatpush2.bf16.msra.mxu0 0
    %425 = vmatprep.subr.bf16.mxu0 0
    %426 = vmatpush2.bf16.msra.mxu0 0
    %427 = vmatprep.subr.bf16.mxu0 0
    %428 = vmatpush2.bf16.msra.mxu0 0
    %429 = vmatprep.subr.bf16.mxu0 0
    %430 = vmatpush2.bf16.msra.mxu0 0
    %431 = vmatprep.subr.bf16.mxu0 0
    %432 = vmatpush2.bf16.msra.mxu0 0
    %433 = vmatprep.subr.bf16.mxu0 0
    %434 = vmatpush2.bf16.msra.mxu0 0
    %435 = vmatprep.subr.bf16.mxu0 0
    %436 = vmatpush2.bf16.msra.mxu0 0
    %437 = vmatprep.subr.bf16.mxu0 0
    %438 = vmatpush2.bf16.msra.mxu0 0
    %439 = vmatprep.mubr.bf16.mxu0 0
    %440 = vmatmul.mubr.bf16.gmra.mxu0 %v402
    %v441 = vpop.f32.mrf.mxu0
    %v442 = vadd.f32 0.0, %v441
    %v443 = vpop.f32.mrf.mxu0
    %v444 = vpop.f32.mrf.mxu0
    %v445 = vpop.f32.mrf.mxu0
    %446 = vdwg.mxu0
    %v447 = vrcp.pop %v397
    %v448 = vmul.f32 %v442, %v447
    %v449 = vpack.c.bf16 %v448, %v448
    %v450 = vld [vmem:[#allocation5 + $0x4] sm:$0xf]
    %v452 = vsel %vm227, %v449, 0
    %v455 = vsel %vm290, %v450, 0
    %457 = vmatprep.subr.bf16.mxu0 0
    %458 = vmatpush1.bf16.msra.mxu0 0
    %459 = vmatprep.subr.bf16.mxu0 0
    %460 = vmatpush1.bf16.msra.mxu0 0
    %461 = vmatprep.subr.bf16.mxu0 0
    %462 = vmatpush1.bf16.msra.mxu0 0
    %463 = vmatprep.subr.bf16.mxu0 0
    %464 = vmatpush1.bf16.msra.mxu0 0
    %465 = vmatprep.subr.bf16.mxu0 0
    %466 = vmatpush1.bf16.msra.mxu0 0
    %467 = vmatprep.subr.bf16.mxu0 0
    %468 = vmatpush1.bf16.msra.mxu0 0
    %469 = vmatprep.subr.bf16.mxu0 0
    %470 = vmatpush1.bf16.msra.mxu0 0
    %471 = vmatprep.subr.bf16.mxu0 0
    %472 = vmatpush1.bf16.msra.mxu0 %v455
    %473 = vmatprep.subr.bf16.mxu0 0
    %474 = vmatpush2.bf16.msra.mxu0 0
    %475 = vmatprep.subr.bf16.mxu0 0
    %476 = vmatpush2.bf16.msra.mxu0 0
    %477 = vmatprep.subr.bf16.mxu0 0
    %478 = vmatpush2.bf16.msra.mxu0 0
    %479 = vmatprep.subr.bf16.mxu0 0
    %480 = vmatpush2.bf16.msra.mxu0 0
    %481 = vmatprep.subr.bf16.mxu0 0
    %482 = vmatpush2.bf16.msra.mxu0 0
    %483 = vmatprep.subr.bf16.mxu0 0
    %484 = vmatpush2.bf16.msra.mxu0 0
    %485 = vmatprep.subr.bf16.mxu0 0
    %486 = vmatpush2.bf16.msra.mxu0 0
    %487 = vmatprep.subr.bf16.mxu0 0
    %488 = vmatpush2.bf16.msra.mxu0 0
    %489 = vmatprep.mubr.bf16.mxu0 0
    %490 = vmatmul.mubr.bf16.gmra.mxu0 %v452
    %v491 = vpop.f32.mrf.mxu0
    %v492 = vadd.f32 0.0, %v491
    %v493 = vpop.f32.mrf.mxu0
    %v494 = vpop.f32.mrf.mxu0
    %v495 = vpop.f32.mrf.mxu0
    %496 = vdwg.mxu0
    %v498 = vsel %vm227, %v336, 0
    %v501 = vsel %vm290, %v337, 0
    %503 = vmatprep.subr.bf16.mxu0 0
    %504 = vmatpush1.bf16.msra.mxu0 0
    %505 = vmatprep.subr.bf16.mxu0 0
    %506 = vmatpush1.bf16.msra.mxu0 0
    %507 = vmatprep.subr.bf16.mxu0 0
    %508 = vmatpush1.bf16.msra.mxu0 0
    %509 = vmatprep.subr.bf16.mxu0 0
    %510 = vmatpush1.bf16.msra.mxu0 0
    %511 = vmatprep.subr.bf16.mxu0 0
    %512 = vmatpush1.bf16.msra.mxu0 0
    %513 = vmatprep.subr.bf16.mxu0 0
    %514 = vmatpush1.bf16.msra.mxu0 0
    %515 = vmatprep.subr.bf16.mxu0 0
    %516 = vmatpush1.bf16.msra.mxu0 0
    %517 = vmatprep.subr.bf16.mxu0 0
    %518 = vmatpush1.bf16.msra.mxu0 %v501
    %519 = vmatprep.subr.bf16.mxu0 0
    %520 = vmatpush2.bf16.msra.mxu0 0
    %521 = vmatprep.subr.bf16.mxu0 0
    %522 = vmatpush2.bf16.msra.mxu0 0
    %523 = vmatprep.subr.bf16.mxu0 0
    %524 = vmatpush2.bf16.msra.mxu0 0
    %525 = vmatprep.subr.bf16.mxu0 0
    %526 = vmatpush2.bf16.msra.mxu0 0
    %527 = vmatprep.subr.bf16.mxu0 0
    %528 = vmatpush2.bf16.msra.mxu0 0
    %529 = vmatprep.subr.bf16.mxu0 0
    %530 = vmatpush2.bf16.msra.mxu0 0
    %531 = vmatprep.subr.bf16.mxu0 0
    %532 = vmatpush2.bf16.msra.mxu0 0
    %533 = vmatprep.subr.bf16.mxu0 0
    %534 = vmatpush2.bf16.msra.mxu0 0
    %535 = vmatprep.mubr.bf16.mxu0 0
    %536 = vmatmul.mubr.bf16.gmra.mxu0 %v498
    %v537 = vpop.f32.mrf.mxu0
    %v538 = vadd.f32 %v492, %v537
    %v539 = vpop.f32.mrf.mxu0
    %v540 = vpop.f32.mrf.mxu0
    %v541 = vpop.f32.mrf.mxu0
    %542 = vdwg.mxu0
    %543 = vrot.lane.b32.xlu0 %v221, 112
    %v544 = vpop.permute.xlu0 %543
    %545 = vrot.lane.b32.xlu0 %v222, 80
    %v546 = vpop.permute.xlu0 %545
    %v548 = vsel %vm227, %v544, 0
    %v551 = vsel %vm227, %v546, 0
    %553 = vmatprep.subr.bf16.mxu0 0
    %554 = vmatpush1.bf16.xpose.msra.mxu0 0
    %555 = vmatprep.subr.bf16.mxu0 0
    %556 = vmatpush1.bf16.xpose.msra.mxu0 0
    %557 = vmatprep.subr.bf16.mxu0 0
    %558 = vmatpush1.bf16.xpose.msra.mxu0 0
    %559 = vmatprep.subr.bf16.mxu0 0
    %560 = vmatpush1.bf16.xpose.msra.mxu0 0
    %561 = vmatprep.subr.bf16.mxu0 0
    %562 = vmatpush1.bf16.xpose.msra.mxu0 0
    %563 = vmatprep.subr.bf16.mxu0 0
    %564 = vmatpush1.bf16.xpose.msra.mxu0 0
    %565 = vmatprep.subr.bf16.mxu0 0
    %566 = vmatpush1.bf16.xpose.msra.mxu0 0
    %567 = vmatprep.subr.bf16.mxu0 0
    %568 = vmatpush1.bf16.xpose.msra.mxu0 %v551
    %569 = vmatprep.subr.bf16.mxu0 0
    %570 = vmatpush2.bf16.xpose.msra.mxu0 0
    %571 = vmatprep.subr.bf16.mxu0 0
    %572 = vmatpush2.bf16.xpose.msra.mxu0 0
    %573 = vmatprep.subr.bf16.mxu0 0
    %574 = vmatpush2.bf16.xpose.msra.mxu0 0
    %575 = vmatprep.subr.bf16.mxu0 0
    %576 = vmatpush2.bf16.xpose.msra.mxu0 0
    %577 = vmatprep.subr.bf16.mxu0 0
    %578 = vmatpush2.bf16.xpose.msra.mxu0 0
    %579 = vmatprep.subr.bf16.mxu0 0
    %580 = vmatpush2.bf16.xpose.msra.mxu0 0
    %581 = vmatprep.subr.bf16.mxu0 0
    %582 = vmatpush2.bf16.xpose.msra.mxu0 0
    %583 = vmatprep.subr.bf16.mxu0 0
    %584 = vmatpush2.bf16.xpose.msra.mxu0 0
    %585 = vmatprep.mubr.bf16.mxu0 0
    %586 = vmatmul.mubr.bf16.gmra.mxu0 %v548
    %v587 = vpop.f32.mrf.mxu0
    %v588 = vadd.f32 0.0, %v587
    %v589 = vpop.f32.mrf.mxu0
    %v590 = vpop.f32.mrf.mxu0
    %v591 = vpop.f32.mrf.mxu0
    %592 = vdwg.mxu0
    %v593 = vsel %vm227, %v588, -inf
    %594 = vmax.xlane.f32.xlu0 %v593
    %v595 = vpop.xlane.xlu0 %594
    %v596 = vsub.f32 %v588, %v595
    %v597 = vmul.f32 %v596, 1.442695
    %v598 = vpow.pop %v597
    %v599 = vsel %vm227, %v598, 0.0
    %600 = vadd.xlane.f32.xlu0 %v599
    %v601 = vpop.xlane.xlu0 %600
    %v602 = vpack.c.bf16 %v598, %v598
    %603 = vrot.lane.b32.xlu0 %v223, 48
    %v604 = vpop.permute.xlu0 %603
    %v606 = vsel %vm227, %v602, 0
    %v609 = vsel %vm290, %v604, 0
    %611 = vmatprep.subr.bf16.mxu0 0
    %612 = vmatpush1.bf16.msra.mxu0 0
    %613 = vmatprep.subr.bf16.mxu0 0
    %614 = vmatpush1.bf16.msra.mxu0 0
    %615 = vmatprep.subr.bf16.mxu0 0
    %616 = vmatpush1.bf16.msra.mxu0 0
    %617 = vmatprep.subr.bf16.mxu0 0
    %618 = vmatpush1.bf16.msra.mxu0 0
    %619 = vmatprep.subr.bf16.mxu0 0
    %620 = vmatpush1.bf16.msra.mxu0 0
    %621 = vmatprep.subr.bf16.mxu0 0
    %622 = vmatpush1.bf16.msra.mxu0 0
    %623 = vmatprep.subr.bf16.mxu0 0
    %624 = vmatpush1.bf16.msra.mxu0 0
    %625 = vmatprep.subr.bf16.mxu0 0
    %626 = vmatpush1.bf16.msra.mxu0 %v609
    %627 = vmatprep.subr.bf16.mxu0 0
    %628 = vmatpush2.bf16.msra.mxu0 0
    %629 = vmatprep.subr.bf16.mxu0 0
    %630 = vmatpush2.bf16.msra.mxu0 0
    %631 = vmatprep.subr.bf16.mxu0 0
    %632 = vmatpush2.bf16.msra.mxu0 0
    %633 = vmatprep.subr.bf16.mxu0 0
    %634 = vmatpush2.bf16.msra.mxu0 0
    %635 = vmatprep.subr.bf16.mxu0 0
    %636 = vmatpush2.bf16.msra.mxu0 0
    %637 = vmatprep.subr.bf16.mxu0 0
    %638 = vmatpush2.bf16.msra.mxu0 0
    %639 = vmatprep.subr.bf16.mxu0 0
    %640 = vmatpush2.bf16.msra.mxu0 0
    %641 = vmatprep.subr.bf16.mxu0 0
    %642 = vmatpush2.bf16.msra.mxu0 0
    %643 = vmatprep.mubr.bf16.mxu0 0
    %644 = vmatmul.mubr.bf16.gmra.mxu0 %v606
    %v645 = vpop.f32.mrf.mxu0
    %v646 = vadd.f32 0.0, %v645
    %v647 = vpop.f32.mrf.mxu0
    %v648 = vpop.f32.mrf.mxu0
    %v649 = vpop.f32.mrf.mxu0
    %650 = vdwg.mxu0
    %v651 = vrcp.pop %v601
    %v652 = vmul.f32 %v646, %v651
    %v653 = vpack.c.bf16 %v652, %v652
    %v654 = vld [vmem:[#allocation5 + $0x8] sm:$0xf]
    %v656 = vsel %vm227, %v653, 0
    %v659 = vsel %vm290, %v654, 0
    %661 = vmatprep.subr.bf16.mxu0 0
    %662 = vmatpush1.bf16.msra.mxu0 0
    %663 = vmatprep.subr.bf16.mxu0 0
    %664 = vmatpush1.bf16.msra.mxu0 0
    %665 = vmatprep.subr.bf16.mxu0 0
    %666 = vmatpush1.bf16.msra.mxu0 0
    %667 = vmatprep.subr.bf16.mxu0 0
    %668 = vmatpush1.bf16.msra.mxu0 0
    %669 = vmatprep.subr.bf16.mxu0 0
    %670 = vmatpush1.bf16.msra.mxu0 0
    %671 = vmatprep.subr.bf16.mxu0 0
    %672 = vmatpush1.bf16.msra.mxu0 0
    %673 = vmatprep.subr.bf16.mxu0 0
    %674 = vmatpush1.bf16.msra.mxu0 0
    %675 = vmatprep.subr.bf16.mxu0 0
    %676 = vmatpush1.bf16.msra.mxu0 %v659
    %677 = vmatprep.subr.bf16.mxu0 0
    %678 = vmatpush2.bf16.msra.mxu0 0
    %679 = vmatprep.subr.bf16.mxu0 0
    %680 = vmatpush2.bf16.msra.mxu0 0
    %681 = vmatprep.subr.bf16.mxu0 0
    %682 = vmatpush2.bf16.msra.mxu0 0
    %683 = vmatprep.subr.bf16.mxu0 0
    %684 = vmatpush2.bf16.msra.mxu0 0
    %685 = vmatprep.subr.bf16.mxu0 0
    %686 = vmatpush2.bf16.msra.mxu0 0
    %687 = vmatprep.subr.bf16.mxu0 0
    %688 = vmatpush2.bf16.msra.mxu0 0
    %689 = vmatprep.subr.bf16.mxu0 0
    %690 = vmatpush2.bf16.msra.mxu0 0
    %691 = vmatprep.subr.bf16.mxu0 0
    %692 = vmatpush2.bf16.msra.mxu0 0
    %693 = vmatprep.mubr.bf16.mxu0 0
    %694 = vmatmul.mubr.bf16.gmra.mxu0 %v656
    %v695 = vpop.f32.mrf.mxu0
    %v696 = vadd.f32 0.0, %v695
    %v697 = vpop.f32.mrf.mxu0
    %v698 = vpop.f32.mrf.mxu0
    %v699 = vpop.f32.mrf.mxu0
    %700 = vdwg.mxu0
    %v701 = vadd.f32 %v538, %v696
    %702 = vrot.lane.b32.xlu0 %v221, 104
    %v703 = vpop.permute.xlu0 %702
    %704 = vrot.lane.b32.xlu0 %v222, 72
    %v705 = vpop.permute.xlu0 %704
    %v707 = vsel %vm227, %v703, 0
    %v710 = vsel %vm227, %v705, 0
    %712 = vmatprep.subr.bf16.mxu0 0
    %713 = vmatpush1.bf16.xpose.msra.mxu0 0
    %714 = vmatprep.subr.bf16.mxu0 0
    %715 = vmatpush1.bf16.xpose.msra.mxu0 0
    %716 = vmatprep.subr.bf16.mxu0 0
    %717 = vmatpush1.bf16.xpose.msra.mxu0 0
    %718 = vmatprep.subr.bf16.mxu0 0
    %719 = vmatpush1.bf16.xpose.msra.mxu0 0
    %720 = vmatprep.subr.bf16.mxu0 0
    %721 = vmatpush1.bf16.xpose.msra.mxu0 0
    %722 = vmatprep.subr.bf16.mxu0 0
    %723 = vmatpush1.bf16.xpose.msra.mxu0 0
    %724 = vmatprep.subr.bf16.mxu0 0
    %725 = vmatpush1.bf16.xpose.msra.mxu0 0
    %726 = vmatprep.subr.bf16.mxu0 0
    %727 = vmatpush1.bf16.xpose.msra.mxu0 %v710
    %728 = vmatprep.subr.bf16.mxu0 0
    %729 = vmatpush2.bf16.xpose.msra.mxu0 0
    %730 = vmatprep.subr.bf16.mxu0 0
    %731 = vmatpush2.bf16.xpose.msra.mxu0 0
    %732 = vmatprep.subr.bf16.mxu0 0
    %733 = vmatpush2.bf16.xpose.msra.mxu0 0
    %734 = vmatprep.subr.bf16.mxu0 0
    %735 = vmatpush2.bf16.xpose.msra.mxu0 0
    %736 = vmatprep.subr.bf16.mxu0 0
    %737 = vmatpush2.bf16.xpose.msra.mxu0 0
    %738 = vmatprep.subr.bf16.mxu0 0
    %739 = vmatpush2.bf16.xpose.msra.mxu0 0
    %740 = vmatprep.subr.bf16.mxu0 0
    %741 = vmatpush2.bf16.xpose.msra.mxu0 0
    %742 = vmatprep.subr.bf16.mxu0 0
    %743 = vmatpush2.bf16.xpose.msra.mxu0 0
    %744 = vmatprep.mubr.bf16.mxu0 0
    %745 = vmatmul.mubr.bf16.gmra.mxu0 %v707
    %v746 = vpop.f32.mrf.mxu0
    %v747 = vadd.f32 0.0, %v746
    %v748 = vpop.f32.mrf.mxu0
    %v749 = vpop.f32.mrf.mxu0
    %v750 = vpop.f32.mrf.mxu0
    %751 = vdwg.mxu0
    %v752 = vsel %vm227, %v747, -inf
    %753 = vmax.xlane.f32.xlu0 %v752
    %v754 = vpop.xlane.xlu0 %753
    %v755 = vsub.f32 %v747, %v754
    %v756 = vmul.f32 %v755, 1.442695
    %v757 = vpow.pop %v756
    %v758 = vsel %vm227, %v757, 0.0
    %759 = vadd.xlane.f32.xlu0 %v758
    %v760 = vpop.xlane.xlu0 %759
    %v761 = vpack.c.bf16 %v757, %v757
    %762 = vrot.lane.b32.xlu0 %v223, 40
    %v763 = vpop.permute.xlu0 %762
    %v765 = vsel %vm227, %v761, 0
    %v768 = vsel %vm290, %v763, 0
    %770 = vmatprep.subr.bf16.mxu0 0
    %771 = vmatpush1.bf16.msra.mxu0 0
    %772 = vmatprep.subr.bf16.mxu0 0
    %773 = vmatpush1.bf16.msra.mxu0 0
    %774 = vmatprep.subr.bf16.mxu0 0
    %775 = vmatpush1.bf16.msra.mxu0 0
    %776 = vmatprep.subr.bf16.mxu0 0
    %777 = vmatpush1.bf16.msra.mxu0 0
    %778 = vmatprep.subr.bf16.mxu0 0
    %779 = vmatpush1.bf16.msra.mxu0 0
    %780 = vmatprep.subr.bf16.mxu0 0
    %781 = vmatpush1.bf16.msra.mxu0 0
    %782 = vmatprep.subr.bf16.mxu0 0
    %783 = vmatpush1.bf16.msra.mxu0 0
    %784 = vmatprep.subr.bf16.mxu0 0
    %785 = vmatpush1.bf16.msra.mxu0 %v768
    %786 = vmatprep.subr.bf16.mxu0 0
    %787 = vmatpush2.bf16.msra.mxu0 0
    %788 = vmatprep.subr.bf16.mxu0 0
    %789 = vmatpush2.bf16.msra.mxu0 0
    %790 = vmatprep.subr.bf16.mxu0 0
    %791 = vmatpush2.bf16.msra.mxu0 0
    %792 = vmatprep.subr.bf16.mxu0 0
    %793 = vmatpush2.bf16.msra.mxu0 0
    %794 = vmatprep.subr.bf16.mxu0 0
    %795 = vmatpush2.bf16.msra.mxu0 0
    %796 = vmatprep.subr.bf16.mxu0 0
    %797 = vmatpush2.bf16.msra.mxu0 0
    %798 = vmatprep.subr.bf16.mxu0 0
    %799 = vmatpush2.bf16.msra.mxu0 0
    %800 = vmatprep.subr.bf16.mxu0 0
    %801 = vmatpush2.bf16.msra.mxu0 0
    %802 = vmatprep.mubr.bf16.mxu0 0
    %803 = vmatmul.mubr.bf16.gmra.mxu0 %v765
    %v804 = vpop.f32.mrf.mxu0
    %v805 = vadd.f32 0.0, %v804
    %v806 = vpop.f32.mrf.mxu0
    %v807 = vpop.f32.mrf.mxu0
    %v808 = vpop.f32.mrf.mxu0
    %809 = vdwg.mxu0
    %v810 = vrcp.pop %v760
    %v811 = vmul.f32 %v805, %v810
    %v812 = vpack.c.bf16 %v811, %v811
    %v813 = vld [vmem:[#allocation5 + $0xc] sm:$0xf]
    %v815 = vsel %vm227, %v812, 0
    %v818 = vsel %vm290, %v813, 0
    %820 = vmatprep.subr.bf16.mxu0 0
    %821 = vmatpush1.bf16.msra.mxu0 0
    %822 = vmatprep.subr.bf16.mxu0 0
    %823 = vmatpush1.bf16.msra.mxu0 0
    %824 = vmatprep.subr.bf16.mxu0 0
    %825 = vmatpush1.bf16.msra.mxu0 0
    %826 = vmatprep.subr.bf16.mxu0 0
    %827 = vmatpush1.bf16.msra.mxu0 0
    %828 = vmatprep.subr.bf16.mxu0 0
    %829 = vmatpush1.bf16.msra.mxu0 0
    %830 = vmatprep.subr.bf16.mxu0 0
    %831 = vmatpush1.bf16.msra.mxu0 0
    %832 = vmatprep.subr.bf16.mxu0 0
    %833 = vmatpush1.bf16.msra.mxu0 0
    %834 = vmatprep.subr.bf16.mxu0 0
    %835 = vmatpush1.bf16.msra.mxu0 %v818
    %836 = vmatprep.subr.bf16.mxu0 0
    %837 = vmatpush2.bf16.msra.mxu0 0
    %838 = vmatprep.subr.bf16.mxu0 0
    %839 = vmatpush2.bf16.msra.mxu0 0
    %840 = vmatprep.subr.bf16.mxu0 0
    %841 = vmatpush2.bf16.msra.mxu0 0
    %842 = vmatprep.subr.bf16.mxu0 0
    %843 = vmatpush2.bf16.msra.mxu0 0
    %844 = vmatprep.subr.bf16.mxu0 0
    %845 = vmatpush2.bf16.msra.mxu0 0
    %846 = vmatprep.subr.bf16.mxu0 0
    %847 = vmatpush2.bf16.msra.mxu0 0
    %848 = vmatprep.subr.bf16.mxu0 0
    %849 = vmatpush2.bf16.msra.mxu0 0
    %850 = vmatprep.subr.bf16.mxu0 0
    %851 = vmatpush2.bf16.msra.mxu0 0
    %852 = vmatprep.mubr.bf16.mxu0 0
    %853 = vmatmul.mubr.bf16.gmra.mxu0 %v815
    %v854 = vpop.f32.mrf.mxu0
    %v855 = vadd.f32 0.0, %v854
    %v856 = vpop.f32.mrf.mxu0
    %v857 = vpop.f32.mrf.mxu0
    %v858 = vpop.f32.mrf.mxu0
    %859 = vdwg.mxu0
    %v860 = vadd.f32 %v701, %v855
    %v861 = vpack.c.bf16 %v197, %v197
    %v862 = vpack.c.bf16 %v208, %v208
    %v863 = vpack.c.bf16 %v219, %v219
    %865 = vrot.lane.b32.xlu0 %v862, 96
    %v866 = vpop.permute.xlu0 %865
    %v868 = vsel %vm227, %v861, 0
    %v871 = vsel %vm227, %v866, 0
    %873 = vmatprep.subr.bf16.mxu0 0
    %874 = vmatpush1.bf16.xpose.msra.mxu0 0
    %875 = vmatprep.subr.bf16.mxu0 0
    %876 = vmatpush1.bf16.xpose.msra.mxu0 0
    %877 = vmatprep.subr.bf16.mxu0 0
    %878 = vmatpush1.bf16.xpose.msra.mxu0 0
    %879 = vmatprep.subr.bf16.mxu0 0
    %880 = vmatpush1.bf16.xpose.msra.mxu0 0
    %881 = vmatprep.subr.bf16.mxu0 0
    %882 = vmatpush1.bf16.xpose.msra.mxu0 0
    %883 = vmatprep.subr.bf16.mxu0 0
    %884 = vmatpush1.bf16.xpose.msra.mxu0 0
    %885 = vmatprep.subr.bf16.mxu0 0
    %886 = vmatpush1.bf16.xpose.msra.mxu0 0
    %887 = vmatprep.subr.bf16.mxu0 0
    %888 = vmatpush1.bf16.xpose.msra.mxu0 %v871
    %889 = vmatprep.subr.bf16.mxu0 0
    %890 = vmatpush2.bf16.xpose.msra.mxu0 0
    %891 = vmatprep.subr.bf16.mxu0 0
    %892 = vmatpush2.bf16.xpose.msra.mxu0 0
    %893 = vmatprep.subr.bf16.mxu0 0
    %894 = vmatpush2.bf16.xpose.msra.mxu0 0
    %895 = vmatprep.subr.bf16.mxu0 0
    %896 = vmatpush2.bf16.xpose.msra.mxu0 0
    %897 = vmatprep.subr.bf16.mxu0 0
    %898 = vmatpush2.bf16.xpose.msra.mxu0 0
    %899 = vmatprep.subr.bf16.mxu0 0
    %900 = vmatpush2.bf16.xpose.msra.mxu0 0
    %901 = vmatprep.subr.bf16.mxu0 0
    %902 = vmatpush2.bf16.xpose.msra.mxu0 0
    %903 = vmatprep.subr.bf16.mxu0 0
    %904 = vmatpush2.bf16.xpose.msra.mxu0 0
    %905 = vmatprep.mubr.bf16.mxu0 0
    %906 = vmatmul.mubr.bf16.gmra.mxu0 %v868
    %v907 = vpop.f32.mrf.mxu0
    %v908 = vadd.f32 0.0, %v907
    %v909 = vpop.f32.mrf.mxu0
    %v910 = vpop.f32.mrf.mxu0
    %v911 = vpop.f32.mrf.mxu0
    %912 = vdwg.mxu0
    %v913 = vsel %vm227, %v908, -inf
    %914 = vmax.xlane.f32.xlu0 %v913
    %v915 = vpop.xlane.xlu0 %914
    %v916 = vsub.f32 %v908, %v915
    %v917 = vmul.f32 %v916, 1.442695
    %v918 = vpow.pop %v917
    %v919 = vsel %vm227, %v918, 0.0
    %920 = vadd.xlane.f32.xlu0 %v919
    %v921 = vpop.xlane.xlu0 %920
    %v922 = vpack.c.bf16 %v918, %v918
    %924 = vrot.lane.b32.xlu0 %v863, 64
    %v925 = vpop.permute.xlu0 %924
    %v927 = vsel %vm227, %v922, 0
    %v930 = vsel %vm290, %v925, 0
    %932 = vmatprep.subr.bf16.mxu0 0
    %933 = vmatpush1.bf16.msra.mxu0 0
    %934 = vmatprep.subr.bf16.mxu0 0
    %935 = vmatpush1.bf16.msra.mxu0 0
    %936 = vmatprep.subr.bf16.mxu0 0
    %937 = vmatpush1.bf16.msra.mxu0 0
    %938 = vmatprep.subr.bf16.mxu0 0
    %939 = vmatpush1.bf16.msra.mxu0 0
    %940 = vmatprep.subr.bf16.mxu0 0
    %941 = vmatpush1.bf16.msra.mxu0 0
    %942 = vmatprep.subr.bf16.mxu0 0
    %943 = vmatpush1.bf16.msra.mxu0 0
    %944 = vmatprep.subr.bf16.mxu0 0
    %945 = vmatpush1.bf16.msra.mxu0 0
    %946 = vmatprep.subr.bf16.mxu0 0
    %947 = vmatpush1.bf16.msra.mxu0 %v930
    %948 = vmatprep.subr.bf16.mxu0 0
    %949 = vmatpush2.bf16.msra.mxu0 0
    %950 = vmatprep.subr.bf16.mxu0 0
    %951 = vmatpush2.bf16.msra.mxu0 0
    %952 = vmatprep.subr.bf16.mxu0 0
    %953 = vmatpush2.bf16.msra.mxu0 0
    %954 = vmatprep.subr.bf16.mxu0 0
    %955 = vmatpush2.bf16.msra.mxu0 0
    %956 = vmatprep.subr.bf16.mxu0 0
    %957 = vmatpush2.bf16.msra.mxu0 0
    %958 = vmatprep.subr.bf16.mxu0 0
    %959 = vmatpush2.bf16.msra.mxu0 0
    %960 = vmatprep.subr.bf16.mxu0 0
    %961 = vmatpush2.bf16.msra.mxu0 0
    %962 = vmatprep.subr.bf16.mxu0 0
    %963 = vmatpush2.bf16.msra.mxu0 0
    %964 = vmatprep.mubr.bf16.mxu0 0
    %965 = vmatmul.mubr.bf16.gmra.mxu0 %v927
    %v966 = vpop.f32.mrf.mxu0
    %v967 = vadd.f32 0.0, %v966
    %v968 = vpop.f32.mrf.mxu0
    %v969 = vpop.f32.mrf.mxu0
    %v970 = vpop.f32.mrf.mxu0
    %971 = vdwg.mxu0
    %v972 = vrcp.pop %v921
    %v973 = vmul.f32 %v967, %v972
    %v974 = vpack.c.bf16 %v973, %v973
    %976 = vrot.lane.b32.xlu0 %v861, 120
    %v977 = vpop.permute.xlu0 %976
    %978 = vrot.lane.b32.xlu0 %v862, 88
    %v979 = vpop.permute.xlu0 %978
    %v981 = vsel %vm227, %v977, 0
    %v984 = vsel %vm227, %v979, 0
    %986 = vmatprep.subr.bf16.mxu0 0
    %987 = vmatpush1.bf16.xpose.msra.mxu0 0
    %988 = vmatprep.subr.bf16.mxu0 0
    %989 = vmatpush1.bf16.xpose.msra.mxu0 0
    %990 = vmatprep.subr.bf16.mxu0 0
    %991 = vmatpush1.bf16.xpose.msra.mxu0 0
    %992 = vmatprep.subr.bf16.mxu0 0
    %993 = vmatpush1.bf16.xpose.msra.mxu0 0
    %994 = vmatprep.subr.bf16.mxu0 0
    %995 = vmatpush1.bf16.xpose.msra.mxu0 0
    %996 = vmatprep.subr.bf16.mxu0 0
    %997 = vmatpush1.bf16.xpose.msra.mxu0 0
    %998 = vmatprep.subr.bf16.mxu0 0
    %999 = vmatpush1.bf16.xpose.msra.mxu0 0
    %1000 = vmatprep.subr.bf16.mxu0 0
    %1001 = vmatpush1.bf16.xpose.msra.mxu0 %v984
    %1002 = vmatprep.subr.bf16.mxu0 0
    %1003 = vmatpush2.bf16.xpose.msra.mxu0 0
    %1004 = vmatprep.subr.bf16.mxu0 0
    %1005 = vmatpush2.bf16.xpose.msra.mxu0 0
    %1006 = vmatprep.subr.bf16.mxu0 0
    %1007 = vmatpush2.bf16.xpose.msra.mxu0 0
    %1008 = vmatprep.subr.bf16.mxu0 0
    %1009 = vmatpush2.bf16.xpose.msra.mxu0 0
    %1010 = vmatprep.subr.bf16.mxu0 0
    %1011 = vmatpush2.bf16.xpose.msra.mxu0 0
    %1012 = vmatprep.subr.bf16.mxu0 0
    %1013 = vmatpush2.bf16.xpose.msra.mxu0 0
    %1014 = vmatprep.subr.bf16.mxu0 0
    %1015 = vmatpush2.bf16.xpose.msra.mxu0 0
    %1016 = vmatprep.subr.bf16.mxu0 0
    %1017 = vmatpush2.bf16.xpose.msra.mxu0 0
    %1018 = vmatprep.mubr.bf16.mxu0 0
    %1019 = vmatmul.mubr.bf16.gmra.mxu0 %v981
    %v1020 = vpop.f32.mrf.mxu0
    %v1021 = vadd.f32 0.0, %v1020
    %v1022 = vpop.f32.mrf.mxu0
    %v1023 = vpop.f32.mrf.mxu0
    %v1024 = vpop.f32.mrf.mxu0
    %1025 = vdwg.mxu0
    %v1026 = vsel %vm227, %v1021, -inf
    %1027 = vmax.xlane.f32.xlu0 %v1026
    %v1028 = vpop.xlane.xlu0 %1027
    %v1029 = vsub.f32 %v1021, %v1028
    %v1030 = vmul.f32 %v1029, 1.442695
    %v1031 = vpow.pop %v1030
    %v1032 = vsel %vm227, %v1031, 0.0
    %1033 = vadd.xlane.f32.xlu0 %v1032
    %v1034 = vpop.xlane.xlu0 %1033
    %v1035 = vpack.c.bf16 %v1031, %v1031
    %1036 = vrot.lane.b32.xlu0 %v863, 56
    %v1037 = vpop.permute.xlu0 %1036
    %v1039 = vsel %vm227, %v1035, 0
    %v1042 = vsel %vm290, %v1037, 0
    %1044 = vmatprep.subr.bf16.mxu0 0
    %1045 = vmatpush1.bf16.msra.mxu0 0
    %1046 = vmatprep.subr.bf16.mxu0 0
    %1047 = vmatpush1.bf16.msra.mxu0 0
    %1048 = vmatprep.subr.bf16.mxu0 0
    %1049 = vmatpush1.bf16.msra.mxu0 0
    %1050 = vmatprep.subr.bf16.mxu0 0
    %1051 = vmatpush1.bf16.msra.mxu0 0
    %1052 = vmatprep.subr.bf16.mxu0 0
    %1053 = vmatpush1.bf16.msra.mxu0 0
    %1054 = vmatprep.subr.bf16.mxu0 0
    %1055 = vmatpush1.bf16.msra.mxu0 0
    %1056 = vmatprep.subr.bf16.mxu0 0
    %1057 = vmatpush1.bf16.msra.mxu0 0
    %1058 = vmatprep.subr.bf16.mxu0 0
    %1059 = vmatpush1.bf16.msra.mxu0 %v1042
    %1060 = vmatprep.subr.bf16.mxu0 0
    %1061 = vmatpush2.bf16.msra.mxu0 0
    %1062 = vmatprep.subr.bf16.mxu0 0
    %1063 = vmatpush2.bf16.msra.mxu0 0
    %1064 = vmatprep.subr.bf16.mxu0 0
    %1065 = vmatpush2.bf16.msra.mxu0 0
    %1066 = vmatprep.subr.bf16.mxu0 0
    %1067 = vmatpush2.bf16.msra.mxu0 0
    %1068 = vmatprep.subr.bf16.mxu0 0
    %1069 = vmatpush2.bf16.msra.mxu0 0
    %1070 = vmatprep.subr.bf16.mxu0 0
    %1071 = vmatpush2.bf16.msra.mxu0 0
    %1072 = vmatprep.subr.bf16.mxu0 0
    %1073 = vmatpush2.bf16.msra.mxu0 0
    %1074 = vmatprep.subr.bf16.mxu0 0
    %1075 = vmatpush2.bf16.msra.mxu0 0
    %1076 = vmatprep.mubr.bf16.mxu0 0
    %1077 = vmatmul.mubr.bf16.gmra.mxu0 %v1039
    %v1078 = vpop.f32.mrf.mxu0
    %v1079 = vadd.f32 0.0, %v1078
    %v1080 = vpop.f32.mrf.mxu0
    %v1081 = vpop.f32.mrf.mxu0
    %v1082 = vpop.f32.mrf.mxu0
    %1083 = vdwg.mxu0
    %v1084 = vrcp.pop %v1034
    %v1085 = vmul.f32 %v1079, %v1084
    %v1086 = vpack.c.bf16 %v1085, %v1085
    %v1088 = vsel %vm227, %v1086, 0
    %1090 = vmatprep.subr.bf16.mxu0 0
    %1091 = vmatpush1.bf16.msra.mxu0 0
    %1092 = vmatprep.subr.bf16.mxu0 0
    %1093 = vmatpush1.bf16.msra.mxu0 0
    %1094 = vmatprep.subr.bf16.mxu0 0
    %1095 = vmatpush1.bf16.msra.mxu0 0
    %1096 = vmatprep.subr.bf16.mxu0 0
    %1097 = vmatpush1.bf16.msra.mxu0 0
    %1098 = vmatprep.subr.bf16.mxu0 0
    %1099 = vmatpush1.bf16.msra.mxu0 0
    %1100 = vmatprep.subr.bf16.mxu0 0
    %1101 = vmatpush1.bf16.msra.mxu0 0
    %1102 = vmatprep.subr.bf16.mxu0 0
    %1103 = vmatpush1.bf16.msra.mxu0 0
    %1104 = vmatprep.subr.bf16.mxu0 0
    %1105 = vmatpush1.bf16.msra.mxu0 %v455
    %1106 = vmatprep.subr.bf16.mxu0 0
    %1107 = vmatpush2.bf16.msra.mxu0 0
    %1108 = vmatprep.subr.bf16.mxu0 0
    %1109 = vmatpush2.bf16.msra.mxu0 0
    %1110 = vmatprep.subr.bf16.mxu0 0
    %1111 = vmatpush2.bf16.msra.mxu0 0
    %1112 = vmatprep.subr.bf16.mxu0 0
    %1113 = vmatpush2.bf16.msra.mxu0 0
    %1114 = vmatprep.subr.bf16.mxu0 0
    %1115 = vmatpush2.bf16.msra.mxu0 0
    %1116 = vmatprep.subr.bf16.mxu0 0
    %1117 = vmatpush2.bf16.msra.mxu0 0
    %1118 = vmatprep.subr.bf16.mxu0 0
    %1119 = vmatpush2.bf16.msra.mxu0 0
    %1120 = vmatprep.subr.bf16.mxu0 0
    %1121 = vmatpush2.bf16.msra.mxu0 0
    %1122 = vmatprep.mubr.bf16.mxu0 0
    %1123 = vmatmul.mubr.bf16.gmra.mxu0 %v1088
    %v1124 = vpop.f32.mrf.mxu0
    %v1125 = vadd.f32 0.0, %v1124
    %v1126 = vpop.f32.mrf.mxu0
    %v1127 = vpop.f32.mrf.mxu0
    %v1128 = vpop.f32.mrf.mxu0
    %1129 = vdwg.mxu0
    %v1131 = vsel %vm227, %v974, 0
    %1133 = vmatprep.subr.bf16.mxu0 0
    %1134 = vmatpush1.bf16.msra.mxu0 0
    %1135 = vmatprep.subr.bf16.mxu0 0
    %1136 = vmatpush1.bf16.msra.mxu0 0
    %1137 = vmatprep.subr.bf16.mxu0 0
    %1138 = vmatpush1.bf16.msra.mxu0 0
    %1139 = vmatprep.subr.bf16.mxu0 0
    %1140 = vmatpush1.bf16.msra.mxu0 0
    %1141 = vmatprep.subr.bf16.mxu0 0
    %1142 = vmatpush1.bf16.msra.mxu0 0
    %1143 = vmatprep.subr.bf16.mxu0 0
    %1144 = vmatpush1.bf16.msra.mxu0 0
    %1145 = vmatprep.subr.bf16.mxu0 0
    %1146 = vmatpush1.bf16.msra.mxu0 0
    %1147 = vmatprep.subr.bf16.mxu0 0
    %1148 = vmatpush1.bf16.msra.mxu0 %v501
    %1149 = vmatprep.subr.bf16.mxu0 0
    %1150 = vmatpush2.bf16.msra.mxu0 0
    %1151 = vmatprep.subr.bf16.mxu0 0
    %1152 = vmatpush2.bf16.msra.mxu0 0
    %1153 = vmatprep.subr.bf16.mxu0 0
    %1154 = vmatpush2.bf16.msra.mxu0 0
    %1155 = vmatprep.subr.bf16.mxu0 0
    %1156 = vmatpush2.bf16.msra.mxu0 0
    %1157 = vmatprep.subr.bf16.mxu0 0
    %1158 = vmatpush2.bf16.msra.mxu0 0
    %1159 = vmatprep.subr.bf16.mxu0 0
    %1160 = vmatpush2.bf16.msra.mxu0 0
    %1161 = vmatprep.subr.bf16.mxu0 0
    %1162 = vmatpush2.bf16.msra.mxu0 0
    %1163 = vmatprep.subr.bf16.mxu0 0
    %1164 = vmatpush2.bf16.msra.mxu0 0
    %1165 = vmatprep.mubr.bf16.mxu0 0
    %1166 = vmatmul.mubr.bf16.gmra.mxu0 %v1131
    %v1167 = vpop.f32.mrf.mxu0
    %v1168 = vadd.f32 %v1125, %v1167
    %v1169 = vpop.f32.mrf.mxu0
    %v1170 = vpop.f32.mrf.mxu0
    %v1171 = vpop.f32.mrf.mxu0
    %1172 = vdwg.mxu0
    %1173 = vrot.lane.b32.xlu0 %v861, 112
    %v1174 = vpop.permute.xlu0 %1173
    %1175 = vrot.lane.b32.xlu0 %v862, 80
    %v1176 = vpop.permute.xlu0 %1175
    %v1178 = vsel %vm227, %v1174, 0
    %v1181 = vsel %vm227, %v1176, 0
    %1183 = vmatprep.subr.bf16.mxu0 0
    %1184 = vmatpush1.bf16.xpose.msra.mxu0 0
    %1185 = vmatprep.subr.bf16.mxu0 0
    %1186 = vmatpush1.bf16.xpose.msra.mxu0 0
    %1187 = vmatprep.subr.bf16.mxu0 0
    %1188 = vmatpush1.bf16.xpose.msra.mxu0 0
    %1189 = vmatprep.subr.bf16.mxu0 0
    %1190 = vmatpush1.bf16.xpose.msra.mxu0 0
    %1191 = vmatprep.subr.bf16.mxu0 0
    %1192 = vmatpush1.bf16.xpose.msra.mxu0 0
    %1193 = vmatprep.subr.bf16.mxu0 0
    %1194 = vmatpush1.bf16.xpose.msra.mxu0 0
    %1195 = vmatprep.subr.bf16.mxu0 0
    %1196 = vmatpush1.bf16.xpose.msra.mxu0 0
    %1197 = vmatprep.subr.bf16.mxu0 0
    %1198 = vmatpush1.bf16.xpose.msra.mxu0 %v1181
    %1199 = vmatprep.subr.bf16.mxu0 0
    %1200 = vmatpush2.bf16.xpose.msra.mxu0 0
    %1201 = vmatprep.subr.bf16.mxu0 0
    %1202 = vmatpush2.bf16.xpose.msra.mxu0 0
    %1203 = vmatprep.subr.bf16.mxu0 0
    %1204 = vmatpush2.bf16.xpose.msra.mxu0 0
    %1205 = vmatprep.subr.bf16.mxu0 0
    %1206 = vmatpush2.bf16.xpose.msra.mxu0 0
    %1207 = vmatprep.subr.bf16.mxu0 0
    %1208 = vmatpush2.bf16.xpose.msra.mxu0 0
    %1209 = vmatprep.subr.bf16.mxu0 0
    %1210 = vmatpush2.bf16.xpose.msra.mxu0 0
    %1211 = vmatprep.subr.bf16.mxu0 0
    %1212 = vmatpush2.bf16.xpose.msra.mxu0 0
    %1213 = vmatprep.subr.bf16.mxu0 0
    %1214 = vmatpush2.bf16.xpose.msra.mxu0 0
    %1215 = vmatprep.mubr.bf16.mxu0 0
    %1216 = vmatmul.mubr.bf16.gmra.mxu0 %v1178
    %v1217 = vpop.f32.mrf.mxu0
    %v1218 = vadd.f32 0.0, %v1217
    %v1219 = vpop.f32.mrf.mxu0
    %v1220 = vpop.f32.mrf.mxu0
    %v1221 = vpop.f32.mrf.mxu0
    %1222 = vdwg.mxu0
    %v1223 = vsel %vm227, %v1218, -inf
    %1224 = vmax.xlane.f32.xlu0 %v1223
    %v1225 = vpop.xlane.xlu0 %1224
    %v1226 = vsub.f32 %v1218, %v1225
    %v1227 = vmul.f32 %v1226, 1.442695
    %v1228 = vpow.pop %v1227
    %v1229 = vsel %vm227, %v1228, 0.0
    %1230 = vadd.xlane.f32.xlu0 %v1229
    %v1231 = vpop.xlane.xlu0 %1230
    %v1232 = vpack.c.bf16 %v1228, %v1228
    %1233 = vrot.lane.b32.xlu0 %v863, 48
    %v1234 = vpop.permute.xlu0 %1233
    %v1236 = vsel %vm227, %v1232, 0
    %v1239 = vsel %vm290, %v1234, 0
    %1241 = vmatprep.subr.bf16.mxu0 0
    %1242 = vmatpush1.bf16.msra.mxu0 0
    %1243 = vmatprep.subr.bf16.mxu0 0
    %1244 = vmatpush1.bf16.msra.mxu0 0
    %1245 = vmatprep.subr.bf16.mxu0 0
    %1246 = vmatpush1.bf16.msra.mxu0 0
    %1247 = vmatprep.subr.bf16.mxu0 0
    %1248 = vmatpush1.bf16.msra.mxu0 0
    %1249 = vmatprep.subr.bf16.mxu0 0
    %1250 = vmatpush1.bf16.msra.mxu0 0
    %1251 = vmatprep.subr.bf16.mxu0 0
    %1252 = vmatpush1.bf16.msra.mxu0 0
    %1253 = vmatprep.subr.bf16.mxu0 0
    %1254 = vmatpush1.bf16.msra.mxu0 0
    %1255 = vmatprep.subr.bf16.mxu0 0
    %1256 = vmatpush1.bf16.msra.mxu0 %v1239
    %1257 = vmatprep.subr.bf16.mxu0 0
    %1258 = vmatpush2.bf16.msra.mxu0 0
    %1259 = vmatprep.subr.bf16.mxu0 0
    %1260 = vmatpush2.bf16.msra.mxu0 0
    %1261 = vmatprep.subr.bf16.mxu0 0
    %1262 = vmatpush2.bf16.msra.mxu0 0
    %1263 = vmatprep.subr.bf16.mxu0 0
    %1264 = vmatpush2.bf16.msra.mxu0 0
    %1265 = vmatprep.subr.bf16.mxu0 0
    %1266 = vmatpush2.bf16.msra.mxu0 0
    %1267 = vmatprep.subr.bf16.mxu0 0
    %1268 = vmatpush2.bf16.msra.mxu0 0
    %1269 = vmatprep.subr.bf16.mxu0 0
    %1270 = vmatpush2.bf16.msra.mxu0 0
    %1271 = vmatprep.subr.bf16.mxu0 0
    %1272 = vmatpush2.bf16.msra.mxu0 0
    %1273 = vmatprep.mubr.bf16.mxu0 0
    %1274 = vmatmul.mubr.bf16.gmra.mxu0 %v1236
    %v1275 = vpop.f32.mrf.mxu0
    %v1276 = vadd.f32 0.0, %v1275
    %v1277 = vpop.f32.mrf.mxu0
    %v1278 = vpop.f32.mrf.mxu0
    %v1279 = vpop.f32.mrf.mxu0
    %1280 = vdwg.mxu0
    %v1281 = vrcp.pop %v1231
    %v1282 = vmul.f32 %v1276, %v1281
    %v1283 = vpack.c.bf16 %v1282, %v1282
    %v1285 = vsel %vm227, %v1283, 0
    %1287 = vmatprep.subr.bf16.mxu0 0
    %1288 = vmatpush1.bf16.msra.mxu0 0
    %1289 = vmatprep.subr.bf16.mxu0 0
    %1290 = vmatpush1.bf16.msra.mxu0 0
    %1291 = vmatprep.subr.bf16.mxu0 0
    %1292 = vmatpush1.bf16.msra.mxu0 0
    %1293 = vmatprep.subr.bf16.mxu0 0
    %1294 = vmatpush1.bf16.msra.mxu0 0
    %1295 = vmatprep.subr.bf16.mxu0 0
    %1296 = vmatpush1.bf16.msra.mxu0 0
    %1297 = vmatprep.subr.bf16.mxu0 0
    %1298 = vmatpush1.bf16.msra.mxu0 0
    %1299 = vmatprep.subr.bf16.mxu0 0
    %1300 = vmatpush1.bf16.msra.mxu0 0
    %1301 = vmatprep.subr.bf16.mxu0 0
    %1302 = vmatpush1.bf16.msra.mxu0 %v659
    %1303 = vmatprep.subr.bf16.mxu0 0
    %1304 = vmatpush2.bf16.msra.mxu0 0
    %1305 = vmatprep.subr.bf16.mxu0 0
    %1306 = vmatpush2.bf16.msra.mxu0 0
    %1307 = vmatprep.subr.bf16.mxu0 0
    %1308 = vmatpush2.bf16.msra.mxu0 0
    %1309 = vmatprep.subr.bf16.mxu0 0
    %1310 = vmatpush2.bf16.msra.mxu0 0
    %1311 = vmatprep.subr.bf16.mxu0 0
    %1312 = vmatpush2.bf16.msra.mxu0 0
    %1313 = vmatprep.subr.bf16.mxu0 0
    %1314 = vmatpush2.bf16.msra.mxu0 0
    %1315 = vmatprep.subr.bf16.mxu0 0
    %1316 = vmatpush2.bf16.msra.mxu0 0
    %1317 = vmatprep.subr.bf16.mxu0 0
    %1318 = vmatpush2.bf16.msra.mxu0 0
    %1319 = vmatprep.mubr.bf16.mxu0 0
    %1320 = vmatmul.mubr.bf16.gmra.mxu0 %v1285
    %v1321 = vpop.f32.mrf.mxu0
    %v1322 = vadd.f32 0.0, %v1321
    %v1323 = vpop.f32.mrf.mxu0
    %v1324 = vpop.f32.mrf.mxu0
    %v1325 = vpop.f32.mrf.mxu0
    %1326 = vdwg.mxu0
    %v1327 = vadd.f32 %v1168, %v1322
    %1328 = vrot.lane.b32.xlu0 %v861, 104
    %v1329 = vpop.permute.xlu0 %1328
    %1330 = vrot.lane.b32.xlu0 %v862, 72
    %v1331 = vpop.permute.xlu0 %1330
    %v1333 = vsel %vm227, %v1329, 0
    %v1336 = vsel %vm227, %v1331, 0
    %1338 = vmatprep.subr.bf16.mxu0 0
    %1339 = vmatpush1.bf16.xpose.msra.mxu0 0
    %1340 = vmatprep.subr.bf16.mxu0 0
    %1341 = vmatpush1.bf16.xpose.msra.mxu0 0
    %1342 = vmatprep.subr.bf16.mxu0 0
    %1343 = vmatpush1.bf16.xpose.msra.mxu0 0
    %1344 = vmatprep.subr.bf16.mxu0 0
    %1345 = vmatpush1.bf16.xpose.msra.mxu0 0
    %1346 = vmatprep.subr.bf16.mxu0 0
    %1347 = vmatpush1.bf16.xpose.msra.mxu0 0
    %1348 = vmatprep.subr.bf16.mxu0 0
    %1349 = vmatpush1.bf16.xpose.msra.mxu0 0
    %1350 = vmatprep.subr.bf16.mxu0 0
    %1351 = vmatpush1.bf16.xpose.msra.mxu0 0
    %1352 = vmatprep.subr.bf16.mxu0 0
    %1353 = vmatpush1.bf16.xpose.msra.mxu0 %v1336
    %1354 = vmatprep.subr.bf16.mxu0 0
    %1355 = vmatpush2.bf16.xpose.msra.mxu0 0
    %1356 = vmatprep.subr.bf16.mxu0 0
    %1357 = vmatpush2.bf16.xpose.msra.mxu0 0
    %1358 = vmatprep.subr.bf16.mxu0 0
    %1359 = vmatpush2.bf16.xpose.msra.mxu0 0
    %1360 = vmatprep.subr.bf16.mxu0 0
    %1361 = vmatpush2.bf16.xpose.msra.mxu0 0
    %1362 = vmatprep.subr.bf16.mxu0 0
    %1363 = vmatpush2.bf16.xpose.msra.mxu0 0
    %1364 = vmatprep.subr.bf16.mxu0 0
    %1365 = vmatpush2.bf16.xpose.msra.mxu0 0
    %1366 = vmatprep.subr.bf16.mxu0 0
    %1367 = vmatpush2.bf16.xpose.msra.mxu0 0
    %1368 = vmatprep.subr.bf16.mxu0 0
    %1369 = vmatpush2.bf16.xpose.msra.mxu0 0
    %1370 = vmatprep.mubr.bf16.mxu0 0
    %1371 = vmatmul.mubr.bf16.gmra.mxu0 %v1333
    %v1372 = vpop.f32.mrf.mxu0
    %v1373 = vadd.f32 0.0, %v1372
    %v1374 = vpop.f32.mrf.mxu0
    %v1375 = vpop.f32.mrf.mxu0
    %v1376 = vpop.f32.mrf.mxu0
    %1377 = vdwg.mxu0
    %v1378 = vsel %vm227, %v1373, -inf
    %1379 = vmax.xlane.f32.xlu0 %v1378
    %v1380 = vpop.xlane.xlu0 %1379
    %v1381 = vsub.f32 %v1373, %v1380
    %v1382 = vmul.f32 %v1381, 1.442695
    %v1383 = vpow.pop %v1382
    %v1384 = vsel %vm227, %v1383, 0.0
    %1385 = vadd.xlane.f32.xlu0 %v1384
    %v1386 = vpop.xlane.xlu0 %1385
    %v1387 = vpack.c.bf16 %v1383, %v1383
    %1388 = vrot.lane.b32.xlu0 %v863, 40
    %v1389 = vpop.permute.xlu0 %1388
    %v1391 = vsel %vm227, %v1387, 0
    %v1394 = vsel %vm290, %v1389, 0
    %1396 = vmatprep.subr.bf16.mxu0 0
    %1397 = vmatpush1.bf16.msra.mxu0 0
    %1398 = vmatprep.subr.bf16.mxu0 0
    %1399 = vmatpush1.bf16.msra.mxu0 0
    %1400 = vmatprep.subr.bf16.mxu0 0
    %1401 = vmatpush1.bf16.msra.mxu0 0
    %1402 = vmatprep.subr.bf16.mxu0 0
    %1403 = vmatpush1.bf16.msra.mxu0 0
    %1404 = vmatprep.subr.bf16.mxu0 0
    %1405 = vmatpush1.bf16.msra.mxu0 0
    %1406 = vmatprep.subr.bf16.mxu0 0
    %1407 = vmatpush1.bf16.msra.mxu0 0
    %1408 = vmatprep.subr.bf16.mxu0 0
    %1409 = vmatpush1.bf16.msra.mxu0 0
    %1410 = vmatprep.subr.bf16.mxu0 0
    %1411 = vmatpush1.bf16.msra.mxu0 %v1394
    %1412 = vmatprep.subr.bf16.mxu0 0
    %1413 = vmatpush2.bf16.msra.mxu0 0
    %1414 = vmatprep.subr.bf16.mxu0 0
    %1415 = vmatpush2.bf16.msra.mxu0 0
    %1416 = vmatprep.subr.bf16.mxu0 0
    %1417 = vmatpush2.bf16.msra.mxu0 0
    %1418 = vmatprep.subr.bf16.mxu0 0
    %1419 = vmatpush2.bf16.msra.mxu0 0
    %1420 = vmatprep.subr.bf16.mxu0 0
    %1421 = vmatpush2.bf16.msra.mxu0 0
    %1422 = vmatprep.subr.bf16.mxu0 0
    %1423 = vmatpush2.bf16.msra.mxu0 0
    %1424 = vmatprep.subr.bf16.mxu0 0
    %1425 = vmatpush2.bf16.msra.mxu0 0
    %1426 = vmatprep.subr.bf16.mxu0 0
    %1427 = vmatpush2.bf16.msra.mxu0 0
    %1428 = vmatprep.mubr.bf16.mxu0 0
    %1429 = vmatmul.mubr.bf16.gmra.mxu0 %v1391
    %v1430 = vpop.f32.mrf.mxu0
    %v1431 = vadd.f32 0.0, %v1430
    %v1432 = vpop.f32.mrf.mxu0
    %v1433 = vpop.f32.mrf.mxu0
    %v1434 = vpop.f32.mrf.mxu0
    %1435 = vdwg.mxu0
    %v1436 = vrcp.pop %v1386
    %v1437 = vmul.f32 %v1431, %v1436
    %v1438 = vpack.c.bf16 %v1437, %v1437
    %v1440 = vsel %vm227, %v1438, 0
    %1442 = vmatprep.subr.bf16.mxu0 0
    %1443 = vmatpush1.bf16.msra.mxu0 0
    %1444 = vmatprep.subr.bf16.mxu0 0
    %1445 = vmatpush1.bf16.msra.mxu0 0
    %1446 = vmatprep.subr.bf16.mxu0 0
    %1447 = vmatpush1.bf16.msra.mxu0 0
    %1448 = vmatprep.subr.bf16.mxu0 0
    %1449 = vmatpush1.bf16.msra.mxu0 0
    %1450 = vmatprep.subr.bf16.mxu0 0
    %1451 = vmatpush1.bf16.msra.mxu0 0
    %1452 = vmatprep.subr.bf16.mxu0 0
    %1453 = vmatpush1.bf16.msra.mxu0 0
    %1454 = vmatprep.subr.bf16.mxu0 0
    %1455 = vmatpush1.bf16.msra.mxu0 0
    %1456 = vmatprep.subr.bf16.mxu0 0
    %1457 = vmatpush1.bf16.msra.mxu0 %v818
    %1458 = vmatprep.subr.bf16.mxu0 0
    %1459 = vmatpush2.bf16.msra.mxu0 0
    %1460 = vmatprep.subr.bf16.mxu0 0
    %1461 = vmatpush2.bf16.msra.mxu0 0
    %1462 = vmatprep.subr.bf16.mxu0 0
    %1463 = vmatpush2.bf16.msra.mxu0 0
    %1464 = vmatprep.subr.bf16.mxu0 0
    %1465 = vmatpush2.bf16.msra.mxu0 0
    %1466 = vmatprep.subr.bf16.mxu0 0
    %1467 = vmatpush2.bf16.msra.mxu0 0
    %1468 = vmatprep.subr.bf16.mxu0 0
    %1469 = vmatpush2.bf16.msra.mxu0 0
    %1470 = vmatprep.subr.bf16.mxu0 0
    %1471 = vmatpush2.bf16.msra.mxu0 0
    %1472 = vmatprep.subr.bf16.mxu0 0
    %1473 = vmatpush2.bf16.msra.mxu0 0
    %1474 = vmatprep.mubr.bf16.mxu0 0
    %1475 = vmatmul.mubr.bf16.gmra.mxu0 %v1440
    %v1476 = vpop.f32.mrf.mxu0
    %v1477 = vadd.f32 0.0, %v1476
    %v1478 = vpop.f32.mrf.mxu0
    %v1479 = vpop.f32.mrf.mxu0
    %v1480 = vpop.f32.mrf.mxu0
    %1481 = vdwg.mxu0
    %v1482 = vadd.f32 %v1327, %v1477
    %v1483 = vlaneseq
    %v1484 = vshrl.u32 %v1483, 7
    %v1485 = vsub.s32 0, %v1484
    %v1486 = vrot.slane %v220, %v1485
    %v1487 = vadd.f32 %v860, %v1486
    %v1488 = vadd.f32 %v1482, %v1486
    %v1489 = vadd.f32 %v122, %v1487
    %v1490 = vadd.f32 %v123, %v1488
    %v1491 = vld [vmem:[#allocation11 + $0x9] sm:$0x1]
    %v1492 = vld [vmem:[#allocation11 + $0xa] sm:$0x1]
    %v1493 = vsel %vm146, %v1489, 0.0
    %1494 = vadd.xlane.f32.xlu0 %v1493
    %v1495 = vpop.xlane.xlu0 %1494
    %v1496 = vsel %vm146, %v1490, 0.0
    %1497 = vadd.xlane.f32.xlu0 %v1496
    %v1498 = vpop.xlane.xlu0 %1497
    %v1499 = vrcp.pop 32.0
    %v1500 = vmul.f32 %v1495, %v1499
    %v1501 = vmul.f32 %v1498, %v1499
    %v1502 = vsub.f32 %v1489, %v1500
    %v1503 = vsub.f32 %v1490, %v1501
    %v1504 = vmul.f32 %v1502, %v1502
    %v1505 = vmul.f32 %v1503, %v1503
    %v1506 = vsel %vm146, %v1504, 0.0
    %1507 = vadd.xlane.f32.xlu0 %v1506
    %v1508 = vpop.xlane.xlu0 %1507
    %v1509 = vsel %vm146, %v1505, 0.0
    %1510 = vadd.xlane.f32.xlu0 %v1509
    %v1511 = vpop.xlane.xlu0 %1510
    %v1512 = vmul.f32 %v1508, %v1499
    %v1513 = vmul.f32 %v1511, %v1499
    %v1514 = vadd.f32 %v1512, 1e-05
    %v1515 = vadd.f32 %v1513, 1e-05
    %v1516 = vrsqrt.pop %v1514
    %v1517 = vrsqrt.pop %v1515
    %v1518 = vmul.f32 %v1502, %v1516
    %v1519 = vmul.f32 %v1503, %v1517
    %v1520 = vlaneseq
    %v1521 = vshrl.u32 %v1520, 7
    %v1522 = vsub.s32 0, %v1521
    %v1523 = vrot.slane %v1491, %v1522
    %v1524 = vmul.f32 %v1518, %v1523
    %v1525 = vmul.f32 %v1519, %v1523
    %v1526 = vlaneseq
    %v1527 = vshrl.u32 %v1526, 7
    %v1528 = vsub.s32 0, %v1527
    %v1529 = vrot.slane %v1492, %v1528
    %v1530 = vadd.f32 %v1524, %v1529
    %v1531 = vadd.f32 %v1525, %v1529
    %v1532 = vpack.c.bf16 %v1531, %v1530
    %v1533 = vld [vmem:[#allocation7] sm:$0xf]
    %v1534 = vld [vmem:[#allocation7 + $0x4] sm:$0xf]
    %v1535 = vld [vmem:[#allocation7 + $0x8] sm:$0xf]
    %v1536 = vld [vmem:[#allocation7 + $0xc] sm:$0xf]
    %v1537 = vld [vmem:[#allocation11 + $0x4] sm:$0x1]
    %v1538 = vlaneseq
    %v1539 = vshrl.u32 %v1538, 7
    %v1540 = vsub.s32 0, %v1539
    %v1541 = vrot.slane %v1537, %v1540
    %v1546 = vunpack.c.l.b16 %v1533
    %v1547 = vunpack.c.l.b16 %v1534
    %v1548 = vunpack.c.l.b16 %v1535
    %v1549 = vunpack.c.l.b16 %v1536
    %v1550 = vpack.c.b16 %v1547, %v1546
    %v1551 = vpack.c.b16 %v1549, %v1548
    %v1555 = vsel %vm146, %v1532, 0
    %1557 = vmatprep.subr.bf16.mxu0 0
    %1558 = vmatpush1.bf16.msra.mxu0 0
    %1559 = vmatprep.subr.bf16.mxu0 0
    %1560 = vmatpush1.bf16.msra.mxu0 0
    %1561 = vmatprep.subr.bf16.mxu0 0
    %1562 = vmatpush1.bf16.msra.mxu0 0
    %1563 = vmatprep.subr.bf16.mxu0 0
    %1564 = vmatpush1.bf16.msra.mxu0 0
    %1565 = vmatprep.subr.bf16.mxu0 0
    %1566 = vmatpush1.bf16.msra.mxu0 0
    %1567 = vmatprep.subr.bf16.mxu0 0
    %1568 = vmatpush1.bf16.msra.mxu0 0
    %1569 = vmatprep.subr.bf16.mxu0 0
    %1570 = vmatpush1.bf16.msra.mxu0 %v1551
    %1571 = vmatprep.subr.bf16.mxu0 0
    %1572 = vmatpush1.bf16.msra.mxu0 %v1550
    %1573 = vmatprep.subr.bf16.mxu0 0
    %1574 = vmatpush2.bf16.msra.mxu0 0
    %1575 = vmatprep.subr.bf16.mxu0 0
    %1576 = vmatpush2.bf16.msra.mxu0 0
    %1577 = vmatprep.subr.bf16.mxu0 0
    %1578 = vmatpush2.bf16.msra.mxu0 0
    %1579 = vmatprep.subr.bf16.mxu0 0
    %1580 = vmatpush2.bf16.msra.mxu0 0
    %1581 = vmatprep.subr.bf16.mxu0 0
    %1582 = vmatpush2.bf16.msra.mxu0 0
    %1583 = vmatprep.subr.bf16.mxu0 0
    %1584 = vmatpush2.bf16.msra.mxu0 0
    %1585 = vmatprep.subr.bf16.mxu0 0
    %1586 = vmatpush2.bf16.msra.mxu0 0
    %1587 = vmatprep.subr.bf16.mxu0 0
    %1588 = vmatpush2.bf16.msra.mxu0 0
    %1589 = vmatprep.mubr.bf16.mxu0 0
    %1590 = vmatmul.mubr.bf16.gmra.mxu0 %v1555
    %v1591 = vpop.f32.mrf.mxu0
    %v1592 = vadd.f32 %v1541, %v1591
    %v1593 = vpop.f32.mrf.mxu0
    %v1594 = vpop.f32.mrf.mxu0
    %v1595 = vadd.f32 %v1541, %v1594
    %v1596 = vpop.f32.mrf.mxu0
    %1597 = vdwg.mxu0
    %v1598 = vld [vmem:[%s5] sm:$0xf]
    %v1599 = vld [vmem:[%s5 + $0x4] sm:$0xf]
    %v1600 = vld [vmem:[%s5 + $0x8] sm:$0xf]
    %v1601 = vld [vmem:[%s5 + $0xc] sm:$0xf]
    %v1606 = vunpack.c.l.b16 %v1598
    %v1607 = vunpack.c.l.b16 %v1599
    %v1608 = vunpack.c.l.b16 %v1600
    %v1609 = vunpack.c.l.b16 %v1601
    %v1610 = vpack.c.b16 %v1607, %v1606
    %v1611 = vpack.c.b16 %v1609, %v1608
    %v1615 = vsel %vm146, %v127, 0
    %v1618 = vsel %vm146, %v128, 0
    %1620 = vmatprep.subr.bf16.mxu0 0
    %1621 = vmatpush1.bf16.msra.mxu0 0
    %1622 = vmatprep.subr.bf16.mxu0 0
    %1623 = vmatpush1.bf16.msra.mxu0 0
    %1624 = vmatprep.subr.bf16.mxu0 0
    %1625 = vmatpush1.bf16.msra.mxu0 0
    %1626 = vmatprep.subr.bf16.mxu0 0
    %1627 = vmatpush1.bf16.msra.mxu0 0
    %1628 = vmatprep.subr.bf16.mxu0 0
    %1629 = vmatpush1.bf16.msra.mxu0 0
    %1630 = vmatprep.subr.bf16.mxu0 0
    %1631 = vmatpush1.bf16.msra.mxu0 0
    %1632 = vmatprep.subr.bf16.mxu0 0
    %1633 = vmatpush1.bf16.msra.mxu0 %v1611
    %1634 = vmatprep.subr.bf16.mxu0 0
    %1635 = vmatpush1.bf16.msra.mxu0 %v1610
    %1636 = vmatprep.subr.bf16.mxu0 0
    %1637 = vmatpush2.bf16.msra.mxu0 0
    %1638 = vmatprep.subr.bf16.mxu0 0
    %1639 = vmatpush2.bf16.msra.mxu0 0
    %1640 = vmatprep.subr.bf16.mxu0 0
    %1641 = vmatpush2.bf16.msra.mxu0 0
    %1642 = vmatprep.subr.bf16.mxu0 0
    %1643 = vmatpush2.bf16.msra.mxu0 0
    %1644 = vmatprep.subr.bf16.mxu0 0
    %1645 = vmatpush2.bf16.msra.mxu0 0
    %1646 = vmatprep.subr.bf16.mxu0 0
    %1647 = vmatpush2.bf16.msra.mxu0 0
    %1648 = vmatprep.subr.bf16.mxu0 0
    %1649 = vmatpush2.bf16.msra.mxu0 0
    %1650 = vmatprep.subr.bf16.mxu0 0
    %1651 = vmatpush2.bf16.msra.mxu0 0
    %1652 = vmatprep.mubr.bf16.mxu0 0
    %1653 = vmatmul.mubr.bf16.gmra.mxu0 %v1615
    %v1654 = vpop.f32.mrf.mxu0
    %v1655 = vadd.f32 0.0, %v1654
    %v1656 = vpop.f32.mrf.mxu0
    %v1657 = vpop.f32.mrf.mxu0
    %v1658 = vadd.f32 0.0, %v1657
    %v1659 = vpop.f32.mrf.mxu0
    %1660 = vmatprep.mubr.bf16.mxu0 0
    %1661 = vmatmul.mubr.bf16.gmra.mxu0 %v1618
    %v1662 = vpop.f32.mrf.mxu0
    %v1663 = vadd.f32 0.0, %v1662
    %v1664 = vpop.f32.mrf.mxu0
    %v1665 = vpop.f32.mrf.mxu0
    %v1666 = vpop.f32.mrf.mxu0
    %1667 = vdwg.mxu0
    %v1668 = vld [vmem:[#allocation11 + $0x5] sm:$0x1]
    %v1669 = vlaneseq
    %v1670 = vshrl.u32 %v1669, 7
    %v1671 = vsub.s32 0, %v1670
    %v1672 = vrot.slane %v1668, %v1671
    %v1673 = vadd.f32 %v1655, %v1672
    %v1674 = vadd.f32 %v1658, %v1672
    %v1675 = vadd.f32 %v1663, %v1672
    %v1676 = vld [vmem:[#allocation11 + $0x6] sm:$0x1]
    %v1677 = vlaneseq
    %v1678 = vshrl.u32 %v1677, 7
    %v1679 = vsub.s32 0, %v1678
    %v1680 = vrot.slane %v1676, %v1679
    %1682 = vrot.lane.b32.xlu0 %v1680, 32
    %v1683 = vpop.permute.xlu0 %1682
    %v1685 = vadd.f32 %v1655, %v1683
    %v1686 = vadd.f32 %v1658, %v1683
    %v1687 = vadd.f32 %v1663, %v1683
    %v1688 = vld [vmem:[#allocation11 + $0x7] sm:$0x1]
    %v1689 = vpack.c.bf16 %v1592, %v1592
    %v1690 = vpack.c.bf16 %v1674, %v1673
    %v1691 = vpack.c.bf16 %v1686, %v1685
    %v1693 = vsel %vm227, %v1689, 0
    %v1696 = vsel %vm227, %v1690, 0
    %1698 = vmatprep.subr.bf16.mxu0 0
    %1699 = vmatpush1.bf16.xpose.msra.mxu0 0
    %1700 = vmatprep.subr.bf16.mxu0 0
    %1701 = vmatpush1.bf16.xpose.msra.mxu0 0
    %1702 = vmatprep.subr.bf16.mxu0 0
    %1703 = vmatpush1.bf16.xpose.msra.mxu0 0
    %1704 = vmatprep.subr.bf16.mxu0 0
    %1705 = vmatpush1.bf16.xpose.msra.mxu0 0
    %1706 = vmatprep.subr.bf16.mxu0 0
    %1707 = vmatpush1.bf16.xpose.msra.mxu0 0
    %1708 = vmatprep.subr.bf16.mxu0 0
    %1709 = vmatpush1.bf16.xpose.msra.mxu0 0
    %1710 = vmatprep.subr.bf16.mxu0 0
    %1711 = vmatpush1.bf16.xpose.msra.mxu0 0
    %1712 = vmatprep.subr.bf16.mxu0 0
    %1713 = vmatpush1.bf16.xpose.msra.mxu0 %v1696
    %1714 = vmatprep.subr.bf16.mxu0 0
    %1715 = vmatpush2.bf16.xpose.msra.mxu0 0
    %1716 = vmatprep.subr.bf16.mxu0 0
    %1717 = vmatpush2.bf16.xpose.msra.mxu0 0
    %1718 = vmatprep.subr.bf16.mxu0 0
    %1719 = vmatpush2.bf16.xpose.msra.mxu0 0
    %1720 = vmatprep.subr.bf16.mxu0 0
    %1721 = vmatpush2.bf16.xpose.msra.mxu0 0
    %1722 = vmatprep.subr.bf16.mxu0 0
    %1723 = vmatpush2.bf16.xpose.msra.mxu0 0
    %1724 = vmatprep.subr.bf16.mxu0 0
    %1725 = vmatpush2.bf16.xpose.msra.mxu0 0
    %1726 = vmatprep.subr.bf16.mxu0 0
    %1727 = vmatpush2.bf16.xpose.msra.mxu0 0
    %1728 = vmatprep.subr.bf16.mxu0 0
    %1729 = vmatpush2.bf16.xpose.msra.mxu0 0
    %1730 = vmatprep.mubr.bf16.mxu0 0
    %1731 = vmatmul.mubr.bf16.gmra.mxu0 %v1693
    %v1732 = vpop.f32.mrf.mxu0
    %v1733 = vadd.f32 0.0, %v1732
    %v1734 = vpop.f32.mrf.mxu0
    %v1735 = vpop.f32.mrf.mxu0
    %v1736 = vpop.f32.mrf.mxu0
    %1737 = vdwg.mxu0
    %vm1738 = vcmask 80896
    %v1739 = vsel %vm1738, %v1733, -inf
    %1740 = vmax.xlane.f32.xlu0 %v1739
    %v1741 = vpop.xlane.xlu0 %1740
    %v1742 = vsub.f32 %v1733, %v1741
    %v1743 = vmul.f32 %v1742, 1.442695
    %v1744 = vpow.pop %v1743
    %v1745 = vsel %vm1738, %v1744, 0.0
    %1746 = vadd.xlane.f32.xlu0 %v1745
    %v1747 = vpop.xlane.xlu0 %1746
    %v1748 = vpack.c.bf16 %v1744, %v1744
    %1750 = vrot.lane.b32.xlu0 %v1691, 96
    %v1751 = vpop.permute.xlu0 %1750
    %v1753 = vsel %vm1738, %v1748, 0
    %vm1755 = vcmask 1044480
    %v1757 = vsel %vm1755, %v1751, 0
    %1759 = vmatprep.subr.bf16.mxu0 0
    %1760 = vmatpush1.bf16.msra.mxu0 0
    %1761 = vmatprep.subr.bf16.mxu0 0
    %1762 = vmatpush1.bf16.msra.mxu0 0
    %1763 = vmatprep.subr.bf16.mxu0 0
    %1764 = vmatpush1.bf16.msra.mxu0 0
    %1765 = vmatprep.subr.bf16.mxu0 0
    %1766 = vmatpush1.bf16.msra.mxu0 0
    %1767 = vmatprep.subr.bf16.mxu0 0
    %1768 = vmatpush1.bf16.msra.mxu0 0
    %1769 = vmatprep.subr.bf16.mxu0 0
    %1770 = vmatpush1.bf16.msra.mxu0 0
    %1771 = vmatprep.subr.bf16.mxu0 0
    %1772 = vmatpush1.bf16.msra.mxu0 0
    %1773 = vmatprep.subr.bf16.mxu0 0
    %1774 = vmatpush1.bf16.msra.mxu0 %v1757
    %1775 = vmatprep.subr.bf16.mxu0 0
    %1776 = vmatpush2.bf16.msra.mxu0 0
    %1777 = vmatprep.subr.bf16.mxu0 0
    %1778 = vmatpush2.bf16.msra.mxu0 0
    %1779 = vmatprep.subr.bf16.mxu0 0
    %1780 = vmatpush2.bf16.msra.mxu0 0
    %1781 = vmatprep.subr.bf16.mxu0 0
    %1782 = vmatpush2.bf16.msra.mxu0 0
    %1783 = vmatprep.subr.bf16.mxu0 0
    %1784 = vmatpush2.bf16.msra.mxu0 0
    %1785 = vmatprep.subr.bf16.mxu0 0
    %1786 = vmatpush2.bf16.msra.mxu0 0
    %1787 = vmatprep.subr.bf16.mxu0 0
    %1788 = vmatpush2.bf16.msra.mxu0 0
    %1789 = vmatprep.subr.bf16.mxu0 0
    %1790 = vmatpush2.bf16.msra.mxu0 0
    %1791 = vmatprep.mubr.bf16.mxu0 0
    %1792 = vmatmul.mubr.bf16.gmra.mxu0 %v1753
    %v1793 = vpop.f32.mrf.mxu0
    %v1794 = vadd.f32 0.0, %v1793
    %v1795 = vpop.f32.mrf.mxu0
    %v1796 = vpop.f32.mrf.mxu0
    %v1797 = vpop.f32.mrf.mxu0
    %1798 = vdwg.mxu0
    %v1799 = vrcp.pop %v1747
    %v1800 = vmul.f32 %v1794, %v1799
    %v1801 = vpack.c.bf16 %v1800, %v1800
    %v1802 = vld [vmem:[#allocation8] sm:$0xf]
    %1804 = vrot.lane.b32.xlu0 %v1689, 120
    %v1805 = vpop.permute.xlu0 %1804
    %1807 = vrot.lane.b32.xlu0 %v1690, 120
    %v1808 = vpop.permute.xlu0 %1807
    %v1810 = vsel %vm227, %v1805, 0
    %v1813 = vsel %vm227, %v1808, 0
    %1815 = vmatprep.subr.bf16.mxu0 0
    %1816 = vmatpush1.bf16.xpose.msra.mxu0 0
    %1817 = vmatprep.subr.bf16.mxu0 0
    %1818 = vmatpush1.bf16.xpose.msra.mxu0 0
    %1819 = vmatprep.subr.bf16.mxu0 0
    %1820 = vmatpush1.bf16.xpose.msra.mxu0 0
    %1821 = vmatprep.subr.bf16.mxu0 0
    %1822 = vmatpush1.bf16.xpose.msra.mxu0 0
    %1823 = vmatprep.subr.bf16.mxu0 0
    %1824 = vmatpush1.bf16.xpose.msra.mxu0 0
    %1825 = vmatprep.subr.bf16.mxu0 0
    %1826 = vmatpush1.bf16.xpose.msra.mxu0 0
    %1827 = vmatprep.subr.bf16.mxu0 0
    %1828 = vmatpush1.bf16.xpose.msra.mxu0 0
    %1829 = vmatprep.subr.bf16.mxu0 0
    %1830 = vmatpush1.bf16.xpose.msra.mxu0 %v1813
    %1831 = vmatprep.subr.bf16.mxu0 0
    %1832 = vmatpush2.bf16.xpose.msra.mxu0 0
    %1833 = vmatprep.subr.bf16.mxu0 0
    %1834 = vmatpush2.bf16.xpose.msra.mxu0 0
    %1835 = vmatprep.subr.bf16.mxu0 0
    %1836 = vmatpush2.bf16.xpose.msra.mxu0 0
    %1837 = vmatprep.subr.bf16.mxu0 0
    %1838 = vmatpush2.bf16.xpose.msra.mxu0 0
    %1839 = vmatprep.subr.bf16.mxu0 0
    %1840 = vmatpush2.bf16.xpose.msra.mxu0 0
    %1841 = vmatprep.subr.bf16.mxu0 0
    %1842 = vmatpush2.bf16.xpose.msra.mxu0 0
    %1843 = vmatprep.subr.bf16.mxu0 0
    %1844 = vmatpush2.bf16.xpose.msra.mxu0 0
    %1845 = vmatprep.subr.bf16.mxu0 0
    %1846 = vmatpush2.bf16.xpose.msra.mxu0 0
    %1847 = vmatprep.mubr.bf16.mxu0 0
    %1848 = vmatmul.mubr.bf16.gmra.mxu0 %v1810
    %v1849 = vpop.f32.mrf.mxu0
    %v1850 = vadd.f32 0.0, %v1849
    %v1851 = vpop.f32.mrf.mxu0
    %v1852 = vpop.f32.mrf.mxu0
    %v1853 = vpop.f32.mrf.mxu0
    %1854 = vdwg.mxu0
    %v1855 = vsel %vm1738, %v1850, -inf
    %1856 = vmax.xlane.f32.xlu0 %v1855
    %v1857 = vpop.xlane.xlu0 %1856
    %v1858 = vsub.f32 %v1850, %v1857
    %v1859 = vmul.f32 %v1858, 1.442695
    %v1860 = vpow.pop %v1859
    %v1861 = vsel %vm1738, %v1860, 0.0
    %1862 = vadd.xlane.f32.xlu0 %v1861
    %v1863 = vpop.xlane.xlu0 %1862
    %v1864 = vpack.c.bf16 %v1860, %v1860
    %1865 = vrot.lane.b32.xlu0 %v1691, 88
    %v1866 = vpop.permute.xlu0 %1865
    %v1868 = vsel %vm1738, %v1864, 0
    %v1871 = vsel %vm1755, %v1866, 0
    %1873 = vmatprep.subr.bf16.mxu0 0
    %1874 = vmatpush1.bf16.msra.mxu0 0
    %1875 = vmatprep.subr.bf16.mxu0 0
    %1876 = vmatpush1.bf16.msra.mxu0 0
    %1877 = vmatprep.subr.bf16.mxu0 0
    %1878 = vmatpush1.bf16.msra.mxu0 0
    %1879 = vmatprep.subr.bf16.mxu0 0
    %1880 = vmatpush1.bf16.msra.mxu0 0
    %1881 = vmatprep.subr.bf16.mxu0 0
    %1882 = vmatpush1.bf16.msra.mxu0 0
    %1883 = vmatprep.subr.bf16.mxu0 0
    %1884 = vmatpush1.bf16.msra.mxu0 0
    %1885 = vmatprep.subr.bf16.mxu0 0
    %1886 = vmatpush1.bf16.msra.mxu0 0
    %1887 = vmatprep.subr.bf16.mxu0 0
    %1888 = vmatpush1.bf16.msra.mxu0 %v1871
    %1889 = vmatprep.subr.bf16.mxu0 0
    %1890 = vmatpush2.bf16.msra.mxu0 0
    %1891 = vmatprep.subr.bf16.mxu0 0
    %1892 = vmatpush2.bf16.msra.mxu0 0
    %1893 = vmatprep.subr.bf16.mxu0 0
    %1894 = vmatpush2.bf16.msra.mxu0 0
    %1895 = vmatprep.subr.bf16.mxu0 0
    %1896 = vmatpush2.bf16.msra.mxu0 0
    %1897 = vmatprep.subr.bf16.mxu0 0
    %1898 = vmatpush2.bf16.msra.mxu0 0
    %1899 = vmatprep.subr.bf16.mxu0 0
    %1900 = vmatpush2.bf16.msra.mxu0 0
    %1901 = vmatprep.subr.bf16.mxu0 0
    %1902 = vmatpush2.bf16.msra.mxu0 0
    %1903 = vmatprep.subr.bf16.mxu0 0
    %1904 = vmatpush2.bf16.msra.mxu0 0
    %1905 = vmatprep.mubr.bf16.mxu0 0
    %1906 = vmatmul.mubr.bf16.gmra.mxu0 %v1868
    %v1907 = vpop.f32.mrf.mxu0
    %v1908 = vadd.f32 0.0, %v1907
    %v1909 = vpop.f32.mrf.mxu0
    %v1910 = vpop.f32.mrf.mxu0
    %v1911 = vpop.f32.mrf.mxu0
    %1912 = vdwg.mxu0
    %v1913 = vrcp.pop %v1863
    %v1914 = vmul.f32 %v1908, %v1913
    %v1915 = vpack.c.bf16 %v1914, %v1914
    %v1916 = vld [vmem:[#allocation8 + $0x4] sm:$0xf]
    %v1918 = vsel %vm227, %v1915, 0
    %v1921 = vsel %vm290, %v1916, 0
    %1923 = vmatprep.subr.bf16.mxu0 0
    %1924 = vmatpush1.bf16.msra.mxu0 0
    %1925 = vmatprep.subr.bf16.mxu0 0
    %1926 = vmatpush1.bf16.msra.mxu0 0
    %1927 = vmatprep.subr.bf16.mxu0 0
    %1928 = vmatpush1.bf16.msra.mxu0 0
    %1929 = vmatprep.subr.bf16.mxu0 0
    %1930 = vmatpush1.bf16.msra.mxu0 0
    %1931 = vmatprep.subr.bf16.mxu0 0
    %1932 = vmatpush1.bf16.msra.mxu0 0
    %1933 = vmatprep.subr.bf16.mxu0 0
    %1934 = vmatpush1.bf16.msra.mxu0 0
    %1935 = vmatprep.subr.bf16.mxu0 0
    %1936 = vmatpush1.bf16.msra.mxu0 0
    %1937 = vmatprep.subr.bf16.mxu0 0
    %1938 = vmatpush1.bf16.msra.mxu0 %v1921
    %1939 = vmatprep.subr.bf16.mxu0 0
    %1940 = vmatpush2.bf16.msra.mxu0 0
    %1941 = vmatprep.subr.bf16.mxu0 0
    %1942 = vmatpush2.bf16.msra.mxu0 0
    %1943 = vmatprep.subr.bf16.mxu0 0
    %1944 = vmatpush2.bf16.msra.mxu0 0
    %1945 = vmatprep.subr.bf16.mxu0 0
    %1946 = vmatpush2.bf16.msra.mxu0 0
    %1947 = vmatprep.subr.bf16.mxu0 0
    %1948 = vmatpush2.bf16.msra.mxu0 0
    %1949 = vmatprep.subr.bf16.mxu0 0
    %1950 = vmatpush2.bf16.msra.mxu0 0
    %1951 = vmatprep.subr.bf16.mxu0 0
    %1952 = vmatpush2.bf16.msra.mxu0 0
    %1953 = vmatprep.subr.bf16.mxu0 0
    %1954 = vmatpush2.bf16.msra.mxu0 0
    %1955 = vmatprep.mubr.bf16.mxu0 0
    %1956 = vmatmul.mubr.bf16.gmra.mxu0 %v1918
    %v1957 = vpop.f32.mrf.mxu0
    %v1958 = vadd.f32 0.0, %v1957
    %v1959 = vpop.f32.mrf.mxu0
    %v1960 = vpop.f32.mrf.mxu0
    %v1961 = vpop.f32.mrf.mxu0
    %1962 = vdwg.mxu0
    %v1964 = vsel %vm227, %v1801, 0
    %v1967 = vsel %vm290, %v1802, 0
    %1969 = vmatprep.subr.bf16.mxu0 0
    %1970 = vmatpush1.bf16.msra.mxu0 0
    %1971 = vmatprep.subr.bf16.mxu0 0
    %1972 = vmatpush1.bf16.msra.mxu0 0
    %1973 = vmatprep.subr.bf16.mxu0 0
    %1974 = vmatpush1.bf16.msra.mxu0 0
    %1975 = vmatprep.subr.bf16.mxu0 0
    %1976 = vmatpush1.bf16.msra.mxu0 0
    %1977 = vmatprep.subr.bf16.mxu0 0
    %1978 = vmatpush1.bf16.msra.mxu0 0
    %1979 = vmatprep.subr.bf16.mxu0 0
    %1980 = vmatpush1.bf16.msra.mxu0 0
    %1981 = vmatprep.subr.bf16.mxu0 0
    %1982 = vmatpush1.bf16.msra.mxu0 0
    %1983 = vmatprep.subr.bf16.mxu0 0
    %1984 = vmatpush1.bf16.msra.mxu0 %v1967
    %1985 = vmatprep.subr.bf16.mxu0 0
    %1986 = vmatpush2.bf16.msra.mxu0 0
    %1987 = vmatprep.subr.bf16.mxu0 0
    %1988 = vmatpush2.bf16.msra.mxu0 0
    %1989 = vmatprep.subr.bf16.mxu0 0
    %1990 = vmatpush2.bf16.msra.mxu0 0
    %1991 = vmatprep.subr.bf16.mxu0 0
    %1992 = vmatpush2.bf16.msra.mxu0 0
    %1993 = vmatprep.subr.bf16.mxu0 0
    %1994 = vmatpush2.bf16.msra.mxu0 0
    %1995 = vmatprep.subr.bf16.mxu0 0
    %1996 = vmatpush2.bf16.msra.mxu0 0
    %1997 = vmatprep.subr.bf16.mxu0 0
    %1998 = vmatpush2.bf16.msra.mxu0 0
    %1999 = vmatprep.subr.bf16.mxu0 0
    %2000 = vmatpush2.bf16.msra.mxu0 0
    %2001 = vmatprep.mubr.bf16.mxu0 0
    %2002 = vmatmul.mubr.bf16.gmra.mxu0 %v1964
    %v2003 = vpop.f32.mrf.mxu0
    %v2004 = vadd.f32 %v1958, %v2003
    %v2005 = vpop.f32.mrf.mxu0
    %v2006 = vpop.f32.mrf.mxu0
    %v2007 = vpop.f32.mrf.mxu0
    %2008 = vdwg.mxu0
    %2009 = vrot.lane.b32.xlu0 %v1689, 112
    %v2010 = vpop.permute.xlu0 %2009
    %2011 = vrot.lane.b32.xlu0 %v1690, 112
    %v2012 = vpop.permute.xlu0 %2011
    %v2014 = vsel %vm227, %v2010, 0
    %v2017 = vsel %vm227, %v2012, 0
    %2019 = vmatprep.subr.bf16.mxu0 0
    %2020 = vmatpush1.bf16.xpose.msra.mxu0 0
    %2021 = vmatprep.subr.bf16.mxu0 0
    %2022 = vmatpush1.bf16.xpose.msra.mxu0 0
    %2023 = vmatprep.subr.bf16.mxu0 0
    %2024 = vmatpush1.bf16.xpose.msra.mxu0 0
    %2025 = vmatprep.subr.bf16.mxu0 0
    %2026 = vmatpush1.bf16.xpose.msra.mxu0 0
    %2027 = vmatprep.subr.bf16.mxu0 0
    %2028 = vmatpush1.bf16.xpose.msra.mxu0 0
    %2029 = vmatprep.subr.bf16.mxu0 0
    %2030 = vmatpush1.bf16.xpose.msra.mxu0 0
    %2031 = vmatprep.subr.bf16.mxu0 0
    %2032 = vmatpush1.bf16.xpose.msra.mxu0 0
    %2033 = vmatprep.subr.bf16.mxu0 0
    %2034 = vmatpush1.bf16.xpose.msra.mxu0 %v2017
    %2035 = vmatprep.subr.bf16.mxu0 0
    %2036 = vmatpush2.bf16.xpose.msra.mxu0 0
    %2037 = vmatprep.subr.bf16.mxu0 0
    %2038 = vmatpush2.bf16.xpose.msra.mxu0 0
    %2039 = vmatprep.subr.bf16.mxu0 0
    %2040 = vmatpush2.bf16.xpose.msra.mxu0 0
    %2041 = vmatprep.subr.bf16.mxu0 0
    %2042 = vmatpush2.bf16.xpose.msra.mxu0 0
    %2043 = vmatprep.subr.bf16.mxu0 0
    %2044 = vmatpush2.bf16.xpose.msra.mxu0 0
    %2045 = vmatprep.subr.bf16.mxu0 0
    %2046 = vmatpush2.bf16.xpose.msra.mxu0 0
    %2047 = vmatprep.subr.bf16.mxu0 0
    %2048 = vmatpush2.bf16.xpose.msra.mxu0 0
    %2049 = vmatprep.subr.bf16.mxu0 0
    %2050 = vmatpush2.bf16.xpose.msra.mxu0 0
    %2051 = vmatprep.mubr.bf16.mxu0 0
    %2052 = vmatmul.mubr.bf16.gmra.mxu0 %v2014
    %v2053 = vpop.f32.mrf.mxu0
    %v2054 = vadd.f32 0.0, %v2053
    %v2055 = vpop.f32.mrf.mxu0
    %v2056 = vpop.f32.mrf.mxu0
    %v2057 = vpop.f32.mrf.mxu0
    %2058 = vdwg.mxu0
    %v2059 = vsel %vm1738, %v2054, -inf
    %2060 = vmax.xlane.f32.xlu0 %v2059
    %v2061 = vpop.xlane.xlu0 %2060
    %v2062 = vsub.f32 %v2054, %v2061
    %v2063 = vmul.f32 %v2062, 1.442695
    %v2064 = vpow.pop %v2063
    %v2065 = vsel %vm1738, %v2064, 0.0
    %2066 = vadd.xlane.f32.xlu0 %v2065
    %v2067 = vpop.xlane.xlu0 %2066
    %v2068 = vpack.c.bf16 %v2064, %v2064
    %2069 = vrot.lane.b32.xlu0 %v1691, 80
    %v2070 = vpop.permute.xlu0 %2069
    %v2072 = vsel %vm1738, %v2068, 0
    %v2075 = vsel %vm1755, %v2070, 0
    %2077 = vmatprep.subr.bf16.mxu0 0
    %2078 = vmatpush1.bf16.msra.mxu0 0
    %2079 = vmatprep.subr.bf16.mxu0 0
    %2080 = vmatpush1.bf16.msra.mxu0 0
    %2081 = vmatprep.subr.bf16.mxu0 0
    %2082 = vmatpush1.bf16.msra.mxu0 0
    %2083 = vmatprep.subr.bf16.mxu0 0
    %2084 = vmatpush1.bf16.msra.mxu0 0
    %2085 = vmatprep.subr.bf16.mxu0 0
    %2086 = vmatpush1.bf16.msra.mxu0 0
    %2087 = vmatprep.subr.bf16.mxu0 0
    %2088 = vmatpush1.bf16.msra.mxu0 0
    %2089 = vmatprep.subr.bf16.mxu0 0
    %2090 = vmatpush1.bf16.msra.mxu0 0
    %2091 = vmatprep.subr.bf16.mxu0 0
    %2092 = vmatpush1.bf16.msra.mxu0 %v2075
    %2093 = vmatprep.subr.bf16.mxu0 0
    %2094 = vmatpush2.bf16.msra.mxu0 0
    %2095 = vmatprep.subr.bf16.mxu0 0
    %2096 = vmatpush2.bf16.msra.mxu0 0
    %2097 = vmatprep.subr.bf16.mxu0 0
    %2098 = vmatpush2.bf16.msra.mxu0 0
    %2099 = vmatprep.subr.bf16.mxu0 0
    %2100 = vmatpush2.bf16.msra.mxu0 0
    %2101 = vmatprep.subr.bf16.mxu0 0
    %2102 = vmatpush2.bf16.msra.mxu0 0
    %2103 = vmatprep.subr.bf16.mxu0 0
    %2104 = vmatpush2.bf16.msra.mxu0 0
    %2105 = vmatprep.subr.bf16.mxu0 0
    %2106 = vmatpush2.bf16.msra.mxu0 0
    %2107 = vmatprep.subr.bf16.mxu0 0
    %2108 = vmatpush2.bf16.msra.mxu0 0
    %2109 = vmatprep.mubr.bf16.mxu0 0
    %2110 = vmatmul.mubr.bf16.gmra.mxu0 %v2072
    %v2111 = vpop.f32.mrf.mxu0
    %v2112 = vadd.f32 0.0, %v2111
    %v2113 = vpop.f32.mrf.mxu0
    %v2114 = vpop.f32.mrf.mxu0
    %v2115 = vpop.f32.mrf.mxu0
    %2116 = vdwg.mxu0
    %v2117 = vrcp.pop %v2067
    %v2118 = vmul.f32 %v2112, %v2117
    %v2119 = vpack.c.bf16 %v2118, %v2118
    %v2120 = vld [vmem:[#allocation8 + $0x8] sm:$0xf]
    %v2122 = vsel %vm227, %v2119, 0
    %v2125 = vsel %vm290, %v2120, 0
    %2127 = vmatprep.subr.bf16.mxu0 0
    %2128 = vmatpush1.bf16.msra.mxu0 0
    %2129 = vmatprep.subr.bf16.mxu0 0
    %2130 = vmatpush1.bf16.msra.mxu0 0
    %2131 = vmatprep.subr.bf16.mxu0 0
    %2132 = vmatpush1.bf16.msra.mxu0 0
    %2133 = vmatprep.subr.bf16.mxu0 0
    %2134 = vmatpush1.bf16.msra.mxu0 0
    %2135 = vmatprep.subr.bf16.mxu0 0
    %2136 = vmatpush1.bf16.msra.mxu0 0
    %2137 = vmatprep.subr.bf16.mxu0 0
    %2138 = vmatpush1.bf16.msra.mxu0 0
    %2139 = vmatprep.subr.bf16.mxu0 0
    %2140 = vmatpush1.bf16.msra.mxu0 0
    %2141 = vmatprep.subr.bf16.mxu0 0
    %2142 = vmatpush1.bf16.msra.mxu0 %v2125
    %2143 = vmatprep.subr.bf16.mxu0 0
    %2144 = vmatpush2.bf16.msra.mxu0 0
    %2145 = vmatprep.subr.bf16.mxu0 0
    %2146 = vmatpush2.bf16.msra.mxu0 0
    %2147 = vmatprep.subr.bf16.mxu0 0
    %2148 = vmatpush2.bf16.msra.mxu0 0
    %2149 = vmatprep.subr.bf16.mxu0 0
    %2150 = vmatpush2.bf16.msra.mxu0 0
    %2151 = vmatprep.subr.bf16.mxu0 0
    %2152 = vmatpush2.bf16.msra.mxu0 0
    %2153 = vmatprep.subr.bf16.mxu0 0
    %2154 = vmatpush2.bf16.msra.mxu0 0
    %2155 = vmatprep.subr.bf16.mxu0 0
    %2156 = vmatpush2.bf16.msra.mxu0 0
    %2157 = vmatprep.subr.bf16.mxu0 0
    %2158 = vmatpush2.bf16.msra.mxu0 0
    %2159 = vmatprep.mubr.bf16.mxu0 0
    %2160 = vmatmul.mubr.bf16.gmra.mxu0 %v2122
    %v2161 = vpop.f32.mrf.mxu0
    %v2162 = vadd.f32 0.0, %v2161
    %v2163 = vpop.f32.mrf.mxu0
    %v2164 = vpop.f32.mrf.mxu0
    %v2165 = vpop.f32.mrf.mxu0
    %2166 = vdwg.mxu0
    %v2167 = vadd.f32 %v2004, %v2162
    %2168 = vrot.lane.b32.xlu0 %v1689, 104
    %v2169 = vpop.permute.xlu0 %2168
    %2170 = vrot.lane.b32.xlu0 %v1690, 104
    %v2171 = vpop.permute.xlu0 %2170
    %v2173 = vsel %vm227, %v2169, 0
    %v2176 = vsel %vm227, %v2171, 0
    %2178 = vmatprep.subr.bf16.mxu0 0
    %2179 = vmatpush1.bf16.xpose.msra.mxu0 0
    %2180 = vmatprep.subr.bf16.mxu0 0
    %2181 = vmatpush1.bf16.xpose.msra.mxu0 0
    %2182 = vmatprep.subr.bf16.mxu0 0
    %2183 = vmatpush1.bf16.xpose.msra.mxu0 0
    %2184 = vmatprep.subr.bf16.mxu0 0
    %2185 = vmatpush1.bf16.xpose.msra.mxu0 0
    %2186 = vmatprep.subr.bf16.mxu0 0
    %2187 = vmatpush1.bf16.xpose.msra.mxu0 0
    %2188 = vmatprep.subr.bf16.mxu0 0
    %2189 = vmatpush1.bf16.xpose.msra.mxu0 0
    %2190 = vmatprep.subr.bf16.mxu0 0
    %2191 = vmatpush1.bf16.xpose.msra.mxu0 0
    %2192 = vmatprep.subr.bf16.mxu0 0
    %2193 = vmatpush1.bf16.xpose.msra.mxu0 %v2176
    %2194 = vmatprep.subr.bf16.mxu0 0
    %2195 = vmatpush2.bf16.xpose.msra.mxu0 0
    %2196 = vmatprep.subr.bf16.mxu0 0
    %2197 = vmatpush2.bf16.xpose.msra.mxu0 0
    %2198 = vmatprep.subr.bf16.mxu0 0
    %2199 = vmatpush2.bf16.xpose.msra.mxu0 0
    %2200 = vmatprep.subr.bf16.mxu0 0
    %2201 = vmatpush2.bf16.xpose.msra.mxu0 0
    %2202 = vmatprep.subr.bf16.mxu0 0
    %2203 = vmatpush2.bf16.xpose.msra.mxu0 0
    %2204 = vmatprep.subr.bf16.mxu0 0
    %2205 = vmatpush2.bf16.xpose.msra.mxu0 0
    %2206 = vmatprep.subr.bf16.mxu0 0
    %2207 = vmatpush2.bf16.xpose.msra.mxu0 0
    %2208 = vmatprep.subr.bf16.mxu0 0
    %2209 = vmatpush2.bf16.xpose.msra.mxu0 0
    %2210 = vmatprep.mubr.bf16.mxu0 0
    %2211 = vmatmul.mubr.bf16.gmra.mxu0 %v2173
    %v2212 = vpop.f32.mrf.mxu0
    %v2213 = vadd.f32 0.0, %v2212
    %v2214 = vpop.f32.mrf.mxu0
    %v2215 = vpop.f32.mrf.mxu0
    %v2216 = vpop.f32.mrf.mxu0
    %2217 = vdwg.mxu0
    %v2218 = vsel %vm1738, %v2213, -inf
    %2219 = vmax.xlane.f32.xlu0 %v2218
    %v2220 = vpop.xlane.xlu0 %2219
    %v2221 = vsub.f32 %v2213, %v2220
    %v2222 = vmul.f32 %v2221, 1.442695
    %v2223 = vpow.pop %v2222
    %v2224 = vsel %vm1738, %v2223, 0.0
    %2225 = vadd.xlane.f32.xlu0 %v2224
    %v2226 = vpop.xlane.xlu0 %2225
    %v2227 = vpack.c.bf16 %v2223, %v2223
    %2228 = vrot.lane.b32.xlu0 %v1691, 72
    %v2229 = vpop.permute.xlu0 %2228
    %v2231 = vsel %vm1738, %v2227, 0
    %v2234 = vsel %vm1755, %v2229, 0
    %2236 = vmatprep.subr.bf16.mxu0 0
    %2237 = vmatpush1.bf16.msra.mxu0 0
    %2238 = vmatprep.subr.bf16.mxu0 0
    %2239 = vmatpush1.bf16.msra.mxu0 0
    %2240 = vmatprep.subr.bf16.mxu0 0
    %2241 = vmatpush1.bf16.msra.mxu0 0
    %2242 = vmatprep.subr.bf16.mxu0 0
    %2243 = vmatpush1.bf16.msra.mxu0 0
    %2244 = vmatprep.subr.bf16.mxu0 0
    %2245 = vmatpush1.bf16.msra.mxu0 0
    %2246 = vmatprep.subr.bf16.mxu0 0
    %2247 = vmatpush1.bf16.msra.mxu0 0
    %2248 = vmatprep.subr.bf16.mxu0 0
    %2249 = vmatpush1.bf16.msra.mxu0 0
    %2250 = vmatprep.subr.bf16.mxu0 0
    %2251 = vmatpush1.bf16.msra.mxu0 %v2234
    %2252 = vmatprep.subr.bf16.mxu0 0
    %2253 = vmatpush2.bf16.msra.mxu0 0
    %2254 = vmatprep.subr.bf16.mxu0 0
    %2255 = vmatpush2.bf16.msra.mxu0 0
    %2256 = vmatprep.subr.bf16.mxu0 0
    %2257 = vmatpush2.bf16.msra.mxu0 0
    %2258 = vmatprep.subr.bf16.mxu0 0
    %2259 = vmatpush2.bf16.msra.mxu0 0
    %2260 = vmatprep.subr.bf16.mxu0 0
    %2261 = vmatpush2.bf16.msra.mxu0 0
    %2262 = vmatprep.subr.bf16.mxu0 0
    %2263 = vmatpush2.bf16.msra.mxu0 0
    %2264 = vmatprep.subr.bf16.mxu0 0
    %2265 = vmatpush2.bf16.msra.mxu0 0
    %2266 = vmatprep.subr.bf16.mxu0 0
    %2267 = vmatpush2.bf16.msra.mxu0 0
    %2268 = vmatprep.mubr.bf16.mxu0 0
    %2269 = vmatmul.mubr.bf16.gmra.mxu0 %v2231
    %v2270 = vpop.f32.mrf.mxu0
    %v2271 = vadd.f32 0.0, %v2270
    %v2272 = vpop.f32.mrf.mxu0
    %v2273 = vpop.f32.mrf.mxu0
    %v2274 = vpop.f32.mrf.mxu0
    %2275 = vdwg.mxu0
    %v2276 = vrcp.pop %v2226
    %v2277 = vmul.f32 %v2271, %v2276
    %v2278 = vpack.c.bf16 %v2277, %v2277
    %v2279 = vld [vmem:[#allocation8 + $0xc] sm:$0xf]
    %v2281 = vsel %vm227, %v2278, 0
    %v2284 = vsel %vm290, %v2279, 0
    %2286 = vmatprep.subr.bf16.mxu0 0
    %2287 = vmatpush1.bf16.msra.mxu0 0
    %2288 = vmatprep.subr.bf16.mxu0 0
    %2289 = vmatpush1.bf16.msra.mxu0 0
    %2290 = vmatprep.subr.bf16.mxu0 0
    %2291 = vmatpush1.bf16.msra.mxu0 0
    %2292 = vmatprep.subr.bf16.mxu0 0
    %2293 = vmatpush1.bf16.msra.mxu0 0
    %2294 = vmatprep.subr.bf16.mxu0 0
    %2295 = vmatpush1.bf16.msra.mxu0 0
    %2296 = vmatprep.subr.bf16.mxu0 0
    %2297 = vmatpush1.bf16.msra.mxu0 0
    %2298 = vmatprep.subr.bf16.mxu0 0
    %2299 = vmatpush1.bf16.msra.mxu0 0
    %2300 = vmatprep.subr.bf16.mxu0 0
    %2301 = vmatpush1.bf16.msra.mxu0 %v2284
    %2302 = vmatprep.subr.bf16.mxu0 0
    %2303 = vmatpush2.bf16.msra.mxu0 0
    %2304 = vmatprep.subr.bf16.mxu0 0
    %2305 = vmatpush2.bf16.msra.mxu0 0
    %2306 = vmatprep.subr.bf16.mxu0 0
    %2307 = vmatpush2.bf16.msra.mxu0 0
    %2308 = vmatprep.subr.bf16.mxu0 0
    %2309 = vmatpush2.bf16.msra.mxu0 0
    %2310 = vmatprep.subr.bf16.mxu0 0
    %2311 = vmatpush2.bf16.msra.mxu0 0
    %2312 = vmatprep.subr.bf16.mxu0 0
    %2313 = vmatpush2.bf16.msra.mxu0 0
    %2314 = vmatprep.subr.bf16.mxu0 0
    %2315 = vmatpush2.bf16.msra.mxu0 0
    %2316 = vmatprep.subr.bf16.mxu0 0
    %2317 = vmatpush2.bf16.msra.mxu0 0
    %2318 = vmatprep.mubr.bf16.mxu0 0
    %2319 = vmatmul.mubr.bf16.gmra.mxu0 %v2281
    %v2320 = vpop.f32.mrf.mxu0
    %v2321 = vadd.f32 0.0, %v2320
    %v2322 = vpop.f32.mrf.mxu0
    %v2323 = vpop.f32.mrf.mxu0
    %v2324 = vpop.f32.mrf.mxu0
    %2325 = vdwg.mxu0
    %v2326 = vadd.f32 %v2167, %v2321
    %v2327 = vpack.c.bf16 %v1595, %v1595
    %v2328 = vpack.c.bf16 %v1675, %v1674
    %v2329 = vpack.c.bf16 %v1687, %v1686
    %v2331 = vrot.slane %v2328, 1
    %v2333 = vsel %vm227, %v2327, 0
    %v2336 = vsel %vm227, %v2331, 0
    %2338 = vmatprep.subr.bf16.mxu0 0
    %2339 = vmatpush1.bf16.xpose.msra.mxu0 0
    %2340 = vmatprep.subr.bf16.mxu0 0
    %2341 = vmatpush1.bf16.xpose.msra.mxu0 0
    %2342 = vmatprep.subr.bf16.mxu0 0
    %2343 = vmatpush1.bf16.xpose.msra.mxu0 0
    %2344 = vmatprep.subr.bf16.mxu0 0
    %2345 = vmatpush1.bf16.xpose.msra.mxu0 0
    %2346 = vmatprep.subr.bf16.mxu0 0
    %2347 = vmatpush1.bf16.xpose.msra.mxu0 0
    %2348 = vmatprep.subr.bf16.mxu0 0
    %2349 = vmatpush1.bf16.xpose.msra.mxu0 0
    %2350 = vmatprep.subr.bf16.mxu0 0
    %2351 = vmatpush1.bf16.xpose.msra.mxu0 0
    %2352 = vmatprep.subr.bf16.mxu0 0
    %2353 = vmatpush1.bf16.xpose.msra.mxu0 %v2336
    %2354 = vmatprep.subr.bf16.mxu0 0
    %2355 = vmatpush2.bf16.xpose.msra.mxu0 0
    %2356 = vmatprep.subr.bf16.mxu0 0
    %2357 = vmatpush2.bf16.xpose.msra.mxu0 0
    %2358 = vmatprep.subr.bf16.mxu0 0
    %2359 = vmatpush2.bf16.xpose.msra.mxu0 0
    %2360 = vmatprep.subr.bf16.mxu0 0
    %2361 = vmatpush2.bf16.xpose.msra.mxu0 0
    %2362 = vmatprep.subr.bf16.mxu0 0
    %2363 = vmatpush2.bf16.xpose.msra.mxu0 0
    %2364 = vmatprep.subr.bf16.mxu0 0
    %2365 = vmatpush2.bf16.xpose.msra.mxu0 0
    %2366 = vmatprep.subr.bf16.mxu0 0
    %2367 = vmatpush2.bf16.xpose.msra.mxu0 0
    %2368 = vmatprep.subr.bf16.mxu0 0
    %2369 = vmatpush2.bf16.xpose.msra.mxu0 0
    %2370 = vmatprep.mubr.bf16.mxu0 0
    %2371 = vmatmul.mubr.bf16.gmra.mxu0 %v2333
    %v2372 = vpop.f32.mrf.mxu0
    %v2373 = vadd.f32 0.0, %v2372
    %v2374 = vpop.f32.mrf.mxu0
    %v2375 = vpop.f32.mrf.mxu0
    %v2376 = vpop.f32.mrf.mxu0
    %2377 = vdwg.mxu0
    %v2378 = vsel %vm1738, %v2373, -inf
    %2379 = vmax.xlane.f32.xlu0 %v2378
    %v2380 = vpop.xlane.xlu0 %2379
    %v2381 = vsub.f32 %v2373, %v2380
    %v2382 = vmul.f32 %v2381, 1.442695
    %v2383 = vpow.pop %v2382
    %v2384 = vsel %vm1738, %v2383, 0.0
    %2385 = vadd.xlane.f32.xlu0 %v2384
    %v2386 = vpop.xlane.xlu0 %2385
    %v2387 = vpack.c.bf16 %v2383, %v2383
    %v2389 = vrot.slane %v2329, 1
    %2390 = vrot.lane.b32.xlu0 %v2389, 96
    %v2391 = vpop.permute.xlu0 %2390
    %v2393 = vsel %vm1738, %v2387, 0
    %v2396 = vsel %vm1755, %v2391, 0
    %2398 = vmatprep.subr.bf16.mxu0 0
    %2399 = vmatpush1.bf16.msra.mxu0 0
    %2400 = vmatprep.subr.bf16.mxu0 0
    %2401 = vmatpush1.bf16.msra.mxu0 0
    %2402 = vmatprep.subr.bf16.mxu0 0
    %2403 = vmatpush1.bf16.msra.mxu0 0
    %2404 = vmatprep.subr.bf16.mxu0 0
    %2405 = vmatpush1.bf16.msra.mxu0 0
    %2406 = vmatprep.subr.bf16.mxu0 0
    %2407 = vmatpush1.bf16.msra.mxu0 0
    %2408 = vmatprep.subr.bf16.mxu0 0
    %2409 = vmatpush1.bf16.msra.mxu0 0
    %2410 = vmatprep.subr.bf16.mxu0 0
    %2411 = vmatpush1.bf16.msra.mxu0 0
    %2412 = vmatprep.subr.bf16.mxu0 0
    %2413 = vmatpush1.bf16.msra.mxu0 %v2396
    %2414 = vmatprep.subr.bf16.mxu0 0
    %2415 = vmatpush2.bf16.msra.mxu0 0
    %2416 = vmatprep.subr.bf16.mxu0 0
    %2417 = vmatpush2.bf16.msra.mxu0 0
    %2418 = vmatprep.subr.bf16.mxu0 0
    %2419 = vmatpush2.bf16.msra.mxu0 0
    %2420 = vmatprep.subr.bf16.mxu0 0
    %2421 = vmatpush2.bf16.msra.mxu0 0
    %2422 = vmatprep.subr.bf16.mxu0 0
    %2423 = vmatpush2.bf16.msra.mxu0 0
    %2424 = vmatprep.subr.bf16.mxu0 0
    %2425 = vmatpush2.bf16.msra.mxu0 0
    %2426 = vmatprep.subr.bf16.mxu0 0
    %2427 = vmatpush2.bf16.msra.mxu0 0
    %2428 = vmatprep.subr.bf16.mxu0 0
    %2429 = vmatpush2.bf16.msra.mxu0 0
    %2430 = vmatprep.mubr.bf16.mxu0 0
    %2431 = vmatmul.mubr.bf16.gmra.mxu0 %v2393
    %v2432 = vpop.f32.mrf.mxu0
    %v2433 = vadd.f32 0.0, %v2432
    %v2434 = vpop.f32.mrf.mxu0
    %v2435 = vpop.f32.mrf.mxu0
    %v2436 = vpop.f32.mrf.mxu0
    %2437 = vdwg.mxu0
    %v2438 = vrcp.pop %v2386
    %v2439 = vmul.f32 %v2433, %v2438
    %v2440 = vpack.c.bf16 %v2439, %v2439
    %2442 = vrot.lane.b32.xlu0 %v2327, 120
    %v2443 = vpop.permute.xlu0 %2442
    %2444 = vrot.lane.b32.xlu0 %v2331, 120
    %v2445 = vpop.permute.xlu0 %2444
    %v2447 = vsel %vm227, %v2443, 0
    %v2450 = vsel %vm227, %v2445, 0
    %2452 = vmatprep.subr.bf16.mxu0 0
    %2453 = vmatpush1.bf16.xpose.msra.mxu0 0
    %2454 = vmatprep.subr.bf16.mxu0 0
    %2455 = vmatpush1.bf16.xpose.msra.mxu0 0
    %2456 = vmatprep.subr.bf16.mxu0 0
    %2457 = vmatpush1.bf16.xpose.msra.mxu0 0
    %2458 = vmatprep.subr.bf16.mxu0 0
    %2459 = vmatpush1.bf16.xpose.msra.mxu0 0
    %2460 = vmatprep.subr.bf16.mxu0 0
    %2461 = vmatpush1.bf16.xpose.msra.mxu0 0
    %2462 = vmatprep.subr.bf16.mxu0 0
    %2463 = vmatpush1.bf16.xpose.msra.mxu0 0
    %2464 = vmatprep.subr.bf16.mxu0 0
    %2465 = vmatpush1.bf16.xpose.msra.mxu0 0
    %2466 = vmatprep.subr.bf16.mxu0 0
    %2467 = vmatpush1.bf16.xpose.msra.mxu0 %v2450
    %2468 = vmatprep.subr.bf16.mxu0 0
    %2469 = vmatpush2.bf16.xpose.msra.mxu0 0
    %2470 = vmatprep.subr.bf16.mxu0 0
    %2471 = vmatpush2.bf16.xpose.msra.mxu0 0
    %2472 = vmatprep.subr.bf16.mxu0 0
    %2473 = vmatpush2.bf16.xpose.msra.mxu0 0
    %2474 = vmatprep.subr.bf16.mxu0 0
    %2475 = vmatpush2.bf16.xpose.msra.mxu0 0
    %2476 = vmatprep.subr.bf16.mxu0 0
    %2477 = vmatpush2.bf16.xpose.msra.mxu0 0
    %2478 = vmatprep.subr.bf16.mxu0 0
    %2479 = vmatpush2.bf16.xpose.msra.mxu0 0
    %2480 = vmatprep.subr.bf16.mxu0 0
    %2481 = vmatpush2.bf16.xpose.msra.mxu0 0
    %2482 = vmatprep.subr.bf16.mxu0 0
    %2483 = vmatpush2.bf16.xpose.msra.mxu0 0
    %2484 = vmatprep.mubr.bf16.mxu0 0
    %2485 = vmatmul.mubr.bf16.gmra.mxu0 %v2447
    %v2486 = vpop.f32.mrf.mxu0
    %v2487 = vadd.f32 0.0, %v2486
    %v2488 = vpop.f32.mrf.mxu0
    %v2489 = vpop.f32.mrf.mxu0
    %v2490 = vpop.f32.mrf.mxu0
    %2491 = vdwg.mxu0
    %v2492 = vsel %vm1738, %v2487, -inf
    %2493 = vmax.xlane.f32.xlu0 %v2492
    %v2494 = vpop.xlane.xlu0 %2493
    %v2495 = vsub.f32 %v2487, %v2494
    %v2496 = vmul.f32 %v2495, 1.442695
    %v2497 = vpow.pop %v2496
    %v2498 = vsel %vm1738, %v2497, 0.0
    %2499 = vadd.xlane.f32.xlu0 %v2498
    %v2500 = vpop.xlane.xlu0 %2499
    %v2501 = vpack.c.bf16 %v2497, %v2497
    %2502 = vrot.lane.b32.xlu0 %v2389, 88
    %v2503 = vpop.permute.xlu0 %2502
    %v2505 = vsel %vm1738, %v2501, 0
    %v2508 = vsel %vm1755, %v2503, 0
    %2510 = vmatprep.subr.bf16.mxu0 0
    %2511 = vmatpush1.bf16.msra.mxu0 0
    %2512 = vmatprep.subr.bf16.mxu0 0
    %2513 = vmatpush1.bf16.msra.mxu0 0
    %2514 = vmatprep.subr.bf16.mxu0 0
    %2515 = vmatpush1.bf16.msra.mxu0 0
    %2516 = vmatprep.subr.bf16.mxu0 0
    %2517 = vmatpush1.bf16.msra.mxu0 0
    %2518 = vmatprep.subr.bf16.mxu0 0
    %2519 = vmatpush1.bf16.msra.mxu0 0
    %2520 = vmatprep.subr.bf16.mxu0 0
    %2521 = vmatpush1.bf16.msra.mxu0 0
    %2522 = vmatprep.subr.bf16.mxu0 0
    %2523 = vmatpush1.bf16.msra.mxu0 0
    %2524 = vmatprep.subr.bf16.mxu0 0
    %2525 = vmatpush1.bf16.msra.mxu0 %v2508
    %2526 = vmatprep.subr.bf16.mxu0 0
    %2527 = vmatpush2.bf16.msra.mxu0 0
    %2528 = vmatprep.subr.bf16.mxu0 0
    %2529 = vmatpush2.bf16.msra.mxu0 0
    %2530 = vmatprep.subr.bf16.mxu0 0
    %2531 = vmatpush2.bf16.msra.mxu0 0
    %2532 = vmatprep.subr.bf16.mxu0 0
    %2533 = vmatpush2.bf16.msra.mxu0 0
    %2534 = vmatprep.subr.bf16.mxu0 0
    %2535 = vmatpush2.bf16.msra.mxu0 0
    %2536 = vmatprep.subr.bf16.mxu0 0
    %2537 = vmatpush2.bf16.msra.mxu0 0
    %2538 = vmatprep.subr.bf16.mxu0 0
    %2539 = vmatpush2.bf16.msra.mxu0 0
    %2540 = vmatprep.subr.bf16.mxu0 0
    %2541 = vmatpush2.bf16.msra.mxu0 0
    %2542 = vmatprep.mubr.bf16.mxu0 0
    %2543 = vmatmul.mubr.bf16.gmra.mxu0 %v2505
    %v2544 = vpop.f32.mrf.mxu0
    %v2545 = vadd.f32 0.0, %v2544
    %v2546 = vpop.f32.mrf.mxu0
    %v2547 = vpop.f32.mrf.mxu0
    %v2548 = vpop.f32.mrf.mxu0
    %2549 = vdwg.mxu0
    %v2550 = vrcp.pop %v2500
    %v2551 = vmul.f32 %v2545, %v2550
    %v2552 = vpack.c.bf16 %v2551, %v2551
    %v2554 = vsel %vm227, %v2552, 0
    %2556 = vmatprep.subr.bf16.mxu0 0
    %2557 = vmatpush1.bf16.msra.mxu0 0
    %2558 = vmatprep.subr.bf16.mxu0 0
    %2559 = vmatpush1.bf16.msra.mxu0 0
    %2560 = vmatprep.subr.bf16.mxu0 0
    %2561 = vmatpush1.bf16.msra.mxu0 0
    %2562 = vmatprep.subr.bf16.mxu0 0
    %2563 = vmatpush1.bf16.msra.mxu0 0
    %2564 = vmatprep.subr.bf16.mxu0 0
    %2565 = vmatpush1.bf16.msra.mxu0 0
    %2566 = vmatprep.subr.bf16.mxu0 0
    %2567 = vmatpush1.bf16.msra.mxu0 0
    %2568 = vmatprep.subr.bf16.mxu0 0
    %2569 = vmatpush1.bf16.msra.mxu0 0
    %2570 = vmatprep.subr.bf16.mxu0 0
    %2571 = vmatpush1.bf16.msra.mxu0 %v1921
    %2572 = vmatprep.subr.bf16.mxu0 0
    %2573 = vmatpush2.bf16.msra.mxu0 0
    %2574 = vmatprep.subr.bf16.mxu0 0
    %2575 = vmatpush2.bf16.msra.mxu0 0
    %2576 = vmatprep.subr.bf16.mxu0 0
    %2577 = vmatpush2.bf16.msra.mxu0 0
    %2578 = vmatprep.subr.bf16.mxu0 0
    %2579 = vmatpush2.bf16.msra.mxu0 0
    %2580 = vmatprep.subr.bf16.mxu0 0
    %2581 = vmatpush2.bf16.msra.mxu0 0
    %2582 = vmatprep.subr.bf16.mxu0 0
    %2583 = vmatpush2.bf16.msra.mxu0 0
    %2584 = vmatprep.subr.bf16.mxu0 0
    %2585 = vmatpush2.bf16.msra.mxu0 0
    %2586 = vmatprep.subr.bf16.mxu0 0
    %2587 = vmatpush2.bf16.msra.mxu0 0
    %2588 = vmatprep.mubr.bf16.mxu0 0
    %2589 = vmatmul.mubr.bf16.gmra.mxu0 %v2554
    %v2590 = vpop.f32.mrf.mxu0
    %v2591 = vadd.f32 0.0, %v2590
    %v2592 = vpop.f32.mrf.mxu0
    %v2593 = vpop.f32.mrf.mxu0
    %v2594 = vpop.f32.mrf.mxu0
    %2595 = vdwg.mxu0
    %v2597 = vsel %vm227, %v2440, 0
    %2599 = vmatprep.subr.bf16.mxu0 0
    %2600 = vmatpush1.bf16.msra.mxu0 0
    %2601 = vmatprep.subr.bf16.mxu0 0
    %2602 = vmatpush1.bf16.msra.mxu0 0
    %2603 = vmatprep.subr.bf16.mxu0 0
    %2604 = vmatpush1.bf16.msra.mxu0 0
    %2605 = vmatprep.subr.bf16.mxu0 0
    %2606 = vmatpush1.bf16.msra.mxu0 0
    %2607 = vmatprep.subr.bf16.mxu0 0
    %2608 = vmatpush1.bf16.msra.mxu0 0
    %2609 = vmatprep.subr.bf16.mxu0 0
    %2610 = vmatpush1.bf16.msra.mxu0 0
    %2611 = vmatprep.subr.bf16.mxu0 0
    %2612 = vmatpush1.bf16.msra.mxu0 0
    %2613 = vmatprep.subr.bf16.mxu0 0
    %2614 = vmatpush1.bf16.msra.mxu0 %v1967
    %2615 = vmatprep.subr.bf16.mxu0 0
    %2616 = vmatpush2.bf16.msra.mxu0 0
    %2617 = vmatprep.subr.bf16.mxu0 0
    %2618 = vmatpush2.bf16.msra.mxu0 0
    %2619 = vmatprep.subr.bf16.mxu0 0
    %2620 = vmatpush2.bf16.msra.mxu0 0
    %2621 = vmatprep.subr.bf16.mxu0 0
    %2622 = vmatpush2.bf16.msra.mxu0 0
    %2623 = vmatprep.subr.bf16.mxu0 0
    %2624 = vmatpush2.bf16.msra.mxu0 0
    %2625 = vmatprep.subr.bf16.mxu0 0
    %2626 = vmatpush2.bf16.msra.mxu0 0
    %2627 = vmatprep.subr.bf16.mxu0 0
    %2628 = vmatpush2.bf16.msra.mxu0 0
    %2629 = vmatprep.subr.bf16.mxu0 0
    %2630 = vmatpush2.bf16.msra.mxu0 0
    %2631 = vmatprep.mubr.bf16.mxu0 0
    %2632 = vmatmul.mubr.bf16.gmra.mxu0 %v2597
    %v2633 = vpop.f32.mrf.mxu0
    %v2634 = vadd.f32 %v2591, %v2633
    %v2635 = vpop.f32.mrf.mxu0
    %v2636 = vpop.f32.mrf.mxu0
    %v2637 = vpop.f32.mrf.mxu0
    %2638 = vdwg.mxu0
    %2639 = vrot.lane.b32.xlu0 %v2327, 112
    %v2640 = vpop.permute.xlu0 %2639
    %2641 = vrot.lane.b32.xlu0 %v2331, 112
    %v2642 = vpop.permute.xlu0 %2641
    %v2644 = vsel %vm227, %v2640, 0
    %v2647 = vsel %vm227, %v2642, 0
    %2649 = vmatprep.subr.bf16.mxu0 0
    %2650 = vmatpush1.bf16.xpose.msra.mxu0 0
    %2651 = vmatprep.subr.bf16.mxu0 0
    %2652 = vmatpush1.bf16.xpose.msra.mxu0 0
    %2653 = vmatprep.subr.bf16.mxu0 0
    %2654 = vmatpush1.bf16.xpose.msra.mxu0 0
    %2655 = vmatprep.subr.bf16.mxu0 0
    %2656 = vmatpush1.bf16.xpose.msra.mxu0 0
    %2657 = vmatprep.subr.bf16.mxu0 0
    %2658 = vmatpush1.bf16.xpose.msra.mxu0 0
    %2659 = vmatprep.subr.bf16.mxu0 0
    %2660 = vmatpush1.bf16.xpose.msra.mxu0 0
    %2661 = vmatprep.subr.bf16.mxu0 0
    %2662 = vmatpush1.bf16.xpose.msra.mxu0 0
    %2663 = vmatprep.subr.bf16.mxu0 0
    %2664 = vmatpush1.bf16.xpose.msra.mxu0 %v2647
    %2665 = vmatprep.subr.bf16.mxu0 0
    %2666 = vmatpush2.bf16.xpose.msra.mxu0 0
    %2667 = vmatprep.subr.bf16.mxu0 0
    %2668 = vmatpush2.bf16.xpose.msra.mxu0 0
    %2669 = vmatprep.subr.bf16.mxu0 0
    %2670 = vmatpush2.bf16.xpose.msra.mxu0 0
    %2671 = vmatprep.subr.bf16.mxu0 0
    %2672 = vmatpush2.bf16.xpose.msra.mxu0 0
    %2673 = vmatprep.subr.bf16.mxu0 0
    %2674 = vmatpush2.bf16.xpose.msra.mxu0 0
    %2675 = vmatprep.subr.bf16.mxu0 0
    %2676 = vmatpush2.bf16.xpose.msra.mxu0 0
    %2677 = vmatprep.subr.bf16.mxu0 0
    %2678 = vmatpush2.bf16.xpose.msra.mxu0 0
    %2679 = vmatprep.subr.bf16.mxu0 0
    %2680 = vmatpush2.bf16.xpose.msra.mxu0 0
    %2681 = vmatprep.mubr.bf16.mxu0 0
    %2682 = vmatmul.mubr.bf16.gmra.mxu0 %v2644
    %v2683 = vpop.f32.mrf.mxu0
    %v2684 = vadd.f32 0.0, %v2683
    %v2685 = vpop.f32.mrf.mxu0
    %v2686 = vpop.f32.mrf.mxu0
    %v2687 = vpop.f32.mrf.mxu0
    %2688 = vdwg.mxu0
    %v2689 = vsel %vm1738, %v2684, -inf
    %2690 = vmax.xlane.f32.xlu0 %v2689
    %v2691 = vpop.xlane.xlu0 %2690
    %v2692 = vsub.f32 %v2684, %v2691
    %v2693 = vmul.f32 %v2692, 1.442695
    %v2694 = vpow.pop %v2693
    %v2695 = vsel %vm1738, %v2694, 0.0
    %2696 = vadd.xlane.f32.xlu0 %v2695
    %v2697 = vpop.xlane.xlu0 %2696
    %v2698 = vpack.c.bf16 %v2694, %v2694
    %2699 = vrot.lane.b32.xlu0 %v2389, 80
    %v2700 = vpop.permute.xlu0 %2699
    %v2702 = vsel %vm1738, %v2698, 0
    %v2705 = vsel %vm1755, %v2700, 0
    %2707 = vmatprep.subr.bf16.mxu0 0
    %2708 = vmatpush1.bf16.msra.mxu0 0
    %2709 = vmatprep.subr.bf16.mxu0 0
    %2710 = vmatpush1.bf16.msra.mxu0 0
    %2711 = vmatprep.subr.bf16.mxu0 0
    %2712 = vmatpush1.bf16.msra.mxu0 0
    %2713 = vmatprep.subr.bf16.mxu0 0
    %2714 = vmatpush1.bf16.msra.mxu0 0
    %2715 = vmatprep.subr.bf16.mxu0 0
    %2716 = vmatpush1.bf16.msra.mxu0 0
    %2717 = vmatprep.subr.bf16.mxu0 0
    %2718 = vmatpush1.bf16.msra.mxu0 0
    %2719 = vmatprep.subr.bf16.mxu0 0
    %2720 = vmatpush1.bf16.msra.mxu0 0
    %2721 = vmatprep.subr.bf16.mxu0 0
    %2722 = vmatpush1.bf16.msra.mxu0 %v2705
    %2723 = vmatprep.subr.bf16.mxu0 0
    %2724 = vmatpush2.bf16.msra.mxu0 0
    %2725 = vmatprep.subr.bf16.mxu0 0
    %2726 = vmatpush2.bf16.msra.mxu0 0
    %2727 = vmatprep.subr.bf16.mxu0 0
    %2728 = vmatpush2.bf16.msra.mxu0 0
    %2729 = vmatprep.subr.bf16.mxu0 0
    %2730 = vmatpush2.bf16.msra.mxu0 0
    %2731 = vmatprep.subr.bf16.mxu0 0
    %2732 = vmatpush2.bf16.msra.mxu0 0
    %2733 = vmatprep.subr.bf16.mxu0 0
    %2734 = vmatpush2.bf16.msra.mxu0 0
    %2735 = vmatprep.subr.bf16.mxu0 0
    %2736 = vmatpush2.bf16.msra.mxu0 0
    %2737 = vmatprep.subr.bf16.mxu0 0
    %2738 = vmatpush2.bf16.msra.mxu0 0
    %2739 = vmatprep.mubr.bf16.mxu0 0
    %2740 = vmatmul.mubr.bf16.gmra.mxu0 %v2702
    %v2741 = vpop.f32.mrf.mxu0
    %v2742 = vadd.f32 0.0, %v2741
    %v2743 = vpop.f32.mrf.mxu0
    %v2744 = vpop.f32.mrf.mxu0
    %v2745 = vpop.f32.mrf.mxu0
    %2746 = vdwg.mxu0
    %v2747 = vrcp.pop %v2697
    %v2748 = vmul.f32 %v2742, %v2747
    %v2749 = vpack.c.bf16 %v2748, %v2748
    %v2751 = vsel %vm227, %v2749, 0
    %2753 = vmatprep.subr.bf16.mxu0 0
    %2754 = vmatpush1.bf16.msra.mxu0 0
    %2755 = vmatprep.subr.bf16.mxu0 0
    %2756 = vmatpush1.bf16.msra.mxu0 0
    %2757 = vmatprep.subr.bf16.mxu0 0
    %2758 = vmatpush1.bf16.msra.mxu0 0
    %2759 = vmatprep.subr.bf16.mxu0 0
    %2760 = vmatpush1.bf16.msra.mxu0 0
    %2761 = vmatprep.subr.bf16.mxu0 0
    %2762 = vmatpush1.bf16.msra.mxu0 0
    %2763 = vmatprep.subr.bf16.mxu0 0
    %2764 = vmatpush1.bf16.msra.mxu0 0
    %2765 = vmatprep.subr.bf16.mxu0 0
    %2766 = vmatpush1.bf16.msra.mxu0 0
    %2767 = vmatprep.subr.bf16.mxu0 0
    %2768 = vmatpush1.bf16.msra.mxu0 %v2125
    %2769 = vmatprep.subr.bf16.mxu0 0
    %2770 = vmatpush2.bf16.msra.mxu0 0
    %2771 = vmatprep.subr.bf16.mxu0 0
    %2772 = vmatpush2.bf16.msra.mxu0 0
    %2773 = vmatprep.subr.bf16.mxu0 0
    %2774 = vmatpush2.bf16.msra.mxu0 0
    %2775 = vmatprep.subr.bf16.mxu0 0
    %2776 = vmatpush2.bf16.msra.mxu0 0
    %2777 = vmatprep.subr.bf16.mxu0 0
    %2778 = vmatpush2.bf16.msra.mxu0 0
    %2779 = vmatprep.subr.bf16.mxu0 0
    %2780 = vmatpush2.bf16.msra.mxu0 0
    %2781 = vmatprep.subr.bf16.mxu0 0
    %2782 = vmatpush2.bf16.msra.mxu0 0
    %2783 = vmatprep.subr.bf16.mxu0 0
    %2784 = vmatpush2.bf16.msra.mxu0 0
    %2785 = vmatprep.mubr.bf16.mxu0 0
    %2786 = vmatmul.mubr.bf16.gmra.mxu0 %v2751
    %v2787 = vpop.f32.mrf.mxu0
    %v2788 = vadd.f32 0.0, %v2787
    %v2789 = vpop.f32.mrf.mxu0
    %v2790 = vpop.f32.mrf.mxu0
    %v2791 = vpop.f32.mrf.mxu0
    %2792 = vdwg.mxu0
    %v2793 = vadd.f32 %v2634, %v2788
    %2794 = vrot.lane.b32.xlu0 %v2327, 104
    %v2795 = vpop.permute.xlu0 %2794
    %2796 = vrot.lane.b32.xlu0 %v2331, 104
    %v2797 = vpop.permute.xlu0 %2796
    %v2799 = vsel %vm227, %v2795, 0
    %v2802 = vsel %vm227, %v2797, 0
    %2804 = vmatprep.subr.bf16.mxu0 0
    %2805 = vmatpush1.bf16.xpose.msra.mxu0 0
    %2806 = vmatprep.subr.bf16.mxu0 0
    %2807 = vmatpush1.bf16.xpose.msra.mxu0 0
    %2808 = vmatprep.subr.bf16.mxu0 0
    %2809 = vmatpush1.bf16.xpose.msra.mxu0 0
    %2810 = vmatprep.subr.bf16.mxu0 0
    %2811 = vmatpush1.bf16.xpose.msra.mxu0 0
    %2812 = vmatprep.subr.bf16.mxu0 0
    %2813 = vmatpush1.bf16.xpose.msra.mxu0 0
    %2814 = vmatprep.subr.bf16.mxu0 0
    %2815 = vmatpush1.bf16.xpose.msra.mxu0 0
    %2816 = vmatprep.subr.bf16.mxu0 0
    %2817 = vmatpush1.bf16.xpose.msra.mxu0 0
    %2818 = vmatprep.subr.bf16.mxu0 0
    %2819 = vmatpush1.bf16.xpose.msra.mxu0 %v2802
    %2820 = vmatprep.subr.bf16.mxu0 0
    %2821 = vmatpush2.bf16.xpose.msra.mxu0 0
    %2822 = vmatprep.subr.bf16.mxu0 0
    %2823 = vmatpush2.bf16.xpose.msra.mxu0 0
    %2824 = vmatprep.subr.bf16.mxu0 0
    %2825 = vmatpush2.bf16.xpose.msra.mxu0 0
    %2826 = vmatprep.subr.bf16.mxu0 0
    %2827 = vmatpush2.bf16.xpose.msra.mxu0 0
    %2828 = vmatprep.subr.bf16.mxu0 0
    %2829 = vmatpush2.bf16.xpose.msra.mxu0 0
    %2830 = vmatprep.subr.bf16.mxu0 0
    %2831 = vmatpush2.bf16.xpose.msra.mxu0 0
    %2832 = vmatprep.subr.bf16.mxu0 0
    %2833 = vmatpush2.bf16.xpose.msra.mxu0 0
    %2834 = vmatprep.subr.bf16.mxu0 0
    %2835 = vmatpush2.bf16.xpose.msra.mxu0 0
    %2836 = vmatprep.mubr.bf16.mxu0 0
    %2837 = vmatmul.mubr.bf16.gmra.mxu0 %v2799
    %v2838 = vpop.f32.mrf.mxu0
    %v2839 = vadd.f32 0.0, %v2838
    %v2840 = vpop.f32.mrf.mxu0
    %v2841 = vpop.f32.mrf.mxu0
    %v2842 = vpop.f32.mrf.mxu0
    %2843 = vdwg.mxu0
    %v2844 = vsel %vm1738, %v2839, -inf
    %2845 = vmax.xlane.f32.xlu0 %v2844
    %v2846 = vpop.xlane.xlu0 %2845
    %v2847 = vsub.f32 %v2839, %v2846
    %v2848 = vmul.f32 %v2847, 1.442695
    %v2849 = vpow.pop %v2848
    %v2850 = vsel %vm1738, %v2849, 0.0
    %2851 = vadd.xlane.f32.xlu0 %v2850
    %v2852 = vpop.xlane.xlu0 %2851
    %v2853 = vpack.c.bf16 %v2849, %v2849
    %2854 = vrot.lane.b32.xlu0 %v2389, 72
    %v2855 = vpop.permute.xlu0 %2854
    %v2857 = vsel %vm1738, %v2853, 0
    %v2860 = vsel %vm1755, %v2855, 0
    %2862 = vmatprep.subr.bf16.mxu0 0
    %2863 = vmatpush1.bf16.msra.mxu0 0
    %2864 = vmatprep.subr.bf16.mxu0 0
    %2865 = vmatpush1.bf16.msra.mxu0 0
    %2866 = vmatprep.subr.bf16.mxu0 0
    %2867 = vmatpush1.bf16.msra.mxu0 0
    %2868 = vmatprep.subr.bf16.mxu0 0
    %2869 = vmatpush1.bf16.msra.mxu0 0
    %2870 = vmatprep.subr.bf16.mxu0 0
    %2871 = vmatpush1.bf16.msra.mxu0 0
    %2872 = vmatprep.subr.bf16.mxu0 0
    %2873 = vmatpush1.bf16.msra.mxu0 0
    %2874 = vmatprep.subr.bf16.mxu0 0
    %2875 = vmatpush1.bf16.msra.mxu0 0
    %2876 = vmatprep.subr.bf16.mxu0 0
    %2877 = vmatpush1.bf16.msra.mxu0 %v2860
    %2878 = vmatprep.subr.bf16.mxu0 0
    %2879 = vmatpush2.bf16.msra.mxu0 0
    %2880 = vmatprep.subr.bf16.mxu0 0
    %2881 = vmatpush2.bf16.msra.mxu0 0
    %2882 = vmatprep.subr.bf16.mxu0 0
    %2883 = vmatpush2.bf16.msra.mxu0 0
    %2884 = vmatprep.subr.bf16.mxu0 0
    %2885 = vmatpush2.bf16.msra.mxu0 0
    %2886 = vmatprep.subr.bf16.mxu0 0
    %2887 = vmatpush2.bf16.msra.mxu0 0
    %2888 = vmatprep.subr.bf16.mxu0 0
    %2889 = vmatpush2.bf16.msra.mxu0 0
    %2890 = vmatprep.subr.bf16.mxu0 0
    %2891 = vmatpush2.bf16.msra.mxu0 0
    %2892 = vmatprep.subr.bf16.mxu0 0
    %2893 = vmatpush2.bf16.msra.mxu0 0
    %2894 = vmatprep.mubr.bf16.mxu0 0
    %2895 = vmatmul.mubr.bf16.gmra.mxu0 %v2857
    %v2896 = vpop.f32.mrf.mxu0
    %v2897 = vadd.f32 0.0, %v2896
    %v2898 = vpop.f32.mrf.mxu0
    %v2899 = vpop.f32.mrf.mxu0
    %v2900 = vpop.f32.mrf.mxu0
    %2901 = vdwg.mxu0
    %v2902 = vrcp.pop %v2852
    %v2903 = vmul.f32 %v2897, %v2902
    %v2904 = vpack.c.bf16 %v2903, %v2903
    %v2906 = vsel %vm227, %v2904, 0
    %2908 = vmatprep.subr.bf16.mxu0 0
    %2909 = vmatpush1.bf16.msra.mxu0 0
    %2910 = vmatprep.subr.bf16.mxu0 0
    %2911 = vmatpush1.bf16.msra.mxu0 0
    %2912 = vmatprep.subr.bf16.mxu0 0
    %2913 = vmatpush1.bf16.msra.mxu0 0
    %2914 = vmatprep.subr.bf16.mxu0 0
    %2915 = vmatpush1.bf16.msra.mxu0 0
    %2916 = vmatprep.subr.bf16.mxu0 0
    %2917 = vmatpush1.bf16.msra.mxu0 0
    %2918 = vmatprep.subr.bf16.mxu0 0
    %2919 = vmatpush1.bf16.msra.mxu0 0
    %2920 = vmatprep.subr.bf16.mxu0 0
    %2921 = vmatpush1.bf16.msra.mxu0 0
    %2922 = vmatprep.subr.bf16.mxu0 0
    %2923 = vmatpush1.bf16.msra.mxu0 %v2284
    %2924 = vmatprep.subr.bf16.mxu0 0
    %2925 = vmatpush2.bf16.msra.mxu0 0
    %2926 = vmatprep.subr.bf16.mxu0 0
    %2927 = vmatpush2.bf16.msra.mxu0 0
    %2928 = vmatprep.subr.bf16.mxu0 0
    %2929 = vmatpush2.bf16.msra.mxu0 0
    %2930 = vmatprep.subr.bf16.mxu0 0
    %2931 = vmatpush2.bf16.msra.mxu0 0
    %2932 = vmatprep.subr.bf16.mxu0 0
    %2933 = vmatpush2.bf16.msra.mxu0 0
    %2934 = vmatprep.subr.bf16.mxu0 0
    %2935 = vmatpush2.bf16.msra.mxu0 0
    %2936 = vmatprep.subr.bf16.mxu0 0
    %2937 = vmatpush2.bf16.msra.mxu0 0
    %2938 = vmatprep.subr.bf16.mxu0 0
    %2939 = vmatpush2.bf16.msra.mxu0 0
    %2940 = vmatprep.mubr.bf16.mxu0 0
    %2941 = vmatmul.mubr.bf16.gmra.mxu0 %v2906
    %v2942 = vpop.f32.mrf.mxu0
    %v2943 = vadd.f32 0.0, %v2942
    %v2944 = vpop.f32.mrf.mxu0
    %v2945 = vpop.f32.mrf.mxu0
    %v2946 = vpop.f32.mrf.mxu0
    %2947 = vdwg.mxu0
    %v2948 = vadd.f32 %v2793, %v2943
    %v2949 = vlaneseq
    %v2950 = vshrl.u32 %v2949, 7
    %v2951 = vsub.s32 0, %v2950
    %v2952 = vrot.slane %v1688, %v2951
    %v2953 = vadd.f32 %v2326, %v2952
    %v2954 = vadd.f32 %v2948, %v2952
    %v2955 = vadd.f32 %v1530, %v2953
    %v2956 = vadd.f32 %v1531, %v2954
    %v2957 = vld [vmem:[#allocation11 + $0xb] sm:$0x1]
    %v2958 = vld [vmem:[#allocation11 + $0xc] sm:$0x1]
    %v2959 = vsel %vm146, %v2955, 0.0
    %2960 = vadd.xlane.f32.xlu0 %v2959
    %v2961 = vpop.xlane.xlu0 %2960
    %v2962 = vsel %vm146, %v2956, 0.0
    %2963 = vadd.xlane.f32.xlu0 %v2962
    %v2964 = vpop.xlane.xlu0 %2963
    %v2965 = vmul.f32 %v2961, %v1499
    %v2966 = vmul.f32 %v2964, %v1499
    %v2967 = vsub.f32 %v2955, %v2965
    %v2968 = vsub.f32 %v2956, %v2966
    %v2969 = vmul.f32 %v2967, %v2967
    %v2970 = vmul.f32 %v2968, %v2968
    %v2971 = vsel %vm146, %v2969, 0.0
    %2972 = vadd.xlane.f32.xlu0 %v2971
    %v2973 = vpop.xlane.xlu0 %2972
    %v2974 = vsel %vm146, %v2970, 0.0
    %2975 = vadd.xlane.f32.xlu0 %v2974
    %v2976 = vpop.xlane.xlu0 %2975
    %v2977 = vmul.f32 %v2973, %v1499
    %v2978 = vmul.f32 %v2976, %v1499
    %v2979 = vadd.f32 %v2977, 1e-05
    %v2980 = vadd.f32 %v2978, 1e-05
    %v2981 = vrsqrt.pop %v2979
    %v2982 = vrsqrt.pop %v2980
    %v2983 = vmul.f32 %v2967, %v2981
    %v2984 = vmul.f32 %v2968, %v2982
    %v2985 = vlaneseq
    %v2986 = vshrl.u32 %v2985, 7
    %v2987 = vsub.s32 0, %v2986
    %v2988 = vrot.slane %v2957, %v2987
    %v2989 = vmul.f32 %v2983, %v2988
    %v2990 = vmul.f32 %v2984, %v2988
    %v2991 = vlaneseq
    %v2992 = vshrl.u32 %v2991, 7
    %v2993 = vsub.s32 0, %v2992
    %v2994 = vrot.slane %v2958, %v2993
    %v2995 = vadd.f32 %v2989, %v2994
    %v2996 = vadd.f32 %v2990, %v2994
    %v2997 = vpack.c.bf16 %v2996, %v2995
    %v2998 = vld [vmem:[#allocation10] sm:$0xf]
    %v2999 = vld [vmem:[#allocation10 + $0x4] sm:$0xf]
    %v3000 = vld [vmem:[#allocation10 + $0x8] sm:$0xf]
    %v3001 = vld [vmem:[#allocation10 + $0xc] sm:$0xf]
    %v3002 = vld [vmem:[%s10] sm:$0x1]
    %v3004 = vlaneseq
    %v3005 = vshrl.u32 %v3004, 7
    %v3006 = vsub.s32 0, %v3005
    %v3007 = vrot.slane %v3002, %v3006
    %v3013 = vunpack.c.l.b16 %v2998
    %v3014 = vunpack.c.l.b16 %v2999
    %v3015 = vunpack.c.l.b16 %v3000
    %v3016 = vunpack.c.l.b16 %v3001
    %v3017 = vpack.c.b16 %v3014, %v3013
    %v3018 = vpack.c.b16 %v3016, %v3015
    %v3022 = vsel %vm146, %v2997, 0
    %3024 = vmatprep.subr.bf16.mxu0 0
    %3025 = vmatpush1.bf16.msra.mxu0 0
    %3026 = vmatprep.subr.bf16.mxu0 0
    %3027 = vmatpush1.bf16.msra.mxu0 0
    %3028 = vmatprep.subr.bf16.mxu0 0
    %3029 = vmatpush1.bf16.msra.mxu0 0
    %3030 = vmatprep.subr.bf16.mxu0 0
    %3031 = vmatpush1.bf16.msra.mxu0 0
    %3032 = vmatprep.subr.bf16.mxu0 0
    %3033 = vmatpush1.bf16.msra.mxu0 0
    %3034 = vmatprep.subr.bf16.mxu0 0
    %3035 = vmatpush1.bf16.msra.mxu0 0
    %3036 = vmatprep.subr.bf16.mxu0 0
    %3037 = vmatpush1.bf16.msra.mxu0 %v3018
    %3038 = vmatprep.subr.bf16.mxu0 0
    %3039 = vmatpush1.bf16.msra.mxu0 %v3017
    %3040 = vmatprep.subr.bf16.mxu0 0
    %3041 = vmatpush2.bf16.msra.mxu0 0
    %3042 = vmatprep.subr.bf16.mxu0 0
    %3043 = vmatpush2.bf16.msra.mxu0 0
    %3044 = vmatprep.subr.bf16.mxu0 0
    %3045 = vmatpush2.bf16.msra.mxu0 0
    %3046 = vmatprep.subr.bf16.mxu0 0
    %3047 = vmatpush2.bf16.msra.mxu0 0
    %3048 = vmatprep.subr.bf16.mxu0 0
    %3049 = vmatpush2.bf16.msra.mxu0 0
    %3050 = vmatprep.subr.bf16.mxu0 0
    %3051 = vmatpush2.bf16.msra.mxu0 0
    %3052 = vmatprep.subr.bf16.mxu0 0
    %3053 = vmatpush2.bf16.msra.mxu0 0
    %3054 = vmatprep.subr.bf16.mxu0 0
    %3055 = vmatpush2.bf16.msra.mxu0 0
    %3056 = vmatprep.mubr.bf16.mxu0 0
    %3057 = vmatmul.mubr.bf16.gmra.mxu0 %v3022
    %v3058 = vpop.f32.mrf.mxu0
    %v3059 = vadd.f32 %v3007, %v3058
    %v3060 = vpop.f32.mrf.mxu0
    %v3061 = vpop.f32.mrf.mxu0
    %v3062 = vadd.f32 %v3007, %v3061
    %v3063 = vpop.f32.mrf.mxu0
    %3064 = vdwg.mxu0
    %v3065 = vmax.f32 %v3059, 0.0
    %v3066 = vmax.f32 %v3062, 0.0
    %v3067 = vpack.c.bf16 %v3066, %v3065
    %v3068 = vld [vmem:[%s8] sm:$0xf]
    %v3069 = vld [vmem:[%s8 + $0x4] sm:$0xf]
    %v3070 = vld [vmem:[%s8 + $0x8] sm:$0xf]
    %v3071 = vld [vmem:[%s8 + $0xc] sm:$0xf]
    %v3072 = vld [vmem:[%s8 + $0x10] sm:$0xf]
    %v3073 = vld [vmem:[%s8 + $0x14] sm:$0xf]
    %v3074 = vld [vmem:[%s8 + $0x18] sm:$0xf]
    %v3075 = vld [vmem:[%s8 + $0x1c] sm:$0xf]
    %v3076 = vld [vmem:[#allocation11 + $0x8] sm:$0x1]
    %v3077 = vlaneseq
    %v3078 = vshrl.u32 %v3077, 7
    %v3079 = vsub.s32 0, %v3078
    %v3080 = vrot.slane %v3076, %v3079
    %v3089 = vunpack.c.l.b16 %v3068
    %v3090 = vunpack.c.l.b16 %v3069
    %v3091 = vunpack.c.l.b16 %v3070
    %v3092 = vunpack.c.l.b16 %v3071
    %v3093 = vunpack.c.l.b16 %v3072
    %v3094 = vunpack.c.l.b16 %v3073
    %v3095 = vunpack.c.l.b16 %v3074
    %v3096 = vunpack.c.l.b16 %v3075
    %v3097 = vpack.c.b16 %v3090, %v3089
    %v3098 = vpack.c.b16 %v3092, %v3091
    %v3099 = vpack.c.b16 %v3094, %v3093
    %v3100 = vpack.c.b16 %v3096, %v3095
    %vm3105 = vcmask 523264
    %v3107 = vsel %vm3105, %v3067, 0
    %3109 = vmatprep.subr.bf16.mxu0 0
    %3110 = vmatpush1.bf16.msra.mxu0 0
    %3111 = vmatprep.subr.bf16.mxu0 0
    %3112 = vmatpush1.bf16.msra.mxu0 0
    %3113 = vmatprep.subr.bf16.mxu0 0
    %3114 = vmatpush1.bf16.msra.mxu0 0
    %3115 = vmatprep.subr.bf16.mxu0 0
    %3116 = vmatpush1.bf16.msra.mxu0 0
    %3117 = vmatprep.subr.bf16.mxu0 0
    %3118 = vmatpush1.bf16.msra.mxu0 %v3100
    %3119 = vmatprep.subr.bf16.mxu0 0
    %3120 = vmatpush1.bf16.msra.mxu0 %v3099
    %3121 = vmatprep.subr.bf16.mxu0 0
    %3122 = vmatpush1.bf16.msra.mxu0 %v3098
    %3123 = vmatprep.subr.bf16.mxu0 0
    %3124 = vmatpush1.bf16.msra.mxu0 %v3097
    %3125 = vmatprep.subr.bf16.mxu0 0
    %3126 = vmatpush2.bf16.msra.mxu0 0
    %3127 = vmatprep.subr.bf16.mxu0 0
    %3128 = vmatpush2.bf16.msra.mxu0 0
    %3129 = vmatprep.subr.bf16.mxu0 0
    %3130 = vmatpush2.bf16.msra.mxu0 0
    %3131 = vmatprep.subr.bf16.mxu0 0
    %3132 = vmatpush2.bf16.msra.mxu0 0
    %3133 = vmatprep.subr.bf16.mxu0 0
    %3134 = vmatpush2.bf16.msra.mxu0 0
    %3135 = vmatprep.subr.bf16.mxu0 0
    %3136 = vmatpush2.bf16.msra.mxu0 0
    %3137 = vmatprep.subr.bf16.mxu0 0
    %3138 = vmatpush2.bf16.msra.mxu0 0
    %3139 = vmatprep.subr.bf16.mxu0 0
    %3140 = vmatpush2.bf16.msra.mxu0 0
    %3141 = vmatprep.mubr.bf16.mxu0 0
    %3142 = vmatmul.mubr.bf16.gmra.mxu0 %v3107
    %v3143 = vpop.f32.mrf.mxu0
    %v3144 = vadd.f32 %v3080, %v3143
    %v3145 = vpop.f32.mrf.mxu0
    %v3146 = vpop.f32.mrf.mxu0
    %v3147 = vadd.f32 %v3080, %v3146
    %v3148 = vpop.f32.mrf.mxu0
    %3149 = vdwg.mxu0
    %v3150 = vadd.f32 %v2995, %v3144
    %v3151 = vadd.f32 %v2996, %v3147
    %v3152 = vld [vmem:[#allocation11 + $0xd] sm:$0x1]
    %v3153 = vld [vmem:[#allocation11 + $0xe] sm:$0x1]
    %v3154 = vsel %vm146, %v3150, 0.0
    %3155 = vadd.xlane.f32.xlu0 %v3154
    %v3156 = vpop.xlane.xlu0 %3155
    %v3157 = vsel %vm146, %v3151, 0.0
    %3158 = vadd.xlane.f32.xlu0 %v3157
    %v3159 = vpop.xlane.xlu0 %3158
    %v3160 = vmul.f32 %v3156, %v1499
    %v3161 = vmul.f32 %v3159, %v1499
    %v3162 = vsub.f32 %v3150, %v3160
    %v3163 = vsub.f32 %v3151, %v3161
    %v3164 = vmul.f32 %v3162, %v3162
    %v3165 = vmul.f32 %v3163, %v3163
    %v3166 = vsel %vm146, %v3164, 0.0
    %3167 = vadd.xlane.f32.xlu0 %v3166
    %v3168 = vpop.xlane.xlu0 %3167
    %v3169 = vsel %vm146, %v3165, 0.0
    %3170 = vadd.xlane.f32.xlu0 %v3169
    %v3171 = vpop.xlane.xlu0 %3170
    %v3172 = vmul.f32 %v3168, %v1499
    %v3173 = vmul.f32 %v3171, %v1499
    %v3174 = vadd.f32 %v3172, 1e-05
    %v3175 = vadd.f32 %v3173, 1e-05
    %v3176 = vrsqrt.pop %v3174
    %v3177 = vrsqrt.pop %v3175
    %v3178 = vmul.f32 %v3162, %v3176
    %v3179 = vmul.f32 %v3163, %v3177
    %v3180 = vlaneseq
    %v3181 = vshrl.u32 %v3180, 7
    %v3182 = vsub.s32 0, %v3181
    %v3183 = vrot.slane %v3152, %v3182
    %v3184 = vmul.f32 %v3178, %v3183
    %v3185 = vmul.f32 %v3179, %v3183
    %v3186 = vlaneseq
    %v3187 = vshrl.u32 %v3186, 7
    %v3188 = vsub.s32 0, %v3187
    %v3189 = vrot.slane %v3153, %v3188
    %v3190 = vadd.f32 %v3184, %v3189
    %v3191 = vadd.f32 %v3185, %v3189
    %3192 = vst.msk [vmem:[#allocation13] sm:$0xff] %vm146, %v3190
    %3193 = vst.msk [vmem:[#allocation13 + $0x8] sm:$0xff] %vm146, %v3191
    // Predicated region
    $region70: #{tpu_custom_call.1} parent=1 // pred_check
      _
    $region71: #{tpu_custom_call.1} parent=1 // pred_check_branch
      %3195 = sbr.rel (0) target = $region73
    $region72: #{tpu_custom_call.1} parent=1 // pred_region
      %s3197 = ssub.s32 256, 256
      %3198 = vsyncadd [#allocation4], %s3197
      %s3199 = sshll.u32 [#allocation13], 4
      %s3200 = int_to_ptr.vmem [resolvable:$true] %s3199
      %3205 = dma.vmem_to_hbm [thread:$0]  %s3200, 256, %s11, [#allocation4], 128, 128, 8
    $region73: #{tpu_custom_call.1} parent=1 // pred_fallthru
      _
    // Predicated region
    $region74: #{tpu_custom_call.1} parent=1 // pred_check
      _
    $region75: #{tpu_custom_call.1} parent=1 // pred_check_branch
      %3207 = sbr.rel (0) target = $region77
    $region76: #{tpu_custom_call.1} parent=1 // pred_region
      %3208 = dma.done [#allocation4], 256
    $region77: #{tpu_custom_call.1} parent=1 // pred_fallthru
      _
    %3209 = vsyncpa [#allocation3], 1
    %3210 = vsyncpa [#allocation6], 1
    %3211 = vsyncpa [#allocation9], 1
    %3212 = vsyncpa [#allocation12], 1
    %3213 = vsyncpa [#allocation4], 1

</llo_original>
